<compile_context>
chip_gen: v7x
topology: tpu7x:2x2x1
jax: 0.10.0
libtpu: 0.0.40
codegen_flags: <defaults>
</compile_context>

<pallas_src>
import functools

import jax
import jax.numpy as jnp
from jax.experimental import pallas as pl
from jax.experimental.pallas import tpu as pltpu


_VMEM_LIMIT = 64 * 1024 * 1024  # explicit cap; blocks are sized well below it (v7x-safe)


def _round_up(a, b):
    return (a + b - 1) // b * b


# --------------------------------------------------------------------------
# Kernel 1: fused Chebyshev graph conv
#   x_ref : (N, m_tile*Fin)   columns are (m, fin) pairs, m-major
#   l_ref : (N, N)            scaled Laplacian (resident across the grid)
#   w_ref : (K*Fin, Fout)     Chebyshev weights stacked k-major
#   b_ref : (1, Fout)
#   o_ref : (N, m_tile*Fout)  lane-dense output, columns (m, fout) m-major
# --------------------------------------------------------------------------
def _cheb_fused_kernel(K, n, m, fin, fout, x_ref, l_ref, w_ref, b_ref, o_ref):
    x = x_ref[...]
    L = l_ref[...]
    w = w_ref[...]
    b = b_ref[...]

    # Chebyshev recursion T_k(L_hat) X, kept entirely in VMEM/vregs (f32).
    terms = [x]
    if K > 1:
        t_prev1 = jnp.dot(L, x, preferred_element_type=jnp.float32)
        terms.append(t_prev1)
        t_prev2 = x
        for _ in range(2, K):
            t_cur = 2.0 * jnp.dot(L, t_prev1, preferred_element_type=jnp.float32) - t_prev2
            terms.append(t_cur)
            t_prev2, t_prev1 = t_prev1, t_cur

    # Per-m projection: concat the K basis slices along features -> one matmul with
    # contraction K*Fin against the stacked weight (no in-kernel lane reshapes).
    outs = []
    for mm in range(m):
        z = jnp.concatenate([t[:, mm * fin:(mm + 1) * fin] for t in terms], axis=-1)
        y = jnp.dot(z, w, preferred_element_type=jnp.float32) + b
        outs.append(jnp.maximum(y, 0.0))
    o_ref[...] = jnp.concatenate(outs, axis=-1)


def _choose_m_tile(M, fin, fout, n_rows):
    # Tile the M columns in whole-m units. A partial tile's last dim must be a
    # multiple of 128; the full extent is always legal.
    budget = 2 << 20
    if 4 * n_rows * M * max(fin, fout) <= budget:
        return M
    for cand in range(M - 1, 0, -1):
        if M % cand:
            continue
        if (cand * fin) % 128 or (cand * fout) % 128:
            continue
        if 4 * n_rows * cand * max(fin, fout) <= budget:
            return cand
    return M


def cheb_gcn_relu(x_cols, l_hat, w_cat, bias, *, K, M, Fin, Fout):
    N = x_cols.shape[0]
    m_tile = _choose_m_tile(M, Fin, Fout, N)
    grid = (M // m_tile,)
    kern = functools.partial(_cheb_fused_kernel, K, N, m_tile, Fin, Fout)
    return pl.pallas_call(
        kern,
        out_shape=jax.ShapeDtypeStruct((N, M * Fout), jnp.float32),
        grid=grid,
        in_specs=[
            pl.BlockSpec((N, m_tile * Fin), lambda j: (0, j)),
            pl.BlockSpec((N, N), lambda j: (0, 0)),
            pl.BlockSpec((K * Fin, Fout), lambda j: (0, 0)),
            pl.BlockSpec((1, Fout), lambda j: (0, 0)),
        ],
        out_specs=pl.BlockSpec((N, m_tile * Fout), lambda j: (0, j)),
        compiler_params=pltpu.CompilerParams(
            dimension_semantics=("parallel",),
            vmem_limit_bytes=_VMEM_LIMIT,
        ),
    )(x_cols, l_hat, w_cat, bias)


# --------------------------------------------------------------------------
# Kernel 2: fused time conv (1x3, stride ts, pad 1) + residual 1x1 + ReLU + LayerNorm
#   sg_ref  : (r, (T+2)*Cin)   padded spatial_gcn per (b,n) row, lanes = (time, channel)
#   xr_ref  : (r, T_out*Fin)   strided residual input per row, lanes = (time, channel)
#   w_ref   : (3*Cin+Fin, Ft)  [time taps (dt,c) ; residual (c)] stacked weight
#   b_ref/g_ref/beta_ref : (1, Ft)
#   o_ref   : (r, T_out*Ft)    lane-dense output, lanes = (time, channel)
# --------------------------------------------------------------------------
def _time_res_ln_kernel(ts, t_out, cin, fin, ft, eps,
                        sg_ref, xr_ref, w_ref, b_ref, g_ref, beta_ref, o_ref):
    sg = sg_ref[...]
    xr = xr_ref[...]
    w = w_ref[...]
    b = b_ref[...]
    g = g_ref[...]
    beta = beta_ref[...]
    outs = []
    for t in range(t_out):
        # 1x3 temporal window = contiguous lane slice of the padded slab (im2col in VMEM).
        win = sg[:, (ts * t) * cin:(ts * t + 3) * cin]                  # (r, 3*cin)
        z = jnp.concatenate([win, xr[:, t * fin:(t + 1) * fin]], axis=-1)
        y = jnp.dot(z, w, preferred_element_type=jnp.float32) + b       # conv + residual fused
        y = jnp.maximum(y, 0.0)                                         # ReLU
        mu = jnp.mean(y, axis=-1, keepdims=True)                        # LayerNorm over Ft (f32)
        d = y - mu
        var = jnp.mean(d * d, axis=-1, keepdims=True)
        outs.append(d * jax.lax.rsqrt(var + eps) * g + beta)
    o_ref[...] = jnp.concatenate(outs, axis=-1)


def time_res_ln(sg_rows, xr_rows, w, b, gamma, beta, *, ts, T_out, Cin, Fin, Ft, eps=1e-5):
    R = sg_rows.shape[0]
    r_tile = _round_up(R, 8) if R <= 512 else 512
    R_pad = _round_up(R, r_tile)
    if R_pad != R:
        sg_rows = jnp.pad(sg_rows, ((0, R_pad - R), (0, 0)))
        xr_rows = jnp.pad(xr_rows, ((0, R_pad - R), (0, 0)))
    kern = functools.partial(_time_res_ln_kernel, ts, T_out, Cin, Fin, Ft, eps)
    out = pl.pallas_call(
        kern,
        out_shape=jax.ShapeDtypeStruct((R_pad, T_out * Ft), jnp.float32),
        grid=(R_pad // r_tile,),
        in_specs=[
            pl.BlockSpec((r_tile, sg_rows.shape[1]), lambda i: (i, 0)),
            pl.BlockSpec((r_tile, xr_rows.shape[1]), lambda i: (i, 0)),
            pl.BlockSpec(w.shape, lambda i: (0, 0)),
            pl.BlockSpec(b.shape, lambda i: (0, 0)),
            pl.BlockSpec(gamma.shape, lambda i: (0, 0)),
            pl.BlockSpec(beta.shape, lambda i: (0, 0)),
        ],
        out_specs=pl.BlockSpec((r_tile, T_out * Ft), lambda i: (i, 0)),
        compiler_params=pltpu.CompilerParams(
            dimension_semantics=("parallel",),
            vmem_limit_bytes=_VMEM_LIMIT,
        ),
    )(sg_rows, xr_rows, w, b, gamma, beta)
    return out[:R]


# --------------------------------------------------------------------------
# Model glue (plain JAX; exact permute/reshape semantics of the reference)
# --------------------------------------------------------------------------
def scaled_laplacian(edge_index, num_nodes):
    # L = D - A (normalization=None), L_hat = 2/lambda_max * L - I.
    # Hoisted out of the block forward: the graph is static, so compute/cache once.
    src, dst = edge_index
    a = jnp.zeros((num_nodes, num_nodes), jnp.float32).at[src, dst].add(1.0)
    deg = jnp.sum(a, axis=1)
    lap = jnp.diag(deg) - a
    # TODO(synk): reference uses scipy sparse eigsh (LaplacianLambdaMax); dense eigvalsh here.
    lambda_max = jnp.max(jnp.linalg.eigvalsh(lap))
    return (2.0 / lambda_max) * lap - jnp.eye(num_nodes, dtype=jnp.float32)


def mstgcn_block_forward(x, l_hat, p, K, time_strides):
    B, N, Fin, T = x.shape
    Fout = p["cheb_w"].shape[-1]          # nb_chev_filter
    Ft = p["time_w"].shape[0]             # nb_time_filter
    assert Fout == Ft == p["time_w"].shape[1], \
        "reference reshape requires nb_chev_filter == nb_time_filter"
    M = T * B

    # ---- Chebyshev graph conv (fused kernel), reference's scrambling reshape kept as-is.
    tmp = jnp.transpose(x, (2, 0, 1, 3)).reshape(N, Fin, M)
    x_cheb = jnp.transpose(tmp, (2, 0, 1))                         # (M, N, Fin)
    x_cols = jnp.transpose(x_cheb, (1, 0, 2)).reshape(N, M * Fin)  # (N, M*Fin)
    w_cat = p["cheb_w"].reshape(K * Fin, Fout)                     # k-major stacking
    gcn = cheb_gcn_relu(x_cols, l_hat, w_cat, p["cheb_b"],
                        K=K, M=M, Fin=Fin, Fout=Fout)              # (N, M*Fout), relu'd
    proj = gcn.reshape(N, M, Fout)
    sg = jnp.transpose(proj, (0, 2, 1)).reshape(N, Ft, B, T)       # reference raw reinterpret
    spatial_gcn = jnp.transpose(sg, (2, 0, 1, 3))                  # (B, N, Ft, T)

    # ---- fused time conv + residual + ReLU + LayerNorm
    ts = time_strides
    T_out = (T - 1) // ts + 1
    sg_rows = jnp.pad(jnp.transpose(spatial_gcn, (0, 1, 3, 2)),
                      ((0, 0), (0, 0), (1, 1), (0, 0))).reshape(B * N, (T + 2) * Ft)
    xr = x[..., 0: ts * (T_out - 1) + 1: ts]                        # (B, N, Fin, T_out)
    xr_rows = jnp.transpose(xr, (0, 1, 3, 2)).reshape(B * N, T_out * Fin)

    wt = jnp.transpose(p["time_w"][:, :, 0, :], (2, 1, 0)).reshape(-1, Ft)  # rows = (dt, c)
    wr = jnp.transpose(p["res_w"][:, :, 0, 0], (1, 0))                      # (Fin, Ft)
    w_tr = jnp.concatenate([wt, wr], axis=0)                                # (3*Cin+Fin, Ft)
    b_tr = p["time_b"] + p["res_b"]

    y = time_res_ln(sg_rows, xr_rows, w_tr, b_tr, p["ln_g"], p["ln_b"],
                    ts=ts, T_out=T_out, Cin=Ft, Fin=Fin, Ft=Ft)
    y = y.reshape(B, N, T_out, Ft)
    return jnp.transpose(y, (0, 1, 3, 2))                           # (B, N, Ft, T_out)


# --------------------------------------------------------------------------
# Deterministic parameter init (shapes from the PyTorch __init__)
# --------------------------------------------------------------------------
def init_params(key, in_channels, K, nb_chev, nb_time):
    ks = jax.random.split(key, 8)

    def xavier(k, shape, fan_in, fan_out):
        a = (6.0 / (fan_in + fan_out)) ** 0.5
        return jax.random.uniform(k, shape, jnp.float32, -a, a)

    def unif(k, shape):
        return jax.random.uniform(k, shape, jnp.float32, 0.0, 1.0)

    return dict(
        cheb_w=xavier(ks[0], (K, in_channels, nb_chev), in_channels, nb_chev),
        cheb_b=unif(ks[1], (1, nb_chev)),
        time_w=xavier(ks[2], (nb_time, nb_chev, 1, 3), nb_chev * 3, nb_time),
        time_b=unif(ks[3], (1, nb_time)),
        res_w=xavier(ks[4], (nb_time, in_channels, 1, 1), in_channels, nb_time),
        res_b=unif(ks[5], (1, nb_time)),
        ln_g=unif(ks[6], (1, nb_time)),
        ln_b=unif(ks[7], (1, nb_time)),
    )


# --------------------------------------------------------------------------
# Pure-JAX reference of the same math (for in-script self-check)
# --------------------------------------------------------------------------
def _reference_block(x, l_hat, p, K, ts):
    B, N, Fin, T = x.shape
    Ft = p["time_w"].shape[0]
    hi = jax.lax.Precision.HIGHEST
    tmp = jnp.transpose(x, (2, 0, 1, 3)).reshape(N, Fin, T * B)
    xc = jnp.transpose(tmp, (2, 0, 1))                              # (M, N, Fin)
    terms = [xc]
    if K > 1:
        terms.append(jnp.einsum("pn,mni->mpi", l_hat, xc, precision=hi))
        for _ in range(2, K):
            terms.append(2.0 * jnp.einsum("pn,mni->mpi", l_hat, terms[-1], precision=hi)
                         - terms[-2])
    out = sum(jnp.einsum("mni,io->mno", terms[k], p["cheb_w"][k], precision=hi)
              for k in range(K)) + p["cheb_b"][0]
    out = jnp.maximum(out, 0.0)
    sg = jnp.transpose(out, (1, 2, 0)).reshape(N, Ft, B, T)
    sg = jnp.transpose(sg, (2, 0, 1, 3))                            # (B, N, Ft, T)

    T_out = (T - 1) // ts + 1
    sgp = jnp.pad(sg, ((0, 0), (0, 0), (0, 0), (1, 1)))
    wt = p["time_w"][:, :, 0, :]                                    # (Ft, Cin, 3)
    tc = jnp.zeros((B, N, Ft, T_out), jnp.float32)
    for t in range(T_out):
        window = sgp[:, :, :, ts * t: ts * t + 3]                   # (B, N, Cin, 3)
        tc = tc.at[:, :, :, t].set(jnp.einsum("bnck,ock->bno", window, wt, precision=hi))
    tc = tc + p["time_b"][0][None, None, :, None]
    xr = x[..., 0: ts * (T_out - 1) + 1: ts]
    res = jnp.einsum("bnct,oc->bnot", xr, p["res_w"][:, :, 0, 0], precision=hi)
    res = res + p["res_b"][0][None, None, :, None]
    y = jnp.maximum(tc + res, 0.0)
    y = jnp.transpose(y, (0, 1, 3, 2))                              # (B, N, T_out, Ft)
    mu = jnp.mean(y, -1, keepdims=True)
    var = jnp.mean((y - mu) ** 2, -1, keepdims=True)
    y = (y - mu) * jax.lax.rsqrt(var + 1e-5) * p["ln_g"][0] + p["ln_b"][0]
    return jnp.transpose(y, (0, 1, 3, 2))


# --------------------------------------------------------------------------
if __name__ == "__main__":
    key = jax.random.PRNGKey(0)
    B, N = 2, 16
    in_channels, K = 4, 3
    nb_chev_filter, nb_time_filter = 16, 16
    time_strides, len_input = 2, 8

    kx, kp = jax.random.split(key)
    x = jax.random.normal(kx, (B, N, in_channels, len_input), jnp.float32)

    # symmetric ring graph
    src = jnp.arange(N, dtype=jnp.int32)
    dst = (src + 1) % N
    edge_index = jnp.stack([jnp.concatenate([src, dst]), jnp.concatenate([dst, src])])

    params = init_params(kp, in_channels, K, nb_chev_filter, nb_time_filter)

    # static graph: compute L_hat once, outside the (jitted) forward
    l_hat = scaled_laplacian(edge_index, N)

    fwd = jax.jit(functools.partial(mstgcn_block_forward, K=K, time_strides=time_strides))
    out = fwd(x, l_hat, params)
    out = jax.block_until_ready(out)

    T_out = (len_input - 1) // time_strides + 1
    assert out.shape == (B, N, nb_time_filter, T_out), out.shape
    assert bool(jnp.all(jnp.isfinite(out)))

    ref = _reference_block(x, l_hat, params, K, time_strides)
    err = float(jnp.max(jnp.abs(out - ref)))
    assert err < 2e-2, f"max abs err vs reference: {err}"

    print("KERNEL_OK")
</pallas_src>

<mosaic_0001>
module attributes {stable_mosaic.version = 11 : i64} {
  func.func @_cheb_fused_kernel(%arg0: i32, %arg1: memref<16x64xf32, #tpu.memory_space<vmem>>, %arg2: memref<16x16xf32, #tpu.memory_space<vmem>>, %arg3: memref<12x16xf32, #tpu.memory_space<vmem>>, %arg4: memref<1x16xf32, #tpu.memory_space<vmem>>, %arg5: memref<16x256xf32, #tpu.memory_space<vmem>>) attributes {dimension_semantics = [#tpu.dimension_semantics<parallel>], iteration_bounds = array<i64: 1>, scalar_prefetch = 0 : i64, scratch_operands = 0 : i64, tpu.core_type = #tpu.core_type<tc>, window_params = [{transform_indices = @transform_0, window_bounds = array<i64: 16, 64>}, {pipeline_mode = #tpu.pipeline_mode<synchronous>, transform_indices = @transform_1, window_bounds = array<i64: 16, 16>}, {pipeline_mode = #tpu.pipeline_mode<synchronous>, transform_indices = @transform_2, window_bounds = array<i64: 12, 16>}, {pipeline_mode = #tpu.pipeline_mode<synchronous>, transform_indices = @transform_3, window_bounds = array<i64: 1, 16>}, {transform_indices = @transform_4, window_bounds = array<i64: 16, 256>}]} {
    %c0 = arith.constant 0 : index
    %c0_0 = arith.constant 0 : index
    %0 = vector.load %arg1[%c0, %c0_0] : memref<16x64xf32, #tpu.memory_space<vmem>>, vector<16x64xf32>
    %c0_1 = arith.constant 0 : index
    %c0_2 = arith.constant 0 : index
    %1 = vector.load %arg2[%c0_1, %c0_2] : memref<16x16xf32, #tpu.memory_space<vmem>>, vector<16x16xf32>
    %c0_3 = arith.constant 0 : index
    %c0_4 = arith.constant 0 : index
    %2 = vector.load %arg3[%c0_3, %c0_4] : memref<12x16xf32, #tpu.memory_space<vmem>>, vector<12x16xf32>
    %c0_5 = arith.constant 0 : index
    %c0_6 = arith.constant 0 : index
    %3 = vector.load %arg4[%c0_5, %c0_6] : memref<1x16xf32, #tpu.memory_space<vmem>>, vector<1x16xf32>
    %cst = arith.constant dense<0.000000e+00> : vector<16x64xf32>
    %4 = tpu.matmul %1, %0, %cst {dimension_numbers = #tpu.dot_dimension_numbers<[1], [0], [0], [1], [0, 0, 1, 1], [], []>} : vector<16x16xf32>, vector<16x64xf32>, vector<16x64xf32> -> vector<16x64xf32>
    %cst_7 = arith.constant dense<0.000000e+00> : vector<16x64xf32>
    %5 = tpu.matmul %1, %4, %cst_7 {dimension_numbers = #tpu.dot_dimension_numbers<[1], [0], [0], [1], [0, 0, 1, 1], [], []>} : vector<16x16xf32>, vector<16x64xf32>, vector<16x64xf32> -> vector<16x64xf32>
    %cst_8 = arith.constant 2.000000e+00 : f32
    %6 = vector.broadcast %cst_8 : f32 to vector<16x64xf32>
    %7 = arith.mulf %6, %5 : vector<16x64xf32>
    %8 = arith.subf %7, %0 : vector<16x64xf32>
    %9 = vector.extract_strided_slice %0 {offsets = [0, 0], sizes = [16, 4], strides = [1, 1]} : vector<16x64xf32> to vector<16x4xf32>
    %10 = vector.extract_strided_slice %4 {offsets = [0, 0], sizes = [16, 4], strides = [1, 1]} : vector<16x64xf32> to vector<16x4xf32>
    %11 = vector.extract_strided_slice %8 {offsets = [0, 0], sizes = [16, 4], strides = [1, 1]} : vector<16x64xf32> to vector<16x4xf32>
    %12 = tpu.concatenate %9, %10, %11 in 1 : vector<16x4xf32>, vector<16x4xf32>, vector<16x4xf32> -> vector<16x12xf32>
    %cst_9 = arith.constant dense<0.000000e+00> : vector<16x16xf32>
    %13 = tpu.matmul %12, %2, %cst_9 {dimension_numbers = #tpu.dot_dimension_numbers<[1], [0], [0], [1], [0, 0, 1, 1], [], []>} : vector<16x12xf32>, vector<12x16xf32>, vector<16x16xf32> -> vector<16x16xf32>
    %14 = vector.broadcast %3 : vector<1x16xf32> to vector<16x16xf32>
    %15 = arith.addf %13, %14 : vector<16x16xf32>
    %cst_10 = arith.constant 0.000000e+00 : f32
    %16 = vector.broadcast %cst_10 : f32 to vector<16x16xf32>
    %17 = arith.maximumf %15, %16 : vector<16x16xf32>
    %18 = vector.extract_strided_slice %0 {offsets = [0, 4], sizes = [16, 4], strides = [1, 1]} : vector<16x64xf32> to vector<16x4xf32>
    %19 = vector.extract_strided_slice %4 {offsets = [0, 4], sizes = [16, 4], strides = [1, 1]} : vector<16x64xf32> to vector<16x4xf32>
    %20 = vector.extract_strided_slice %8 {offsets = [0, 4], sizes = [16, 4], strides = [1, 1]} : vector<16x64xf32> to vector<16x4xf32>
    %21 = tpu.concatenate %18, %19, %20 in 1 : vector<16x4xf32>, vector<16x4xf32>, vector<16x4xf32> -> vector<16x12xf32>
    %cst_11 = arith.constant dense<0.000000e+00> : vector<16x16xf32>
    %22 = tpu.matmul %21, %2, %cst_11 {dimension_numbers = #tpu.dot_dimension_numbers<[1], [0], [0], [1], [0, 0, 1, 1], [], []>} : vector<16x12xf32>, vector<12x16xf32>, vector<16x16xf32> -> vector<16x16xf32>
    %23 = vector.broadcast %3 : vector<1x16xf32> to vector<16x16xf32>
    %24 = arith.addf %22, %23 : vector<16x16xf32>
    %cst_12 = arith.constant 0.000000e+00 : f32
    %25 = vector.broadcast %cst_12 : f32 to vector<16x16xf32>
    %26 = arith.maximumf %24, %25 : vector<16x16xf32>
    %27 = vector.extract_strided_slice %0 {offsets = [0, 8], sizes = [16, 4], strides = [1, 1]} : vector<16x64xf32> to vector<16x4xf32>
    %28 = vector.extract_strided_slice %4 {offsets = [0, 8], sizes = [16, 4], strides = [1, 1]} : vector<16x64xf32> to vector<16x4xf32>
    %29 = vector.extract_strided_slice %8 {offsets = [0, 8], sizes = [16, 4], strides = [1, 1]} : vector<16x64xf32> to vector<16x4xf32>
    %30 = tpu.concatenate %27, %28, %29 in 1 : vector<16x4xf32>, vector<16x4xf32>, vector<16x4xf32> -> vector<16x12xf32>
    %cst_13 = arith.constant dense<0.000000e+00> : vector<16x16xf32>
    %31 = tpu.matmul %30, %2, %cst_13 {dimension_numbers = #tpu.dot_dimension_numbers<[1], [0], [0], [1], [0, 0, 1, 1], [], []>} : vector<16x12xf32>, vector<12x16xf32>, vector<16x16xf32> -> vector<16x16xf32>
    %32 = vector.broadcast %3 : vector<1x16xf32> to vector<16x16xf32>
    %33 = arith.addf %31, %32 : vector<16x16xf32>
    %cst_14 = arith.constant 0.000000e+00 : f32
    %34 = vector.broadcast %cst_14 : f32 to vector<16x16xf32>
    %35 = arith.maximumf %33, %34 : vector<16x16xf32>
    %36 = vector.extract_strided_slice %0 {offsets = [0, 12], sizes = [16, 4], strides = [1, 1]} : vector<16x64xf32> to vector<16x4xf32>
    %37 = vector.extract_strided_slice %4 {offsets = [0, 12], sizes = [16, 4], strides = [1, 1]} : vector<16x64xf32> to vector<16x4xf32>
    %38 = vector.extract_strided_slice %8 {offsets = [0, 12], sizes = [16, 4], strides = [1, 1]} : vector<16x64xf32> to vector<16x4xf32>
    %39 = tpu.concatenate %36, %37, %38 in 1 : vector<16x4xf32>, vector<16x4xf32>, vector<16x4xf32> -> vector<16x12xf32>
    %cst_15 = arith.constant dense<0.000000e+00> : vector<16x16xf32>
    %40 = tpu.matmul %39, %2, %cst_15 {dimension_numbers = #tpu.dot_dimension_numbers<[1], [0], [0], [1], [0, 0, 1, 1], [], []>} : vector<16x12xf32>, vector<12x16xf32>, vector<16x16xf32> -> vector<16x16xf32>
    %41 = vector.broadcast %3 : vector<1x16xf32> to vector<16x16xf32>
    %42 = arith.addf %40, %41 : vector<16x16xf32>
    %cst_16 = arith.constant 0.000000e+00 : f32
    %43 = vector.broadcast %cst_16 : f32 to vector<16x16xf32>
    %44 = arith.maximumf %42, %43 : vector<16x16xf32>
    %45 = vector.extract_strided_slice %0 {offsets = [0, 16], sizes = [16, 4], strides = [1, 1]} : vector<16x64xf32> to vector<16x4xf32>
    %46 = vector.extract_strided_slice %4 {offsets = [0, 16], sizes = [16, 4], strides = [1, 1]} : vector<16x64xf32> to vector<16x4xf32>
    %47 = vector.extract_strided_slice %8 {offsets = [0, 16], sizes = [16, 4], strides = [1, 1]} : vector<16x64xf32> to vector<16x4xf32>
    %48 = tpu.concatenate %45, %46, %47 in 1 : vector<16x4xf32>, vector<16x4xf32>, vector<16x4xf32> -> vector<16x12xf32>
    %cst_17 = arith.constant dense<0.000000e+00> : vector<16x16xf32>
    %49 = tpu.matmul %48, %2, %cst_17 {dimension_numbers = #tpu.dot_dimension_numbers<[1], [0], [0], [1], [0, 0, 1, 1], [], []>} : vector<16x12xf32>, vector<12x16xf32>, vector<16x16xf32> -> vector<16x16xf32>
    %50 = vector.broadcast %3 : vector<1x16xf32> to vector<16x16xf32>
    %51 = arith.addf %49, %50 : vector<16x16xf32>
    %cst_18 = arith.constant 0.000000e+00 : f32
    %52 = vector.broadcast %cst_18 : f32 to vector<16x16xf32>
    %53 = arith.maximumf %51, %52 : vector<16x16xf32>
    %54 = vector.extract_strided_slice %0 {offsets = [0, 20], sizes = [16, 4], strides = [1, 1]} : vector<16x64xf32> to vector<16x4xf32>
    %55 = vector.extract_strided_slice %4 {offsets = [0, 20], sizes = [16, 4], strides = [1, 1]} : vector<16x64xf32> to vector<16x4xf32>
    %56 = vector.extract_strided_slice %8 {offsets = [0, 20], sizes = [16, 4], strides = [1, 1]} : vector<16x64xf32> to vector<16x4xf32>
    %57 = tpu.concatenate %54, %55, %56 in 1 : vector<16x4xf32>, vector<16x4xf32>, vector<16x4xf32> -> vector<16x12xf32>
    %cst_19 = arith.constant dense<0.000000e+00> : vector<16x16xf32>
    %58 = tpu.matmul %57, %2, %cst_19 {dimension_numbers = #tpu.dot_dimension_numbers<[1], [0], [0], [1], [0, 0, 1, 1], [], []>} : vector<16x12xf32>, vector<12x16xf32>, vector<16x16xf32> -> vector<16x16xf32>
    %59 = vector.broadcast %3 : vector<1x16xf32> to vector<16x16xf32>
    %60 = arith.addf %58, %59 : vector<16x16xf32>
    %cst_20 = arith.constant 0.000000e+00 : f32
    %61 = vector.broadcast %cst_20 : f32 to vector<16x16xf32>
    %62 = arith.maximumf %60, %61 : vector<16x16xf32>
    %63 = vector.extract_strided_slice %0 {offsets = [0, 24], sizes = [16, 4], strides = [1, 1]} : vector<16x64xf32> to vector<16x4xf32>
    %64 = vector.extract_strided_slice %4 {offsets = [0, 24], sizes = [16, 4], strides = [1, 1]} : vector<16x64xf32> to vector<16x4xf32>
    %65 = vector.extract_strided_slice %8 {offsets = [0, 24], sizes = [16, 4], strides = [1, 1]} : vector<16x64xf32> to vector<16x4xf32>
    %66 = tpu.concatenate %63, %64, %65 in 1 : vector<16x4xf32>, vector<16x4xf32>, vector<16x4xf32> -> vector<16x12xf32>
    %cst_21 = arith.constant dense<0.000000e+00> : vector<16x16xf32>
    %67 = tpu.matmul %66, %2, %cst_21 {dimension_numbers = #tpu.dot_dimension_numbers<[1], [0], [0], [1], [0, 0, 1, 1], [], []>} : vector<16x12xf32>, vector<12x16xf32>, vector<16x16xf32> -> vector<16x16xf32>
    %68 = vector.broadcast %3 : vector<1x16xf32> to vector<16x16xf32>
    %69 = arith.addf %67, %68 : vector<16x16xf32>
    %cst_22 = arith.constant 0.000000e+00 : f32
    %70 = vector.broadcast %cst_22 : f32 to vector<16x16xf32>
    %71 = arith.maximumf %69, %70 : vector<16x16xf32>
    %72 = vector.extract_strided_slice %0 {offsets = [0, 28], sizes = [16, 4], strides = [1, 1]} : vector<16x64xf32> to vector<16x4xf32>
    %73 = vector.extract_strided_slice %4 {offsets = [0, 28], sizes = [16, 4], strides = [1, 1]} : vector<16x64xf32> to vector<16x4xf32>
    %74 = vector.extract_strided_slice %8 {offsets = [0, 28], sizes = [16, 4], strides = [1, 1]} : vector<16x64xf32> to vector<16x4xf32>
    %75 = tpu.concatenate %72, %73, %74 in 1 : vector<16x4xf32>, vector<16x4xf32>, vector<16x4xf32> -> vector<16x12xf32>
    %cst_23 = arith.constant dense<0.000000e+00> : vector<16x16xf32>
    %76 = tpu.matmul %75, %2, %cst_23 {dimension_numbers = #tpu.dot_dimension_numbers<[1], [0], [0], [1], [0, 0, 1, 1], [], []>} : vector<16x12xf32>, vector<12x16xf32>, vector<16x16xf32> -> vector<16x16xf32>
    %77 = vector.broadcast %3 : vector<1x16xf32> to vector<16x16xf32>
    %78 = arith.addf %76, %77 : vector<16x16xf32>
    %cst_24 = arith.constant 0.000000e+00 : f32
    %79 = vector.broadcast %cst_24 : f32 to vector<16x16xf32>
    %80 = arith.maximumf %78, %79 : vector<16x16xf32>
    %81 = vector.extract_strided_slice %0 {offsets = [0, 32], sizes = [16, 4], strides = [1, 1]} : vector<16x64xf32> to vector<16x4xf32>
    %82 = vector.extract_strided_slice %4 {offsets = [0, 32], sizes = [16, 4], strides = [1, 1]} : vector<16x64xf32> to vector<16x4xf32>
    %83 = vector.extract_strided_slice %8 {offsets = [0, 32], sizes = [16, 4], strides = [1, 1]} : vector<16x64xf32> to vector<16x4xf32>
    %84 = tpu.concatenate %81, %82, %83 in 1 : vector<16x4xf32>, vector<16x4xf32>, vector<16x4xf32> -> vector<16x12xf32>
    %cst_25 = arith.constant dense<0.000000e+00> : vector<16x16xf32>
    %85 = tpu.matmul %84, %2, %cst_25 {dimension_numbers = #tpu.dot_dimension_numbers<[1], [0], [0], [1], [0, 0, 1, 1], [], []>} : vector<16x12xf32>, vector<12x16xf32>, vector<16x16xf32> -> vector<16x16xf32>
    %86 = vector.broadcast %3 : vector<1x16xf32> to vector<16x16xf32>
    %87 = arith.addf %85, %86 : vector<16x16xf32>
    %cst_26 = arith.constant 0.000000e+00 : f32
    %88 = vector.broadcast %cst_26 : f32 to vector<16x16xf32>
    %89 = arith.maximumf %87, %88 : vector<16x16xf32>
    %90 = vector.extract_strided_slice %0 {offsets = [0, 36], sizes = [16, 4], strides = [1, 1]} : vector<16x64xf32> to vector<16x4xf32>
    %91 = vector.extract_strided_slice %4 {offsets = [0, 36], sizes = [16, 4], strides = [1, 1]} : vector<16x64xf32> to vector<16x4xf32>
    %92 = vector.extract_strided_slice %8 {offsets = [0, 36], sizes = [16, 4], strides = [1, 1]} : vector<16x64xf32> to vector<16x4xf32>
    %93 = tpu.concatenate %90, %91, %92 in 1 : vector<16x4xf32>, vector<16x4xf32>, vector<16x4xf32> -> vector<16x12xf32>
    %cst_27 = arith.constant dense<0.000000e+00> : vector<16x16xf32>
    %94 = tpu.matmul %93, %2, %cst_27 {dimension_numbers = #tpu.dot_dimension_numbers<[1], [0], [0], [1], [0, 0, 1, 1], [], []>} : vector<16x12xf32>, vector<12x16xf32>, vector<16x16xf32> -> vector<16x16xf32>
    %95 = vector.broadcast %3 : vector<1x16xf32> to vector<16x16xf32>
    %96 = arith.addf %94, %95 : vector<16x16xf32>
    %cst_28 = arith.constant 0.000000e+00 : f32
    %97 = vector.broadcast %cst_28 : f32 to vector<16x16xf32>
    %98 = arith.maximumf %96, %97 : vector<16x16xf32>
    %99 = vector.extract_strided_slice %0 {offsets = [0, 40], sizes = [16, 4], strides = [1, 1]} : vector<16x64xf32> to vector<16x4xf32>
    %100 = vector.extract_strided_slice %4 {offsets = [0, 40], sizes = [16, 4], strides = [1, 1]} : vector<16x64xf32> to vector<16x4xf32>
    %101 = vector.extract_strided_slice %8 {offsets = [0, 40], sizes = [16, 4], strides = [1, 1]} : vector<16x64xf32> to vector<16x4xf32>
    %102 = tpu.concatenate %99, %100, %101 in 1 : vector<16x4xf32>, vector<16x4xf32>, vector<16x4xf32> -> vector<16x12xf32>
    %cst_29 = arith.constant dense<0.000000e+00> : vector<16x16xf32>
    %103 = tpu.matmul %102, %2, %cst_29 {dimension_numbers = #tpu.dot_dimension_numbers<[1], [0], [0], [1], [0, 0, 1, 1], [], []>} : vector<16x12xf32>, vector<12x16xf32>, vector<16x16xf32> -> vector<16x16xf32>
    %104 = vector.broadcast %3 : vector<1x16xf32> to vector<16x16xf32>
    %105 = arith.addf %103, %104 : vector<16x16xf32>
    %cst_30 = arith.constant 0.000000e+00 : f32
    %106 = vector.broadcast %cst_30 : f32 to vector<16x16xf32>
    %107 = arith.maximumf %105, %106 : vector<16x16xf32>
    %108 = vector.extract_strided_slice %0 {offsets = [0, 44], sizes = [16, 4], strides = [1, 1]} : vector<16x64xf32> to vector<16x4xf32>
    %109 = vector.extract_strided_slice %4 {offsets = [0, 44], sizes = [16, 4], strides = [1, 1]} : vector<16x64xf32> to vector<16x4xf32>
    %110 = vector.extract_strided_slice %8 {offsets = [0, 44], sizes = [16, 4], strides = [1, 1]} : vector<16x64xf32> to vector<16x4xf32>
    %111 = tpu.concatenate %108, %109, %110 in 1 : vector<16x4xf32>, vector<16x4xf32>, vector<16x4xf32> -> vector<16x12xf32>
    %cst_31 = arith.constant dense<0.000000e+00> : vector<16x16xf32>
    %112 = tpu.matmul %111, %2, %cst_31 {dimension_numbers = #tpu.dot_dimension_numbers<[1], [0], [0], [1], [0, 0, 1, 1], [], []>} : vector<16x12xf32>, vector<12x16xf32>, vector<16x16xf32> -> vector<16x16xf32>
    %113 = vector.broadcast %3 : vector<1x16xf32> to vector<16x16xf32>
    %114 = arith.addf %112, %113 : vector<16x16xf32>
    %cst_32 = arith.constant 0.000000e+00 : f32
    %115 = vector.broadcast %cst_32 : f32 to vector<16x16xf32>
    %116 = arith.maximumf %114, %115 : vector<16x16xf32>
    %117 = vector.extract_strided_slice %0 {offsets = [0, 48], sizes = [16, 4], strides = [1, 1]} : vector<16x64xf32> to vector<16x4xf32>
    %118 = vector.extract_strided_slice %4 {offsets = [0, 48], sizes = [16, 4], strides = [1, 1]} : vector<16x64xf32> to vector<16x4xf32>
    %119 = vector.extract_strided_slice %8 {offsets = [0, 48], sizes = [16, 4], strides = [1, 1]} : vector<16x64xf32> to vector<16x4xf32>
    %120 = tpu.concatenate %117, %118, %119 in 1 : vector<16x4xf32>, vector<16x4xf32>, vector<16x4xf32> -> vector<16x12xf32>
    %cst_33 = arith.constant dense<0.000000e+00> : vector<16x16xf32>
    %121 = tpu.matmul %120, %2, %cst_33 {dimension_numbers = #tpu.dot_dimension_numbers<[1], [0], [0], [1], [0, 0, 1, 1], [], []>} : vector<16x12xf32>, vector<12x16xf32>, vector<16x16xf32> -> vector<16x16xf32>
    %122 = vector.broadcast %3 : vector<1x16xf32> to vector<16x16xf32>
    %123 = arith.addf %121, %122 : vector<16x16xf32>
    %cst_34 = arith.constant 0.000000e+00 : f32
    %124 = vector.broadcast %cst_34 : f32 to vector<16x16xf32>
    %125 = arith.maximumf %123, %124 : vector<16x16xf32>
    %126 = vector.extract_strided_slice %0 {offsets = [0, 52], sizes = [16, 4], strides = [1, 1]} : vector<16x64xf32> to vector<16x4xf32>
    %127 = vector.extract_strided_slice %4 {offsets = [0, 52], sizes = [16, 4], strides = [1, 1]} : vector<16x64xf32> to vector<16x4xf32>
    %128 = vector.extract_strided_slice %8 {offsets = [0, 52], sizes = [16, 4], strides = [1, 1]} : vector<16x64xf32> to vector<16x4xf32>
    %129 = tpu.concatenate %126, %127, %128 in 1 : vector<16x4xf32>, vector<16x4xf32>, vector<16x4xf32> -> vector<16x12xf32>
    %cst_35 = arith.constant dense<0.000000e+00> : vector<16x16xf32>
    %130 = tpu.matmul %129, %2, %cst_35 {dimension_numbers = #tpu.dot_dimension_numbers<[1], [0], [0], [1], [0, 0, 1, 1], [], []>} : vector<16x12xf32>, vector<12x16xf32>, vector<16x16xf32> -> vector<16x16xf32>
    %131 = vector.broadcast %3 : vector<1x16xf32> to vector<16x16xf32>
    %132 = arith.addf %130, %131 : vector<16x16xf32>
    %cst_36 = arith.constant 0.000000e+00 : f32
    %133 = vector.broadcast %cst_36 : f32 to vector<16x16xf32>
    %134 = arith.maximumf %132, %133 : vector<16x16xf32>
    %135 = vector.extract_strided_slice %0 {offsets = [0, 56], sizes = [16, 4], strides = [1, 1]} : vector<16x64xf32> to vector<16x4xf32>
    %136 = vector.extract_strided_slice %4 {offsets = [0, 56], sizes = [16, 4], strides = [1, 1]} : vector<16x64xf32> to vector<16x4xf32>
    %137 = vector.extract_strided_slice %8 {offsets = [0, 56], sizes = [16, 4], strides = [1, 1]} : vector<16x64xf32> to vector<16x4xf32>
    %138 = tpu.concatenate %135, %136, %137 in 1 : vector<16x4xf32>, vector<16x4xf32>, vector<16x4xf32> -> vector<16x12xf32>
    %cst_37 = arith.constant dense<0.000000e+00> : vector<16x16xf32>
    %139 = tpu.matmul %138, %2, %cst_37 {dimension_numbers = #tpu.dot_dimension_numbers<[1], [0], [0], [1], [0, 0, 1, 1], [], []>} : vector<16x12xf32>, vector<12x16xf32>, vector<16x16xf32> -> vector<16x16xf32>
    %140 = vector.broadcast %3 : vector<1x16xf32> to vector<16x16xf32>
    %141 = arith.addf %139, %140 : vector<16x16xf32>
    %cst_38 = arith.constant 0.000000e+00 : f32
    %142 = vector.broadcast %cst_38 : f32 to vector<16x16xf32>
    %143 = arith.maximumf %141, %142 : vector<16x16xf32>
    %144 = vector.extract_strided_slice %0 {offsets = [0, 60], sizes = [16, 4], strides = [1, 1]} : vector<16x64xf32> to vector<16x4xf32>
    %145 = vector.extract_strided_slice %4 {offsets = [0, 60], sizes = [16, 4], strides = [1, 1]} : vector<16x64xf32> to vector<16x4xf32>
    %146 = vector.extract_strided_slice %8 {offsets = [0, 60], sizes = [16, 4], strides = [1, 1]} : vector<16x64xf32> to vector<16x4xf32>
    %147 = tpu.concatenate %144, %145, %146 in 1 : vector<16x4xf32>, vector<16x4xf32>, vector<16x4xf32> -> vector<16x12xf32>
    %cst_39 = arith.constant dense<0.000000e+00> : vector<16x16xf32>
    %148 = tpu.matmul %147, %2, %cst_39 {dimension_numbers = #tpu.dot_dimension_numbers<[1], [0], [0], [1], [0, 0, 1, 1], [], []>} : vector<16x12xf32>, vector<12x16xf32>, vector<16x16xf32> -> vector<16x16xf32>
    %149 = vector.broadcast %3 : vector<1x16xf32> to vector<16x16xf32>
    %150 = arith.addf %148, %149 : vector<16x16xf32>
    %cst_40 = arith.constant 0.000000e+00 : f32
    %151 = vector.broadcast %cst_40 : f32 to vector<16x16xf32>
    %152 = arith.maximumf %150, %151 : vector<16x16xf32>
    %153 = tpu.concatenate %17, %26, %35, %44, %53, %62, %71, %80, %89, %98, %107, %116, %125, %134, %143, %152 in 1 : vector<16x16xf32>, vector<16x16xf32>, vector<16x16xf32>, vector<16x16xf32>, vector<16x16xf32>, vector<16x16xf32>, vector<16x16xf32>, vector<16x16xf32>, vector<16x16xf32>, vector<16x16xf32>, vector<16x16xf32>, vector<16x16xf32>, vector<16x16xf32>, vector<16x16xf32>, vector<16x16xf32>, vector<16x16xf32> -> vector<16x256xf32>
    %c0_41 = arith.constant 0 : index
    %c0_42 = arith.constant 0 : index
    %154 = vector.load %arg5[%c0_41, %c0_42] : memref<16x256xf32, #tpu.memory_space<vmem>>, vector<16x256xf32>
    tpu.vector_store %arg5[%c0_41, %c0_42], %153 {strides = array<i32>} : memref<16x256xf32, #tpu.memory_space<vmem>>, vector<16x256xf32>,
    return
  }
  func.func @transform_0(%arg0: i32) -> (i32, i32) {
    %c0_i32 = arith.constant 0 : i32
    %c0_i32_0 = arith.constant 0 : i32
    return %c0_i32, %arg0 : i32, i32
  }
  func.func @transform_1(%arg0: i32) -> (i32, i32) {
    %c0_i32 = arith.constant 0 : i32
    %c0_i32_0 = arith.constant 0 : i32
    %c0_i32_1 = arith.constant 0 : i32
    return %c0_i32, %c0_i32_0 : i32, i32
  }
  func.func @transform_2(%arg0: i32) -> (i32, i32) {
    %c0_i32 = arith.constant 0 : i32
    %c0_i32_0 = arith.constant 0 : i32
    %c0_i32_1 = arith.constant 0 : i32
    return %c0_i32, %c0_i32_0 : i32, i32
  }
  func.func @transform_3(%arg0: i32) -> (i32, i32) {
    %c0_i32 = arith.constant 0 : i32
    %c0_i32_0 = arith.constant 0 : i32
    %c0_i32_1 = arith.constant 0 : i32
    return %c0_i32, %c0_i32_0 : i32, i32
  }
  func.func @transform_4(%arg0: i32) -> (i32, i32) {
    %c0_i32 = arith.constant 0 : i32
    %c0_i32_0 = arith.constant 0 : i32
    return %c0_i32, %arg0 : i32, i32
  }
}

module attributes {stable_mosaic.version = 11 : i64} {
  func.func @_time_res_ln_kernel(%arg0: i32, %arg1: memref<32x160xf32, #tpu.memory_space<vmem>>, %arg2: memref<32x16xf32, #tpu.memory_space<vmem>>, %arg3: memref<52x16xf32, #tpu.memory_space<vmem>>, %arg4: memref<1x16xf32, #tpu.memory_space<vmem>>, %arg5: memref<1x16xf32, #tpu.memory_space<vmem>>, %arg6: memref<1x16xf32, #tpu.memory_space<vmem>>, %arg7: memref<32x64xf32, #tpu.memory_space<vmem>>) attributes {dimension_semantics = [#tpu.dimension_semantics<parallel>], iteration_bounds = array<i64: 1>, scalar_prefetch = 0 : i64, scratch_operands = 0 : i64, tpu.core_type = #tpu.core_type<tc>, window_params = [{transform_indices = @transform_0, window_bounds = array<i64: 32, 160>}, {transform_indices = @transform_1, window_bounds = array<i64: 32, 16>}, {pipeline_mode = #tpu.pipeline_mode<synchronous>, transform_indices = @transform_2, window_bounds = array<i64: 52, 16>}, {pipeline_mode = #tpu.pipeline_mode<synchronous>, transform_indices = @transform_3, window_bounds = array<i64: 1, 16>}, {pipeline_mode = #tpu.pipeline_mode<synchronous>, transform_indices = @transform_4, window_bounds = array<i64: 1, 16>}, {pipeline_mode = #tpu.pipeline_mode<synchronous>, transform_indices = @transform_5, window_bounds = array<i64: 1, 16>}, {transform_indices = @transform_6, window_bounds = array<i64: 32, 64>}]} {
    %c0 = arith.constant 0 : index
    %c0_0 = arith.constant 0 : index
    %0 = vector.load %arg1[%c0, %c0_0] : memref<32x160xf32, #tpu.memory_space<vmem>>, vector<32x160xf32>
    %c0_1 = arith.constant 0 : index
    %c0_2 = arith.constant 0 : index
    %1 = vector.load %arg2[%c0_1, %c0_2] : memref<32x16xf32, #tpu.memory_space<vmem>>, vector<32x16xf32>
    %c0_3 = arith.constant 0 : index
    %c0_4 = arith.constant 0 : index
    %2 = vector.load %arg3[%c0_3, %c0_4] : memref<52x16xf32, #tpu.memory_space<vmem>>, vector<52x16xf32>
    %c0_5 = arith.constant 0 : index
    %c0_6 = arith.constant 0 : index
    %3 = vector.load %arg4[%c0_5, %c0_6] : memref<1x16xf32, #tpu.memory_space<vmem>>, vector<1x16xf32>
    %c0_7 = arith.constant 0 : index
    %c0_8 = arith.constant 0 : index
    %4 = vector.load %arg5[%c0_7, %c0_8] : memref<1x16xf32, #tpu.memory_space<vmem>>, vector<1x16xf32>
    %c0_9 = arith.constant 0 : index
    %c0_10 = arith.constant 0 : index
    %5 = vector.load %arg6[%c0_9, %c0_10] : memref<1x16xf32, #tpu.memory_space<vmem>>, vector<1x16xf32>
    %6 = vector.extract_strided_slice %0 {offsets = [0, 0], sizes = [32, 48], strides = [1, 1]} : vector<32x160xf32> to vector<32x48xf32>
    %7 = vector.extract_strided_slice %1 {offsets = [0, 0], sizes = [32, 4], strides = [1, 1]} : vector<32x16xf32> to vector<32x4xf32>
    %8 = tpu.concatenate %6, %7 in 1 : vector<32x48xf32>, vector<32x4xf32> -> vector<32x52xf32>
    %cst = arith.constant dense<0.000000e+00> : vector<32x16xf32>
    %9 = tpu.matmul %8, %2, %cst {dimension_numbers = #tpu.dot_dimension_numbers<[1], [0], [0], [1], [0, 0, 1, 1], [], []>} : vector<32x52xf32>, vector<52x16xf32>, vector<32x16xf32> -> vector<32x16xf32>
    %10 = vector.broadcast %3 : vector<1x16xf32> to vector<32x16xf32>
    %11 = arith.addf %9, %10 : vector<32x16xf32>
    %cst_11 = arith.constant 0.000000e+00 : f32
    %12 = vector.broadcast %cst_11 : f32 to vector<32x16xf32>
    %13 = arith.maximumf %11, %12 : vector<32x16xf32>
    %cst_12 = arith.constant dense<0.000000e+00> : vector<32xf32>
    %14 = vector.multi_reduction <add>, %13, %cst_12 [1] : vector<32x16xf32> to vector<32xf32>
    %15 = vector.shape_cast %14 : vector<32xf32> to vector<32x1xf32>
    %cst_13 = arith.constant 1.600000e+01 : f32
    %16 = vector.broadcast %cst_13 : f32 to vector<32x1xf32>
    %17 = arith.divf %15, %16 : vector<32x1xf32>
    %18 = vector.broadcast %17 : vector<32x1xf32> to vector<32x16xf32>
    %19 = arith.subf %13, %18 : vector<32x16xf32>
    %20 = arith.mulf %19, %19 : vector<32x16xf32>
    %cst_14 = arith.constant dense<0.000000e+00> : vector<32xf32>
    %21 = vector.multi_reduction <add>, %20, %cst_14 [1] : vector<32x16xf32> to vector<32xf32>
    %22 = vector.shape_cast %21 : vector<32xf32> to vector<32x1xf32>
    %cst_15 = arith.constant 1.600000e+01 : f32
    %23 = vector.broadcast %cst_15 : f32 to vector<32x1xf32>
    %24 = arith.divf %22, %23 : vector<32x1xf32>
    %cst_16 = arith.constant 9.99999974E-6 : f32
    %25 = vector.broadcast %cst_16 : f32 to vector<32x1xf32>
    %26 = arith.addf %24, %25 : vector<32x1xf32>
    %27 = math.rsqrt %26 : vector<32x1xf32>
    %28 = vector.broadcast %27 : vector<32x1xf32> to vector<32x16xf32>
    %29 = arith.mulf %19, %28 : vector<32x16xf32>
    %30 = vector.broadcast %4 : vector<1x16xf32> to vector<32x16xf32>
    %31 = arith.mulf %29, %30 : vector<32x16xf32>
    %32 = vector.broadcast %5 : vector<1x16xf32> to vector<32x16xf32>
    %33 = arith.addf %31, %32 : vector<32x16xf32>
    %34 = vector.extract_strided_slice %0 {offsets = [0, 32], sizes = [32, 48], strides = [1, 1]} : vector<32x160xf32> to vector<32x48xf32>
    %35 = vector.extract_strided_slice %1 {offsets = [0, 4], sizes = [32, 4], strides = [1, 1]} : vector<32x16xf32> to vector<32x4xf32>
    %36 = tpu.concatenate %34, %35 in 1 : vector<32x48xf32>, vector<32x4xf32> -> vector<32x52xf32>
    %cst_17 = arith.constant dense<0.000000e+00> : vector<32x16xf32>
    %37 = tpu.matmul %36, %2, %cst_17 {dimension_numbers = #tpu.dot_dimension_numbers<[1], [0], [0], [1], [0, 0, 1, 1], [], []>} : vector<32x52xf32>, vector<52x16xf32>, vector<32x16xf32> -> vector<32x16xf32>
    %38 = vector.broadcast %3 : vector<1x16xf32> to vector<32x16xf32>
    %39 = arith.addf %37, %38 : vector<32x16xf32>
    %cst_18 = arith.constant 0.000000e+00 : f32
    %40 = vector.broadcast %cst_18 : f32 to vector<32x16xf32>
    %41 = arith.maximumf %39, %40 : vector<32x16xf32>
    %cst_19 = arith.constant dense<0.000000e+00> : vector<32xf32>
    %42 = vector.multi_reduction <add>, %41, %cst_19 [1] : vector<32x16xf32> to vector<32xf32>
    %43 = vector.shape_cast %42 : vector<32xf32> to vector<32x1xf32>
    %cst_20 = arith.constant 1.600000e+01 : f32
    %44 = vector.broadcast %cst_20 : f32 to vector<32x1xf32>
    %45 = arith.divf %43, %44 : vector<32x1xf32>
    %46 = vector.broadcast %45 : vector<32x1xf32> to vector<32x16xf32>
    %47 = arith.subf %41, %46 : vector<32x16xf32>
    %48 = arith.mulf %47, %47 : vector<32x16xf32>
    %cst_21 = arith.constant dense<0.000000e+00> : vector<32xf32>
    %49 = vector.multi_reduction <add>, %48, %cst_21 [1] : vector<32x16xf32> to vector<32xf32>
    %50 = vector.shape_cast %49 : vector<32xf32> to vector<32x1xf32>
    %cst_22 = arith.constant 1.600000e+01 : f32
    %51 = vector.broadcast %cst_22 : f32 to vector<32x1xf32>
    %52 = arith.divf %50, %51 : vector<32x1xf32>
    %cst_23 = arith.constant 9.99999974E-6 : f32
    %53 = vector.broadcast %cst_23 : f32 to vector<32x1xf32>
    %54 = arith.addf %52, %53 : vector<32x1xf32>
    %55 = math.rsqrt %54 : vector<32x1xf32>
    %56 = vector.broadcast %55 : vector<32x1xf32> to vector<32x16xf32>
    %57 = arith.mulf %47, %56 : vector<32x16xf32>
    %58 = vector.broadcast %4 : vector<1x16xf32> to vector<32x16xf32>
    %59 = arith.mulf %57, %58 : vector<32x16xf32>
    %60 = vector.broadcast %5 : vector<1x16xf32> to vector<32x16xf32>
    %61 = arith.addf %59, %60 : vector<32x16xf32>
    %62 = vector.extract_strided_slice %0 {offsets = [0, 64], sizes = [32, 48], strides = [1, 1]} : vector<32x160xf32> to vector<32x48xf32>
    %63 = vector.extract_strided_slice %1 {offsets = [0, 8], sizes = [32, 4], strides = [1, 1]} : vector<32x16xf32> to vector<32x4xf32>
    %64 = tpu.concatenate %62, %63 in 1 : vector<32x48xf32>, vector<32x4xf32> -> vector<32x52xf32>
    %cst_24 = arith.constant dense<0.000000e+00> : vector<32x16xf32>
    %65 = tpu.matmul %64, %2, %cst_24 {dimension_numbers = #tpu.dot_dimension_numbers<[1], [0], [0], [1], [0, 0, 1, 1], [], []>} : vector<32x52xf32>, vector<52x16xf32>, vector<32x16xf32> -> vector<32x16xf32>
    %66 = vector.broadcast %3 : vector<1x16xf32> to vector<32x16xf32>
    %67 = arith.addf %65, %66 : vector<32x16xf32>
    %cst_25 = arith.constant 0.000000e+00 : f32
    %68 = vector.broadcast %cst_25 : f32 to vector<32x16xf32>
    %69 = arith.maximumf %67, %68 : vector<32x16xf32>
    %cst_26 = arith.constant dense<0.000000e+00> : vector<32xf32>
    %70 = vector.multi_reduction <add>, %69, %cst_26 [1] : vector<32x16xf32> to vector<32xf32>
    %71 = vector.shape_cast %70 : vector<32xf32> to vector<32x1xf32>
    %cst_27 = arith.constant 1.600000e+01 : f32
    %72 = vector.broadcast %cst_27 : f32 to vector<32x1xf32>
    %73 = arith.divf %71, %72 : vector<32x1xf32>
    %74 = vector.broadcast %73 : vector<32x1xf32> to vector<32x16xf32>
    %75 = arith.subf %69, %74 : vector<32x16xf32>
    %76 = arith.mulf %75, %75 : vector<32x16xf32>
    %cst_28 = arith.constant dense<0.000000e+00> : vector<32xf32>
    %77 = vector.multi_reduction <add>, %76, %cst_28 [1] : vector<32x16xf32> to vector<32xf32>
    %78 = vector.shape_cast %77 : vector<32xf32> to vector<32x1xf32>
    %cst_29 = arith.constant 1.600000e+01 : f32
    %79 = vector.broadcast %cst_29 : f32 to vector<32x1xf32>
    %80 = arith.divf %78, %79 : vector<32x1xf32>
    %cst_30 = arith.constant 9.99999974E-6 : f32
    %81 = vector.broadcast %cst_30 : f32 to vector<32x1xf32>
    %82 = arith.addf %80, %81 : vector<32x1xf32>
    %83 = math.rsqrt %82 : vector<32x1xf32>
    %84 = vector.broadcast %83 : vector<32x1xf32> to vector<32x16xf32>
    %85 = arith.mulf %75, %84 : vector<32x16xf32>
    %86 = vector.broadcast %4 : vector<1x16xf32> to vector<32x16xf32>
    %87 = arith.mulf %85, %86 : vector<32x16xf32>
    %88 = vector.broadcast %5 : vector<1x16xf32> to vector<32x16xf32>
    %89 = arith.addf %87, %88 : vector<32x16xf32>
    %90 = vector.extract_strided_slice %0 {offsets = [0, 96], sizes = [32, 48], strides = [1, 1]} : vector<32x160xf32> to vector<32x48xf32>
    %91 = vector.extract_strided_slice %1 {offsets = [0, 12], sizes = [32, 4], strides = [1, 1]} : vector<32x16xf32> to vector<32x4xf32>
    %92 = tpu.concatenate %90, %91 in 1 : vector<32x48xf32>, vector<32x4xf32> -> vector<32x52xf32>
    %cst_31 = arith.constant dense<0.000000e+00> : vector<32x16xf32>
    %93 = tpu.matmul %92, %2, %cst_31 {dimension_numbers = #tpu.dot_dimension_numbers<[1], [0], [0], [1], [0, 0, 1, 1], [], []>} : vector<32x52xf32>, vector<52x16xf32>, vector<32x16xf32> -> vector<32x16xf32>
    %94 = vector.broadcast %3 : vector<1x16xf32> to vector<32x16xf32>
    %95 = arith.addf %93, %94 : vector<32x16xf32>
    %cst_32 = arith.constant 0.000000e+00 : f32
    %96 = vector.broadcast %cst_32 : f32 to vector<32x16xf32>
    %97 = arith.maximumf %95, %96 : vector<32x16xf32>
    %cst_33 = arith.constant dense<0.000000e+00> : vector<32xf32>
    %98 = vector.multi_reduction <add>, %97, %cst_33 [1] : vector<32x16xf32> to vector<32xf32>
    %99 = vector.shape_cast %98 : vector<32xf32> to vector<32x1xf32>
    %cst_34 = arith.constant 1.600000e+01 : f32
    %100 = vector.broadcast %cst_34 : f32 to vector<32x1xf32>
    %101 = arith.divf %99, %100 : vector<32x1xf32>
    %102 = vector.broadcast %101 : vector<32x1xf32> to vector<32x16xf32>
    %103 = arith.subf %97, %102 : vector<32x16xf32>
    %104 = arith.mulf %103, %103 : vector<32x16xf32>
    %cst_35 = arith.constant dense<0.000000e+00> : vector<32xf32>
    %105 = vector.multi_reduction <add>, %104, %cst_35 [1] : vector<32x16xf32> to vector<32xf32>
    %106 = vector.shape_cast %105 : vector<32xf32> to vector<32x1xf32>
    %cst_36 = arith.constant 1.600000e+01 : f32
    %107 = vector.broadcast %cst_36 : f32 to vector<32x1xf32>
    %108 = arith.divf %106, %107 : vector<32x1xf32>
    %cst_37 = arith.constant 9.99999974E-6 : f32
    %109 = vector.broadcast %cst_37 : f32 to vector<32x1xf32>
    %110 = arith.addf %108, %109 : vector<32x1xf32>
    %111 = math.rsqrt %110 : vector<32x1xf32>
    %112 = vector.broadcast %111 : vector<32x1xf32> to vector<32x16xf32>
    %113 = arith.mulf %103, %112 : vector<32x16xf32>
    %114 = vector.broadcast %4 : vector<1x16xf32> to vector<32x16xf32>
    %115 = arith.mulf %113, %114 : vector<32x16xf32>
    %116 = vector.broadcast %5 : vector<1x16xf32> to vector<32x16xf32>
    %117 = arith.addf %115, %116 : vector<32x16xf32>
    %118 = tpu.concatenate %33, %61, %89, %117 in 1 : vector<32x16xf32>, vector<32x16xf32>, vector<32x16xf32>, vector<32x16xf32> -> vector<32x64xf32>
    %c0_38 = arith.constant 0 : index
    %c0_39 = arith.constant 0 : index
    %119 = vector.load %arg7[%c0_38, %c0_39] : memref<32x64xf32, #tpu.memory_space<vmem>>, vector<32x64xf32>
    tpu.vector_store %arg7[%c0_38, %c0_39], %118 {strides = array<i32>} : memref<32x64xf32, #tpu.memory_space<vmem>>, vector<32x64xf32>,
    return
  }
  func.func @transform_0(%arg0: i32) -> (i32, i32) {
    %c0_i32 = arith.constant 0 : i32
    %c0_i32_0 = arith.constant 0 : i32
    return %arg0, %c0_i32 : i32, i32
  }
  func.func @transform_1(%arg0: i32) -> (i32, i32) {
    %c0_i32 = arith.constant 0 : i32
    %c0_i32_0 = arith.constant 0 : i32
    return %arg0, %c0_i32 : i32, i32
  }
  func.func @transform_2(%arg0: i32) -> (i32, i32) {
    %c0_i32 = arith.constant 0 : i32
    %c0_i32_0 = arith.constant 0 : i32
    %c0_i32_1 = arith.constant 0 : i32
    return %c0_i32, %c0_i32_0 : i32, i32
  }
  func.func @transform_3(%arg0: i32) -> (i32, i32) {
    %c0_i32 = arith.constant 0 : i32
    %c0_i32_0 = arith.constant 0 : i32
    %c0_i32_1 = arith.constant 0 : i32
    return %c0_i32, %c0_i32_0 : i32, i32
  }
  func.func @transform_4(%arg0: i32) -> (i32, i32) {
    %c0_i32 = arith.constant 0 : i32
    %c0_i32_0 = arith.constant 0 : i32
    %c0_i32_1 = arith.constant 0 : i32
    return %c0_i32, %c0_i32_0 : i32, i32
  }
  func.func @transform_5(%arg0: i32) -> (i32, i32) {
    %c0_i32 = arith.constant 0 : i32
    %c0_i32_0 = arith.constant 0 : i32
    %c0_i32_1 = arith.constant 0 : i32
    return %c0_i32, %c0_i32_0 : i32, i32
  }
  func.func @transform_6(%arg0: i32) -> (i32, i32) {
    %c0_i32 = arith.constant 0 : i32
    %c0_i32_0 = arith.constant 0 : i32
    return %arg0, %c0_i32 : i32, i32
  }
}

</mosaic_0001>

<llo_original>
// kernel: mstgcn_block_forward.2
$region0: #{mstgcn_block_forward.2}
  #allocation0 [shape = 'u32[]', space=smem, size = 0x4, offset = 0x4, fixed_abs, tag = 'smem constant byte address 0x4 - core index']
  #allocation1 [shape = 'u32[144,128]{1,0:T(1,128)}', space=vmem, size = 0x12000, scoped, tag = 'internal scratch']
  %s0 = inlined_call_operand.hbm [shape: f32[16,64], index: 0, kind: input, shape index: {}]
  %s1 = inlined_call_operand.hbm [shape: f32[16,16], index: 1, kind: input, shape index: {}]
  %s2 = inlined_call_operand.hbm [shape: f32[12,16], index: 2, kind: input, shape index: {}]
  %s3 = inlined_call_operand.hbm [shape: f32[1,16], index: 3, kind: input, shape index: {}]
  %s4 = inlined_call_operand.hbm [shape: f32[16,256], index: 4, kind: output, shape index: {}]
  %s5 = sld [smem:[#allocation0]]
  $region42: #{mstgcn_block_forward.2} parent=0
    _
  %s7 = ssub.s32 1, %s5
  %s8 = scalar_select 0, %s7, %s5
  $region1: #{mstgcn_block_forward.2} parent=0
    #allocation2 [shape = 'u8[8192]{0}', space=vmem, size = 0x2000, scoped, tag = 'input window, operand 0, single buffered']
    #allocation3 [shape = 's32[1]{0}', space=sflag, size = 0x4, scoped, tag = 'scoped memory for mstgcn_block_forward.2']
    #allocation4 [shape = 's32[1]{0}', space=sflag, size = 0x4, scoped, tag = 'scoped memory for mstgcn_block_forward.2']
    #allocation5 [shape = 'u8[8192]{0}', space=vmem, size = 0x2000, scoped, tag = 'input window, operand 1, single buffered']
    #allocation6 [shape = 's32[1]{0}', space=sflag, size = 0x4, scoped, tag = 'scoped memory for mstgcn_block_forward.2']
    #allocation7 [shape = 'u8[8192]{0}', space=vmem, size = 0x2000, scoped, tag = 'input window, operand 2, single buffered']
    #allocation8 [shape = 'u8[512]{0}', space=vmem, size = 0x400, scoped, tag = 'input window, operand 3, single buffered']
    #allocation9 [shape = 's32[1]{0}', space=sflag, size = 0x4, scoped, tag = 'scoped memory for mstgcn_block_forward.2']
    #allocation10 [shape = 'u8[16384]{0}', space=vmem, size = 0x4000, scoped, tag = 'output window, operand 0, single buffered']
    %9 = vsyncpa [#allocation3], 0
    %10 = vsyncpa [#allocation6], 0
    %11 = vsyncpa [#allocation9], 0
    %12 = vsyncpa [#allocation4], 0
    // Predicated region
    $region2: #{mstgcn_block_forward.2} parent=1 // pred_check
      _
    $region3: #{mstgcn_block_forward.2} parent=1 // pred_check_branch
      %14 = sbr.rel (0) target = $region5
    $region4: #{mstgcn_block_forward.2} parent=1 // pred_region
      %s16 = ssub.s32 256, 256
      %17 = vsyncadd [#allocation3], %s16
      %s18 = sshll.u32 [#allocation2], 4
      %s19 = int_to_ptr.vmem [resolvable:$true] %s18
      %24 = dma.hbm_to_vmem [thread:$0]  %s0, 256, %s19, [#allocation3], 128, 128, 8
    $region5: #{mstgcn_block_forward.2} parent=1 // pred_fallthru
      _
    // Predicated region
    $region6: #{mstgcn_block_forward.2} parent=1 // pred_check
      _
    $region7: #{mstgcn_block_forward.2} parent=1 // pred_check_branch
      %26 = sbr.rel (0) target = $region9
    $region8: #{mstgcn_block_forward.2} parent=1 // pred_region
      %s28 = ssub.s32 256, 256
      %29 = vsyncadd [#allocation6], %s28
      %s30 = sshll.u32 [#allocation5], 4
      %s31 = int_to_ptr.vmem [resolvable:$true] %s30
      %36 = dma.hbm_to_vmem [thread:$0]  %s1, 256, %s31, [#allocation6], 128, 128, 8
    $region9: #{mstgcn_block_forward.2} parent=1 // pred_fallthru
      _
    // Predicated region
    $region10: #{mstgcn_block_forward.2} parent=1 // pred_check
      _
    $region11: #{mstgcn_block_forward.2} parent=1 // pred_check_branch
      %38 = sbr.rel (0) target = $region13
    $region12: #{mstgcn_block_forward.2} parent=1 // pred_region
      %s40 = ssub.s32 256, 256
      %41 = vsyncadd [#allocation6], %s40
      %s42 = sshll.u32 [#allocation7], 4
      %s43 = int_to_ptr.vmem [resolvable:$true] %s42
      %48 = dma.hbm_to_vmem [thread:$0]  %s2, 256, %s43, [#allocation6], 128, 128, 8
    $region13: #{mstgcn_block_forward.2} parent=1 // pred_fallthru
      _
    // Predicated region
    $region14: #{mstgcn_block_forward.2} parent=1 // pred_check
      _
    $region15: #{mstgcn_block_forward.2} parent=1 // pred_check_branch
      %50 = sbr.rel (0) target = $region17
    $region16: #{mstgcn_block_forward.2} parent=1 // pred_region
      %s52 = ssub.s32 16, 16
      %53 = vsyncadd [#allocation9], %s52
      %s55 = sshll.u32 [#allocation8], 4
      %s56 = int_to_ptr.vmem [resolvable:$true] %s55
      %58 = dma.hbm_to_vmem [thread:$0]  %s3, 16, %s56, [#allocation9]
    $region17: #{mstgcn_block_forward.2} parent=1 // pred_fallthru
      _
    // Predicated region
    $region18: #{mstgcn_block_forward.2} parent=1 // pred_check
      _
    $region19: #{mstgcn_block_forward.2} parent=1 // pred_check_branch
      %60 = sbr.rel (0) target = $region21
    $region20: #{mstgcn_block_forward.2} parent=1 // pred_region
      %61 = dma.done [#allocation3], 256
    $region21: #{mstgcn_block_forward.2} parent=1 // pred_fallthru
      _
    // Predicated region
    $region22: #{mstgcn_block_forward.2} parent=1 // pred_check
      _
    $region23: #{mstgcn_block_forward.2} parent=1 // pred_check_branch
      %63 = sbr.rel (0) target = $region25
    $region24: #{mstgcn_block_forward.2} parent=1 // pred_region
      %64 = dma.done [#allocation6], 256
    $region25: #{mstgcn_block_forward.2} parent=1 // pred_fallthru
      _
    // Predicated region
    $region26: #{mstgcn_block_forward.2} parent=1 // pred_check
      _
    $region27: #{mstgcn_block_forward.2} parent=1 // pred_check_branch
      %66 = sbr.rel (0) target = $region29
    $region28: #{mstgcn_block_forward.2} parent=1 // pred_region
      %67 = dma.done [#allocation6], 256
    $region29: #{mstgcn_block_forward.2} parent=1 // pred_fallthru
      _
    // Predicated region
    $region30: #{mstgcn_block_forward.2} parent=1 // pred_check
      _
    $region31: #{mstgcn_block_forward.2} parent=1 // pred_check_branch
      %69 = sbr.rel (0) target = $region33
    $region32: #{mstgcn_block_forward.2} parent=1 // pred_region
      %70 = dma.done [#allocation9], 16
    $region33: #{mstgcn_block_forward.2} parent=1 // pred_fallthru
      _
    %v71 = vld [vmem:[#allocation2] sm:$0xff]
    %v72 = vld [vmem:[#allocation2 + $0x8] sm:$0xff]
    %v73 = vld [vmem:[#allocation5] sm:$0xff]
    %v74 = vld [vmem:[#allocation5 + $0x8] sm:$0xff]
    %v75 = vld [vmem:[#allocation7] sm:$0xff]
    %v76 = vld [vmem:[#allocation7 + $0x8] sm:$0xf]
    %v77 = vld [vmem:[#allocation8] sm:$0x1]
    %vm78 = vcmask 130048
    %v80 = vsel %vm78, %v73, 0
    %v83 = vsel %vm78, %v74, 0
    %85 = vmatprep.subr.mxu0 0.0
    %86 = vmatpush1.msra.mxu0 %v71
    %87 = vmatprep.subr.mxu0 0.0
    %88 = vmatpush1.msra.mxu0 %v72
    %89 = vmatprep.subr.mxu0 0.0
    %90 = vmatpush1.msra.mxu0 0.0
    %91 = vmatprep.subr.mxu0 0.0
    %92 = vmatpush1.msra.mxu0 0.0
    %93 = vmatprep.subr.mxu0 0.0
    %94 = vmatpush1.msra.mxu0 0.0
    %95 = vmatprep.subr.mxu0 0.0
    %96 = vmatpush1.msra.mxu0 0.0
    %97 = vmatprep.subr.mxu0 0.0
    %98 = vmatpush1.msra.mxu0 0.0
    %99 = vmatprep.subr.mxu0 0.0
    %100 = vmatpush1.msra.mxu0 0.0
    %101 = vmatprep.subr.mxu0 0.0
    %102 = vmatpush1.msra.mxu0 0.0
    %103 = vmatprep.subr.mxu0 0.0
    %104 = vmatpush1.msra.mxu0 0.0
    %105 = vmatprep.subr.mxu0 0.0
    %106 = vmatpush1.msra.mxu0 0.0
    %107 = vmatprep.subr.mxu0 0.0
    %108 = vmatpush1.msra.mxu0 0.0
    %109 = vmatprep.subr.mxu0 0.0
    %110 = vmatpush1.msra.mxu0 0.0
    %111 = vmatprep.subr.mxu0 0.0
    %112 = vmatpush1.msra.mxu0 0.0
    %113 = vmatprep.subr.mxu0 0.0
    %114 = vmatpush1.msra.mxu0 0.0
    %115 = vmatprep.subr.mxu0 0.0
    %116 = vmatpush1.msra.mxu0 0.0
    %117 = vmatprep.subr.mxu0 0.0
    %118 = vmatpush1.msra.mxu0 0.0
    %119 = vmatprep.subr.mxu0 0.0
    %120 = vmatpush1.msra.mxu0 0.0
    %121 = vmatprep.subr.mxu0 0.0
    %122 = vmatpush1.msra.mxu0 0.0
    %123 = vmatprep.subr.mxu0 0.0
    %124 = vmatpush1.msra.mxu0 0.0
    %125 = vmatprep.subr.mxu0 0.0
    %126 = vmatpush1.msra.mxu0 0.0
    %127 = vmatprep.subr.mxu0 0.0
    %128 = vmatpush1.msra.mxu0 0.0
    %129 = vmatprep.subr.mxu0 0.0
    %130 = vmatpush1.msra.mxu0 0.0
    %131 = vmatprep.subr.mxu0 0.0
    %132 = vmatpush1.msra.mxu0 0.0
    %133 = vmatprep.subr.mxu0 0.0
    %134 = vmatpush1.msra.mxu0 0.0
    %135 = vmatprep.subr.mxu0 0.0
    %136 = vmatpush1.msra.mxu0 0.0
    %137 = vmatprep.subr.mxu0 0.0
    %138 = vmatpush1.msra.mxu0 0.0
    %139 = vmatprep.subr.mxu0 0.0
    %140 = vmatpush1.msra.mxu0 0.0
    %141 = vmatprep.subr.mxu0 0.0
    %142 = vmatpush1.msra.mxu0 0.0
    %143 = vmatprep.subr.mxu0 0.0
    %144 = vmatpush1.msra.mxu0 0.0
    %145 = vmatprep.subr.mxu0 0.0
    %146 = vmatpush1.msra.mxu0 0.0
    %147 = vmatprep.subr.mxu0 0.0
    %148 = vmatpush1.msra.mxu0 0.0
    %149 = vmatprep.mubr.f32.mxu0 0.0
    %150 = vmatmul.mubr.f32.gmra.mrb[0].mxu0 %v80
    %v151 = vpop.f32.mrb[0].mxu0
    %v152 = vadd.f32 0.0, %v151
    %v153 = vpop.f32.mrb[0].mxu0
    %154 = vmatprep.mubr.f32.mxu0 0.0
    %155 = vmatmul.mubr.f32.gmra.mrb[0].mxu0 %v83
    %v156 = vpop.f32.mrb[0].mxu0
    %v157 = vadd.f32 0.0, %v156
    %v158 = vpop.f32.mrb[0].mxu0
    %159 = vdwg.mxu0
    %160 = vmatprep.subr.mxu0 0.0
    %161 = vmatpush1.msra.mxu0 %v152
    %162 = vmatprep.subr.mxu0 0.0
    %163 = vmatpush1.msra.mxu0 %v157
    %164 = vmatprep.subr.mxu0 0.0
    %165 = vmatpush1.msra.mxu0 0.0
    %166 = vmatprep.subr.mxu0 0.0
    %167 = vmatpush1.msra.mxu0 0.0
    %168 = vmatprep.subr.mxu0 0.0
    %169 = vmatpush1.msra.mxu0 0.0
    %170 = vmatprep.subr.mxu0 0.0
    %171 = vmatpush1.msra.mxu0 0.0
    %172 = vmatprep.subr.mxu0 0.0
    %173 = vmatpush1.msra.mxu0 0.0
    %174 = vmatprep.subr.mxu0 0.0
    %175 = vmatpush1.msra.mxu0 0.0
    %176 = vmatprep.subr.mxu0 0.0
    %177 = vmatpush1.msra.mxu0 0.0
    %178 = vmatprep.subr.mxu0 0.0
    %179 = vmatpush1.msra.mxu0 0.0
    %180 = vmatprep.subr.mxu0 0.0
    %181 = vmatpush1.msra.mxu0 0.0
    %182 = vmatprep.subr.mxu0 0.0
    %183 = vmatpush1.msra.mxu0 0.0
    %184 = vmatprep.subr.mxu0 0.0
    %185 = vmatpush1.msra.mxu0 0.0
    %186 = vmatprep.subr.mxu0 0.0
    %187 = vmatpush1.msra.mxu0 0.0
    %188 = vmatprep.subr.mxu0 0.0
    %189 = vmatpush1.msra.mxu0 0.0
    %190 = vmatprep.subr.mxu0 0.0
    %191 = vmatpush1.msra.mxu0 0.0
    %192 = vmatprep.subr.mxu0 0.0
    %193 = vmatpush1.msra.mxu0 0.0
    %194 = vmatprep.subr.mxu0 0.0
    %195 = vmatpush1.msra.mxu0 0.0
    %196 = vmatprep.subr.mxu0 0.0
    %197 = vmatpush1.msra.mxu0 0.0
    %198 = vmatprep.subr.mxu0 0.0
    %199 = vmatpush1.msra.mxu0 0.0
    %200 = vmatprep.subr.mxu0 0.0
    %201 = vmatpush1.msra.mxu0 0.0
    %202 = vmatprep.subr.mxu0 0.0
    %203 = vmatpush1.msra.mxu0 0.0
    %204 = vmatprep.subr.mxu0 0.0
    %205 = vmatpush1.msra.mxu0 0.0
    %206 = vmatprep.subr.mxu0 0.0
    %207 = vmatpush1.msra.mxu0 0.0
    %208 = vmatprep.subr.mxu0 0.0
    %209 = vmatpush1.msra.mxu0 0.0
    %210 = vmatprep.subr.mxu0 0.0
    %211 = vmatpush1.msra.mxu0 0.0
    %212 = vmatprep.subr.mxu0 0.0
    %213 = vmatpush1.msra.mxu0 0.0
    %214 = vmatprep.subr.mxu0 0.0
    %215 = vmatpush1.msra.mxu0 0.0
    %216 = vmatprep.subr.mxu0 0.0
    %217 = vmatpush1.msra.mxu0 0.0
    %218 = vmatprep.subr.mxu0 0.0
    %219 = vmatpush1.msra.mxu0 0.0
    %220 = vmatprep.subr.mxu0 0.0
    %221 = vmatpush1.msra.mxu0 0.0
    %222 = vmatprep.subr.mxu0 0.0
    %223 = vmatpush1.msra.mxu0 0.0
    %224 = vmatprep.mubr.f32.mxu0 0.0
    %225 = vmatmul.mubr.f32.gmra.mrb[0].mxu0 %v80
    %v226 = vpop.f32.mrb[0].mxu0
    %v227 = vadd.f32 0.0, %v226
    %v228 = vpop.f32.mrb[0].mxu0
    %229 = vmatprep.mubr.f32.mxu0 0.0
    %230 = vmatmul.mubr.f32.gmra.mrb[0].mxu0 %v83
    %v231 = vpop.f32.mrb[0].mxu0
    %v232 = vadd.f32 0.0, %v231
    %v233 = vpop.f32.mrb[0].mxu0
    %234 = vdwg.mxu0
    %v235 = vmul.f32 %v227, 2.0
    %v236 = vmul.f32 %v232, 2.0
    %v237 = vsub.f32 %v235, %v71
    %v238 = vsub.f32 %v236, %v72
    %241 = vrot.lane.b32.xlu0 %v152, 4
    %v242 = vpop.permute.xlu0 %241
    %243 = vrot.lane.b32.xlu0 %v157, 4
    %v244 = vpop.permute.xlu0 %243
    %249 = vrot.lane.b32.xlu0 %v237, 8
    %v250 = vpop.permute.xlu0 %249
    %251 = vrot.lane.b32.xlu0 %v238, 8
    %v252 = vpop.permute.xlu0 %251
    %vm255 = vcmask 31744
    %v256 = vsel %vm255, %v71, %v242
    %v257 = vsel %vm255, %v72, %v244
    %vm258 = vcmask 64512
    %v259 = vsel %vm258, %v256, %v250
    %v260 = vsel %vm258, %v257, %v252
    %v262 = vlaneseq
    %v263 = vshrl.u32 %v262, 7
    %v264 = vsub.s32 0, %v263
    %v265 = vrot.slane %v77, %v264
    %vm267 = vcmask 97280
    %v269 = vsel %vm267, %v259, 0
    %v272 = vsel %vm267, %v260, 0
    %vm274 = vcmask 1043456
    %v276 = vsel %vm274, %v76, 0
    %278 = vmatprep.subr.mxu0 0.0
    %279 = vmatpush1.msra.mxu0 %v75
    %280 = vmatprep.subr.mxu0 0.0
    %281 = vmatpush1.msra.mxu0 %v276
    %282 = vmatprep.subr.mxu0 0.0
    %283 = vmatpush1.msra.mxu0 0.0
    %284 = vmatprep.subr.mxu0 0.0
    %285 = vmatpush1.msra.mxu0 0.0
    %286 = vmatprep.subr.mxu0 0.0
    %287 = vmatpush1.msra.mxu0 0.0
    %288 = vmatprep.subr.mxu0 0.0
    %289 = vmatpush1.msra.mxu0 0.0
    %290 = vmatprep.subr.mxu0 0.0
    %291 = vmatpush1.msra.mxu0 0.0
    %292 = vmatprep.subr.mxu0 0.0
    %293 = vmatpush1.msra.mxu0 0.0
    %294 = vmatprep.subr.mxu0 0.0
    %295 = vmatpush1.msra.mxu0 0.0
    %296 = vmatprep.subr.mxu0 0.0
    %297 = vmatpush1.msra.mxu0 0.0
    %298 = vmatprep.subr.mxu0 0.0
    %299 = vmatpush1.msra.mxu0 0.0
    %300 = vmatprep.subr.mxu0 0.0
    %301 = vmatpush1.msra.mxu0 0.0
    %302 = vmatprep.subr.mxu0 0.0
    %303 = vmatpush1.msra.mxu0 0.0
    %304 = vmatprep.subr.mxu0 0.0
    %305 = vmatpush1.msra.mxu0 0.0
    %306 = vmatprep.subr.mxu0 0.0
    %307 = vmatpush1.msra.mxu0 0.0
    %308 = vmatprep.subr.mxu0 0.0
    %309 = vmatpush1.msra.mxu0 0.0
    %310 = vmatprep.subr.mxu0 0.0
    %311 = vmatpush1.msra.mxu0 0.0
    %312 = vmatprep.subr.mxu0 0.0
    %313 = vmatpush1.msra.mxu0 0.0
    %314 = vmatprep.subr.mxu0 0.0
    %315 = vmatpush1.msra.mxu0 0.0
    %316 = vmatprep.subr.mxu0 0.0
    %317 = vmatpush1.msra.mxu0 0.0
    %318 = vmatprep.subr.mxu0 0.0
    %319 = vmatpush1.msra.mxu0 0.0
    %320 = vmatprep.subr.mxu0 0.0
    %321 = vmatpush1.msra.mxu0 0.0
    %322 = vmatprep.subr.mxu0 0.0
    %323 = vmatpush1.msra.mxu0 0.0
    %324 = vmatprep.subr.mxu0 0.0
    %325 = vmatpush1.msra.mxu0 0.0
    %326 = vmatprep.subr.mxu0 0.0
    %327 = vmatpush1.msra.mxu0 0.0
    %328 = vmatprep.subr.mxu0 0.0
    %329 = vmatpush1.msra.mxu0 0.0
    %330 = vmatprep.subr.mxu0 0.0
    %331 = vmatpush1.msra.mxu0 0.0
    %332 = vmatprep.subr.mxu0 0.0
    %333 = vmatpush1.msra.mxu0 0.0
    %334 = vmatprep.subr.mxu0 0.0
    %335 = vmatpush1.msra.mxu0 0.0
    %336 = vmatprep.subr.mxu0 0.0
    %337 = vmatpush1.msra.mxu0 0.0
    %338 = vmatprep.subr.mxu0 0.0
    %339 = vmatpush1.msra.mxu0 0.0
    %340 = vmatprep.subr.mxu0 0.0
    %341 = vmatpush1.msra.mxu0 0.0
    %342 = vmatprep.mubr.f32.mxu0 0.0
    %343 = vmatmul.mubr.f32.gmra.mrb[0].mxu0 %v269
    %v344 = vpop.f32.mrb[0].mxu0
    %v345 = vadd.f32 %v265, %v344
    %v346 = vpop.f32.mrb[0].mxu0
    %347 = vmatprep.mubr.f32.mxu0 0.0
    %348 = vmatmul.mubr.f32.gmra.mrb[0].mxu0 %v272
    %v349 = vpop.f32.mrb[0].mxu0
    %v350 = vadd.f32 %v265, %v349
    %v351 = vpop.f32.mrb[0].mxu0
    %352 = vdwg.mxu0
    %v353 = vmax.f32 %v345, 0.0
    %v354 = vmax.f32 %v350, 0.0
    %357 = vrot.lane.b32.xlu0 %v71, 124
    %v358 = vpop.permute.xlu0 %357
    %359 = vrot.lane.b32.xlu0 %v72, 124
    %v360 = vpop.permute.xlu0 %359
    %363 = vrot.lane.b32.xlu0 %v237, 4
    %v364 = vpop.permute.xlu0 %363
    %365 = vrot.lane.b32.xlu0 %v238, 4
    %v366 = vpop.permute.xlu0 %365
    %v369 = vsel %vm255, %v358, %v152
    %v370 = vsel %vm255, %v360, %v157
    %v371 = vsel %vm258, %v369, %v364
    %v372 = vsel %vm258, %v370, %v366
    %v374 = vsel %vm267, %v371, 0
    %v377 = vsel %vm267, %v372, 0
    %379 = vmatprep.subr.mxu0 0.0
    %380 = vmatpush1.msra.mxu0 %v75
    %381 = vmatprep.subr.mxu0 0.0
    %382 = vmatpush1.msra.mxu0 %v276
    %383 = vmatprep.subr.mxu0 0.0
    %384 = vmatpush1.msra.mxu0 0.0
    %385 = vmatprep.subr.mxu0 0.0
    %386 = vmatpush1.msra.mxu0 0.0
    %387 = vmatprep.subr.mxu0 0.0
    %388 = vmatpush1.msra.mxu0 0.0
    %389 = vmatprep.subr.mxu0 0.0
    %390 = vmatpush1.msra.mxu0 0.0
    %391 = vmatprep.subr.mxu0 0.0
    %392 = vmatpush1.msra.mxu0 0.0
    %393 = vmatprep.subr.mxu0 0.0
    %394 = vmatpush1.msra.mxu0 0.0
    %395 = vmatprep.subr.mxu0 0.0
    %396 = vmatpush1.msra.mxu0 0.0
    %397 = vmatprep.subr.mxu0 0.0
    %398 = vmatpush1.msra.mxu0 0.0
    %399 = vmatprep.subr.mxu0 0.0
    %400 = vmatpush1.msra.mxu0 0.0
    %401 = vmatprep.subr.mxu0 0.0
    %402 = vmatpush1.msra.mxu0 0.0
    %403 = vmatprep.subr.mxu0 0.0
    %404 = vmatpush1.msra.mxu0 0.0
    %405 = vmatprep.subr.mxu0 0.0
    %406 = vmatpush1.msra.mxu0 0.0
    %407 = vmatprep.subr.mxu0 0.0
    %408 = vmatpush1.msra.mxu0 0.0
    %409 = vmatprep.subr.mxu0 0.0
    %410 = vmatpush1.msra.mxu0 0.0
    %411 = vmatprep.subr.mxu0 0.0
    %412 = vmatpush1.msra.mxu0 0.0
    %413 = vmatprep.subr.mxu0 0.0
    %414 = vmatpush1.msra.mxu0 0.0
    %415 = vmatprep.subr.mxu0 0.0
    %416 = vmatpush1.msra.mxu0 0.0
    %417 = vmatprep.subr.mxu0 0.0
    %418 = vmatpush1.msra.mxu0 0.0
    %419 = vmatprep.subr.mxu0 0.0
    %420 = vmatpush1.msra.mxu0 0.0
    %421 = vmatprep.subr.mxu0 0.0
    %422 = vmatpush1.msra.mxu0 0.0
    %423 = vmatprep.subr.mxu0 0.0
    %424 = vmatpush1.msra.mxu0 0.0
    %425 = vmatprep.subr.mxu0 0.0
    %426 = vmatpush1.msra.mxu0 0.0
    %427 = vmatprep.subr.mxu0 0.0
    %428 = vmatpush1.msra.mxu0 0.0
    %429 = vmatprep.subr.mxu0 0.0
    %430 = vmatpush1.msra.mxu0 0.0
    %431 = vmatprep.subr.mxu0 0.0
    %432 = vmatpush1.msra.mxu0 0.0
    %433 = vmatprep.subr.mxu0 0.0
    %434 = vmatpush1.msra.mxu0 0.0
    %435 = vmatprep.subr.mxu0 0.0
    %436 = vmatpush1.msra.mxu0 0.0
    %437 = vmatprep.subr.mxu0 0.0
    %438 = vmatpush1.msra.mxu0 0.0
    %439 = vmatprep.subr.mxu0 0.0
    %440 = vmatpush1.msra.mxu0 0.0
    %441 = vmatprep.subr.mxu0 0.0
    %442 = vmatpush1.msra.mxu0 0.0
    %443 = vmatprep.mubr.f32.mxu0 0.0
    %444 = vmatmul.mubr.f32.gmra.mrb[0].mxu0 %v374
    %v445 = vpop.f32.mrb[0].mxu0
    %v446 = vadd.f32 %v265, %v445
    %v447 = vpop.f32.mrb[0].mxu0
    %448 = vmatprep.mubr.f32.mxu0 0.0
    %449 = vmatmul.mubr.f32.gmra.mrb[0].mxu0 %v377
    %v450 = vpop.f32.mrb[0].mxu0
    %v451 = vadd.f32 %v265, %v450
    %v452 = vpop.f32.mrb[0].mxu0
    %453 = vdwg.mxu0
    %v454 = vmax.f32 %v446, 0.0
    %v455 = vmax.f32 %v451, 0.0
    %456 = vrot.lane.b32.xlu0 %v71, 120
    %v457 = vpop.permute.xlu0 %456
    %458 = vrot.lane.b32.xlu0 %v72, 120
    %v459 = vpop.permute.xlu0 %458
    %462 = vrot.lane.b32.xlu0 %v152, 124
    %v463 = vpop.permute.xlu0 %462
    %464 = vrot.lane.b32.xlu0 %v157, 124
    %v465 = vpop.permute.xlu0 %464
    %v468 = vsel %vm255, %v457, %v463
    %v469 = vsel %vm255, %v459, %v465
    %v470 = vsel %vm258, %v468, %v237
    %v471 = vsel %vm258, %v469, %v238
    %v473 = vsel %vm267, %v470, 0
    %v476 = vsel %vm267, %v471, 0
    %478 = vmatprep.subr.mxu0 0.0
    %479 = vmatpush1.msra.mxu0 %v75
    %480 = vmatprep.subr.mxu0 0.0
    %481 = vmatpush1.msra.mxu0 %v276
    %482 = vmatprep.subr.mxu0 0.0
    %483 = vmatpush1.msra.mxu0 0.0
    %484 = vmatprep.subr.mxu0 0.0
    %485 = vmatpush1.msra.mxu0 0.0
    %486 = vmatprep.subr.mxu0 0.0
    %487 = vmatpush1.msra.mxu0 0.0
    %488 = vmatprep.subr.mxu0 0.0
    %489 = vmatpush1.msra.mxu0 0.0
    %490 = vmatprep.subr.mxu0 0.0
    %491 = vmatpush1.msra.mxu0 0.0
    %492 = vmatprep.subr.mxu0 0.0
    %493 = vmatpush1.msra.mxu0 0.0
    %494 = vmatprep.subr.mxu0 0.0
    %495 = vmatpush1.msra.mxu0 0.0
    %496 = vmatprep.subr.mxu0 0.0
    %497 = vmatpush1.msra.mxu0 0.0
    %498 = vmatprep.subr.mxu0 0.0
    %499 = vmatpush1.msra.mxu0 0.0
    %500 = vmatprep.subr.mxu0 0.0
    %501 = vmatpush1.msra.mxu0 0.0
    %502 = vmatprep.subr.mxu0 0.0
    %503 = vmatpush1.msra.mxu0 0.0
    %504 = vmatprep.subr.mxu0 0.0
    %505 = vmatpush1.msra.mxu0 0.0
    %506 = vmatprep.subr.mxu0 0.0
    %507 = vmatpush1.msra.mxu0 0.0
    %508 = vmatprep.subr.mxu0 0.0
    %509 = vmatpush1.msra.mxu0 0.0
    %510 = vmatprep.subr.mxu0 0.0
    %511 = vmatpush1.msra.mxu0 0.0
    %512 = vmatprep.subr.mxu0 0.0
    %513 = vmatpush1.msra.mxu0 0.0
    %514 = vmatprep.subr.mxu0 0.0
    %515 = vmatpush1.msra.mxu0 0.0
    %516 = vmatprep.subr.mxu0 0.0
    %517 = vmatpush1.msra.mxu0 0.0
    %518 = vmatprep.subr.mxu0 0.0
    %519 = vmatpush1.msra.mxu0 0.0
    %520 = vmatprep.subr.mxu0 0.0
    %521 = vmatpush1.msra.mxu0 0.0
    %522 = vmatprep.subr.mxu0 0.0
    %523 = vmatpush1.msra.mxu0 0.0
    %524 = vmatprep.subr.mxu0 0.0
    %525 = vmatpush1.msra.mxu0 0.0
    %526 = vmatprep.subr.mxu0 0.0
    %527 = vmatpush1.msra.mxu0 0.0
    %528 = vmatprep.subr.mxu0 0.0
    %529 = vmatpush1.msra.mxu0 0.0
    %530 = vmatprep.subr.mxu0 0.0
    %531 = vmatpush1.msra.mxu0 0.0
    %532 = vmatprep.subr.mxu0 0.0
    %533 = vmatpush1.msra.mxu0 0.0
    %534 = vmatprep.subr.mxu0 0.0
    %535 = vmatpush1.msra.mxu0 0.0
    %536 = vmatprep.subr.mxu0 0.0
    %537 = vmatpush1.msra.mxu0 0.0
    %538 = vmatprep.subr.mxu0 0.0
    %539 = vmatpush1.msra.mxu0 0.0
    %540 = vmatprep.subr.mxu0 0.0
    %541 = vmatpush1.msra.mxu0 0.0
    %542 = vmatprep.mubr.f32.mxu0 0.0
    %543 = vmatmul.mubr.f32.gmra.mrb[0].mxu0 %v473
    %v544 = vpop.f32.mrb[0].mxu0
    %v545 = vadd.f32 %v265, %v544
    %v546 = vpop.f32.mrb[0].mxu0
    %547 = vmatprep.mubr.f32.mxu0 0.0
    %548 = vmatmul.mubr.f32.gmra.mrb[0].mxu0 %v476
    %v549 = vpop.f32.mrb[0].mxu0
    %v550 = vadd.f32 %v265, %v549
    %v551 = vpop.f32.mrb[0].mxu0
    %552 = vdwg.mxu0
    %v553 = vmax.f32 %v545, 0.0
    %v554 = vmax.f32 %v550, 0.0
    %555 = vrot.lane.b32.xlu0 %v71, 116
    %v556 = vpop.permute.xlu0 %555
    %557 = vrot.lane.b32.xlu0 %v72, 116
    %v558 = vpop.permute.xlu0 %557
    %561 = vrot.lane.b32.xlu0 %v152, 120
    %v562 = vpop.permute.xlu0 %561
    %563 = vrot.lane.b32.xlu0 %v157, 120
    %v564 = vpop.permute.xlu0 %563
    %567 = vrot.lane.b32.xlu0 %v237, 124
    %v568 = vpop.permute.xlu0 %567
    %569 = vrot.lane.b32.xlu0 %v238, 124
    %v570 = vpop.permute.xlu0 %569
    %v573 = vsel %vm255, %v556, %v562
    %v574 = vsel %vm255, %v558, %v564
    %v575 = vsel %vm258, %v573, %v568
    %v576 = vsel %vm258, %v574, %v570
    %v578 = vsel %vm267, %v575, 0
    %v581 = vsel %vm267, %v576, 0
    %583 = vmatprep.subr.mxu0 0.0
    %584 = vmatpush1.msra.mxu0 %v75
    %585 = vmatprep.subr.mxu0 0.0
    %586 = vmatpush1.msra.mxu0 %v276
    %587 = vmatprep.subr.mxu0 0.0
    %588 = vmatpush1.msra.mxu0 0.0
    %589 = vmatprep.subr.mxu0 0.0
    %590 = vmatpush1.msra.mxu0 0.0
    %591 = vmatprep.subr.mxu0 0.0
    %592 = vmatpush1.msra.mxu0 0.0
    %593 = vmatprep.subr.mxu0 0.0
    %594 = vmatpush1.msra.mxu0 0.0
    %595 = vmatprep.subr.mxu0 0.0
    %596 = vmatpush1.msra.mxu0 0.0
    %597 = vmatprep.subr.mxu0 0.0
    %598 = vmatpush1.msra.mxu0 0.0
    %599 = vmatprep.subr.mxu0 0.0
    %600 = vmatpush1.msra.mxu0 0.0
    %601 = vmatprep.subr.mxu0 0.0
    %602 = vmatpush1.msra.mxu0 0.0
    %603 = vmatprep.subr.mxu0 0.0
    %604 = vmatpush1.msra.mxu0 0.0
    %605 = vmatprep.subr.mxu0 0.0
    %606 = vmatpush1.msra.mxu0 0.0
    %607 = vmatprep.subr.mxu0 0.0
    %608 = vmatpush1.msra.mxu0 0.0
    %609 = vmatprep.subr.mxu0 0.0
    %610 = vmatpush1.msra.mxu0 0.0
    %611 = vmatprep.subr.mxu0 0.0
    %612 = vmatpush1.msra.mxu0 0.0
    %613 = vmatprep.subr.mxu0 0.0
    %614 = vmatpush1.msra.mxu0 0.0
    %615 = vmatprep.subr.mxu0 0.0
    %616 = vmatpush1.msra.mxu0 0.0
    %617 = vmatprep.subr.mxu0 0.0
    %618 = vmatpush1.msra.mxu0 0.0
    %619 = vmatprep.subr.mxu0 0.0
    %620 = vmatpush1.msra.mxu0 0.0
    %621 = vmatprep.subr.mxu0 0.0
    %622 = vmatpush1.msra.mxu0 0.0
    %623 = vmatprep.subr.mxu0 0.0
    %624 = vmatpush1.msra.mxu0 0.0
    %625 = vmatprep.subr.mxu0 0.0
    %626 = vmatpush1.msra.mxu0 0.0
    %627 = vmatprep.subr.mxu0 0.0
    %628 = vmatpush1.msra.mxu0 0.0
    %629 = vmatprep.subr.mxu0 0.0
    %630 = vmatpush1.msra.mxu0 0.0
    %631 = vmatprep.subr.mxu0 0.0
    %632 = vmatpush1.msra.mxu0 0.0
    %633 = vmatprep.subr.mxu0 0.0
    %634 = vmatpush1.msra.mxu0 0.0
    %635 = vmatprep.subr.mxu0 0.0
    %636 = vmatpush1.msra.mxu0 0.0
    %637 = vmatprep.subr.mxu0 0.0
    %638 = vmatpush1.msra.mxu0 0.0
    %639 = vmatprep.subr.mxu0 0.0
    %640 = vmatpush1.msra.mxu0 0.0
    %641 = vmatprep.subr.mxu0 0.0
    %642 = vmatpush1.msra.mxu0 0.0
    %643 = vmatprep.subr.mxu0 0.0
    %644 = vmatpush1.msra.mxu0 0.0
    %645 = vmatprep.subr.mxu0 0.0
    %646 = vmatpush1.msra.mxu0 0.0
    %647 = vmatprep.mubr.f32.mxu0 0.0
    %648 = vmatmul.mubr.f32.gmra.mrb[0].mxu0 %v578
    %v649 = vpop.f32.mrb[0].mxu0
    %v650 = vadd.f32 %v265, %v649
    %v651 = vpop.f32.mrb[0].mxu0
    %652 = vmatprep.mubr.f32.mxu0 0.0
    %653 = vmatmul.mubr.f32.gmra.mrb[0].mxu0 %v581
    %v654 = vpop.f32.mrb[0].mxu0
    %v655 = vadd.f32 %v265, %v654
    %v656 = vpop.f32.mrb[0].mxu0
    %657 = vdwg.mxu0
    %v658 = vmax.f32 %v650, 0.0
    %v659 = vmax.f32 %v655, 0.0
    %660 = vrot.lane.b32.xlu0 %v71, 112
    %v661 = vpop.permute.xlu0 %660
    %662 = vrot.lane.b32.xlu0 %v72, 112
    %v663 = vpop.permute.xlu0 %662
    %666 = vrot.lane.b32.xlu0 %v152, 116
    %v667 = vpop.permute.xlu0 %666
    %668 = vrot.lane.b32.xlu0 %v157, 116
    %v669 = vpop.permute.xlu0 %668
    %672 = vrot.lane.b32.xlu0 %v237, 120
    %v673 = vpop.permute.xlu0 %672
    %674 = vrot.lane.b32.xlu0 %v238, 120
    %v675 = vpop.permute.xlu0 %674
    %v678 = vsel %vm255, %v661, %v667
    %v679 = vsel %vm255, %v663, %v669
    %v680 = vsel %vm258, %v678, %v673
    %v681 = vsel %vm258, %v679, %v675
    %v683 = vsel %vm267, %v680, 0
    %v686 = vsel %vm267, %v681, 0
    %688 = vmatprep.subr.mxu0 0.0
    %689 = vmatpush1.msra.mxu0 %v75
    %690 = vmatprep.subr.mxu0 0.0
    %691 = vmatpush1.msra.mxu0 %v276
    %692 = vmatprep.subr.mxu0 0.0
    %693 = vmatpush1.msra.mxu0 0.0
    %694 = vmatprep.subr.mxu0 0.0
    %695 = vmatpush1.msra.mxu0 0.0
    %696 = vmatprep.subr.mxu0 0.0
    %697 = vmatpush1.msra.mxu0 0.0
    %698 = vmatprep.subr.mxu0 0.0
    %699 = vmatpush1.msra.mxu0 0.0
    %700 = vmatprep.subr.mxu0 0.0
    %701 = vmatpush1.msra.mxu0 0.0
    %702 = vmatprep.subr.mxu0 0.0
    %703 = vmatpush1.msra.mxu0 0.0
    %704 = vmatprep.subr.mxu0 0.0
    %705 = vmatpush1.msra.mxu0 0.0
    %706 = vmatprep.subr.mxu0 0.0
    %707 = vmatpush1.msra.mxu0 0.0
    %708 = vmatprep.subr.mxu0 0.0
    %709 = vmatpush1.msra.mxu0 0.0
    %710 = vmatprep.subr.mxu0 0.0
    %711 = vmatpush1.msra.mxu0 0.0
    %712 = vmatprep.subr.mxu0 0.0
    %713 = vmatpush1.msra.mxu0 0.0
    %714 = vmatprep.subr.mxu0 0.0
    %715 = vmatpush1.msra.mxu0 0.0
    %716 = vmatprep.subr.mxu0 0.0
    %717 = vmatpush1.msra.mxu0 0.0
    %718 = vmatprep.subr.mxu0 0.0
    %719 = vmatpush1.msra.mxu0 0.0
    %720 = vmatprep.subr.mxu0 0.0
    %721 = vmatpush1.msra.mxu0 0.0
    %722 = vmatprep.subr.mxu0 0.0
    %723 = vmatpush1.msra.mxu0 0.0
    %724 = vmatprep.subr.mxu0 0.0
    %725 = vmatpush1.msra.mxu0 0.0
    %726 = vmatprep.subr.mxu0 0.0
    %727 = vmatpush1.msra.mxu0 0.0
    %728 = vmatprep.subr.mxu0 0.0
    %729 = vmatpush1.msra.mxu0 0.0
    %730 = vmatprep.subr.mxu0 0.0
    %731 = vmatpush1.msra.mxu0 0.0
    %732 = vmatprep.subr.mxu0 0.0
    %733 = vmatpush1.msra.mxu0 0.0
    %734 = vmatprep.subr.mxu0 0.0
    %735 = vmatpush1.msra.mxu0 0.0
    %736 = vmatprep.subr.mxu0 0.0
    %737 = vmatpush1.msra.mxu0 0.0
    %738 = vmatprep.subr.mxu0 0.0
    %739 = vmatpush1.msra.mxu0 0.0
    %740 = vmatprep.subr.mxu0 0.0
    %741 = vmatpush1.msra.mxu0 0.0
    %742 = vmatprep.subr.mxu0 0.0
    %743 = vmatpush1.msra.mxu0 0.0
    %744 = vmatprep.subr.mxu0 0.0
    %745 = vmatpush1.msra.mxu0 0.0
    %746 = vmatprep.subr.mxu0 0.0
    %747 = vmatpush1.msra.mxu0 0.0
    %748 = vmatprep.subr.mxu0 0.0
    %749 = vmatpush1.msra.mxu0 0.0
    %750 = vmatprep.subr.mxu0 0.0
    %751 = vmatpush1.msra.mxu0 0.0
    %752 = vmatprep.mubr.f32.mxu0 0.0
    %753 = vmatmul.mubr.f32.gmra.mrb[0].mxu0 %v683
    %v754 = vpop.f32.mrb[0].mxu0
    %v755 = vadd.f32 %v265, %v754
    %v756 = vpop.f32.mrb[0].mxu0
    %757 = vmatprep.mubr.f32.mxu0 0.0
    %758 = vmatmul.mubr.f32.gmra.mrb[0].mxu0 %v686
    %v759 = vpop.f32.mrb[0].mxu0
    %v760 = vadd.f32 %v265, %v759
    %v761 = vpop.f32.mrb[0].mxu0
    %762 = vdwg.mxu0
    %v763 = vmax.f32 %v755, 0.0
    %v764 = vmax.f32 %v760, 0.0
    %765 = vrot.lane.b32.xlu0 %v71, 108
    %v766 = vpop.permute.xlu0 %765
    %767 = vrot.lane.b32.xlu0 %v72, 108
    %v768 = vpop.permute.xlu0 %767
    %771 = vrot.lane.b32.xlu0 %v152, 112
    %v772 = vpop.permute.xlu0 %771
    %773 = vrot.lane.b32.xlu0 %v157, 112
    %v774 = vpop.permute.xlu0 %773
    %777 = vrot.lane.b32.xlu0 %v237, 116
    %v778 = vpop.permute.xlu0 %777
    %779 = vrot.lane.b32.xlu0 %v238, 116
    %v780 = vpop.permute.xlu0 %779
    %v783 = vsel %vm255, %v766, %v772
    %v784 = vsel %vm255, %v768, %v774
    %v785 = vsel %vm258, %v783, %v778
    %v786 = vsel %vm258, %v784, %v780
    %v788 = vsel %vm267, %v785, 0
    %v791 = vsel %vm267, %v786, 0
    %793 = vmatprep.subr.mxu0 0.0
    %794 = vmatpush1.msra.mxu0 %v75
    %795 = vmatprep.subr.mxu0 0.0
    %796 = vmatpush1.msra.mxu0 %v276
    %797 = vmatprep.subr.mxu0 0.0
    %798 = vmatpush1.msra.mxu0 0.0
    %799 = vmatprep.subr.mxu0 0.0
    %800 = vmatpush1.msra.mxu0 0.0
    %801 = vmatprep.subr.mxu0 0.0
    %802 = vmatpush1.msra.mxu0 0.0
    %803 = vmatprep.subr.mxu0 0.0
    %804 = vmatpush1.msra.mxu0 0.0
    %805 = vmatprep.subr.mxu0 0.0
    %806 = vmatpush1.msra.mxu0 0.0
    %807 = vmatprep.subr.mxu0 0.0
    %808 = vmatpush1.msra.mxu0 0.0
    %809 = vmatprep.subr.mxu0 0.0
    %810 = vmatpush1.msra.mxu0 0.0
    %811 = vmatprep.subr.mxu0 0.0
    %812 = vmatpush1.msra.mxu0 0.0
    %813 = vmatprep.subr.mxu0 0.0
    %814 = vmatpush1.msra.mxu0 0.0
    %815 = vmatprep.subr.mxu0 0.0
    %816 = vmatpush1.msra.mxu0 0.0
    %817 = vmatprep.subr.mxu0 0.0
    %818 = vmatpush1.msra.mxu0 0.0
    %819 = vmatprep.subr.mxu0 0.0
    %820 = vmatpush1.msra.mxu0 0.0
    %821 = vmatprep.subr.mxu0 0.0
    %822 = vmatpush1.msra.mxu0 0.0
    %823 = vmatprep.subr.mxu0 0.0
    %824 = vmatpush1.msra.mxu0 0.0
    %825 = vmatprep.subr.mxu0 0.0
    %826 = vmatpush1.msra.mxu0 0.0
    %827 = vmatprep.subr.mxu0 0.0
    %828 = vmatpush1.msra.mxu0 0.0
    %829 = vmatprep.subr.mxu0 0.0
    %830 = vmatpush1.msra.mxu0 0.0
    %831 = vmatprep.subr.mxu0 0.0
    %832 = vmatpush1.msra.mxu0 0.0
    %833 = vmatprep.subr.mxu0 0.0
    %834 = vmatpush1.msra.mxu0 0.0
    %835 = vmatprep.subr.mxu0 0.0
    %836 = vmatpush1.msra.mxu0 0.0
    %837 = vmatprep.subr.mxu0 0.0
    %838 = vmatpush1.msra.mxu0 0.0
    %839 = vmatprep.subr.mxu0 0.0
    %840 = vmatpush1.msra.mxu0 0.0
    %841 = vmatprep.subr.mxu0 0.0
    %842 = vmatpush1.msra.mxu0 0.0
    %843 = vmatprep.subr.mxu0 0.0
    %844 = vmatpush1.msra.mxu0 0.0
    %845 = vmatprep.subr.mxu0 0.0
    %846 = vmatpush1.msra.mxu0 0.0
    %847 = vmatprep.subr.mxu0 0.0
    %848 = vmatpush1.msra.mxu0 0.0
    %849 = vmatprep.subr.mxu0 0.0
    %850 = vmatpush1.msra.mxu0 0.0
    %851 = vmatprep.subr.mxu0 0.0
    %852 = vmatpush1.msra.mxu0 0.0
    %853 = vmatprep.subr.mxu0 0.0
    %854 = vmatpush1.msra.mxu0 0.0
    %855 = vmatprep.subr.mxu0 0.0
    %856 = vmatpush1.msra.mxu0 0.0
    %857 = vmatprep.mubr.f32.mxu0 0.0
    %858 = vmatmul.mubr.f32.gmra.mrb[0].mxu0 %v788
    %v859 = vpop.f32.mrb[0].mxu0
    %v860 = vadd.f32 %v265, %v859
    %v861 = vpop.f32.mrb[0].mxu0
    %862 = vmatprep.mubr.f32.mxu0 0.0
    %863 = vmatmul.mubr.f32.gmra.mrb[0].mxu0 %v791
    %v864 = vpop.f32.mrb[0].mxu0
    %v865 = vadd.f32 %v265, %v864
    %v866 = vpop.f32.mrb[0].mxu0
    %867 = vdwg.mxu0
    %v868 = vmax.f32 %v860, 0.0
    %v869 = vmax.f32 %v865, 0.0
    %870 = vrot.lane.b32.xlu0 %v71, 104
    %v871 = vpop.permute.xlu0 %870
    %872 = vrot.lane.b32.xlu0 %v72, 104
    %v873 = vpop.permute.xlu0 %872
    %876 = vrot.lane.b32.xlu0 %v152, 108
    %v877 = vpop.permute.xlu0 %876
    %878 = vrot.lane.b32.xlu0 %v157, 108
    %v879 = vpop.permute.xlu0 %878
    %882 = vrot.lane.b32.xlu0 %v237, 112
    %v883 = vpop.permute.xlu0 %882
    %884 = vrot.lane.b32.xlu0 %v238, 112
    %v885 = vpop.permute.xlu0 %884
    %v888 = vsel %vm255, %v871, %v877
    %v889 = vsel %vm255, %v873, %v879
    %v890 = vsel %vm258, %v888, %v883
    %v891 = vsel %vm258, %v889, %v885
    %v893 = vsel %vm267, %v890, 0
    %v896 = vsel %vm267, %v891, 0
    %898 = vmatprep.subr.mxu0 0.0
    %899 = vmatpush1.msra.mxu0 %v75
    %900 = vmatprep.subr.mxu0 0.0
    %901 = vmatpush1.msra.mxu0 %v276
    %902 = vmatprep.subr.mxu0 0.0
    %903 = vmatpush1.msra.mxu0 0.0
    %904 = vmatprep.subr.mxu0 0.0
    %905 = vmatpush1.msra.mxu0 0.0
    %906 = vmatprep.subr.mxu0 0.0
    %907 = vmatpush1.msra.mxu0 0.0
    %908 = vmatprep.subr.mxu0 0.0
    %909 = vmatpush1.msra.mxu0 0.0
    %910 = vmatprep.subr.mxu0 0.0
    %911 = vmatpush1.msra.mxu0 0.0
    %912 = vmatprep.subr.mxu0 0.0
    %913 = vmatpush1.msra.mxu0 0.0
    %914 = vmatprep.subr.mxu0 0.0
    %915 = vmatpush1.msra.mxu0 0.0
    %916 = vmatprep.subr.mxu0 0.0
    %917 = vmatpush1.msra.mxu0 0.0
    %918 = vmatprep.subr.mxu0 0.0
    %919 = vmatpush1.msra.mxu0 0.0
    %920 = vmatprep.subr.mxu0 0.0
    %921 = vmatpush1.msra.mxu0 0.0
    %922 = vmatprep.subr.mxu0 0.0
    %923 = vmatpush1.msra.mxu0 0.0
    %924 = vmatprep.subr.mxu0 0.0
    %925 = vmatpush1.msra.mxu0 0.0
    %926 = vmatprep.subr.mxu0 0.0
    %927 = vmatpush1.msra.mxu0 0.0
    %928 = vmatprep.subr.mxu0 0.0
    %929 = vmatpush1.msra.mxu0 0.0
    %930 = vmatprep.subr.mxu0 0.0
    %931 = vmatpush1.msra.mxu0 0.0
    %932 = vmatprep.subr.mxu0 0.0
    %933 = vmatpush1.msra.mxu0 0.0
    %934 = vmatprep.subr.mxu0 0.0
    %935 = vmatpush1.msra.mxu0 0.0
    %936 = vmatprep.subr.mxu0 0.0
    %937 = vmatpush1.msra.mxu0 0.0
    %938 = vmatprep.subr.mxu0 0.0
    %939 = vmatpush1.msra.mxu0 0.0
    %940 = vmatprep.subr.mxu0 0.0
    %941 = vmatpush1.msra.mxu0 0.0
    %942 = vmatprep.subr.mxu0 0.0
    %943 = vmatpush1.msra.mxu0 0.0
    %944 = vmatprep.subr.mxu0 0.0
    %945 = vmatpush1.msra.mxu0 0.0
    %946 = vmatprep.subr.mxu0 0.0
    %947 = vmatpush1.msra.mxu0 0.0
    %948 = vmatprep.subr.mxu0 0.0
    %949 = vmatpush1.msra.mxu0 0.0
    %950 = vmatprep.subr.mxu0 0.0
    %951 = vmatpush1.msra.mxu0 0.0
    %952 = vmatprep.subr.mxu0 0.0
    %953 = vmatpush1.msra.mxu0 0.0
    %954 = vmatprep.subr.mxu0 0.0
    %955 = vmatpush1.msra.mxu0 0.0
    %956 = vmatprep.subr.mxu0 0.0
    %957 = vmatpush1.msra.mxu0 0.0
    %958 = vmatprep.subr.mxu0 0.0
    %959 = vmatpush1.msra.mxu0 0.0
    %960 = vmatprep.subr.mxu0 0.0
    %961 = vmatpush1.msra.mxu0 0.0
    %962 = vmatprep.mubr.f32.mxu0 0.0
    %963 = vmatmul.mubr.f32.gmra.mrb[0].mxu0 %v893
    %v964 = vpop.f32.mrb[0].mxu0
    %v965 = vadd.f32 %v265, %v964
    %v966 = vpop.f32.mrb[0].mxu0
    %967 = vmatprep.mubr.f32.mxu0 0.0
    %968 = vmatmul.mubr.f32.gmra.mrb[0].mxu0 %v896
    %v969 = vpop.f32.mrb[0].mxu0
    %v970 = vadd.f32 %v265, %v969
    %v971 = vpop.f32.mrb[0].mxu0
    %972 = vdwg.mxu0
    %v973 = vmax.f32 %v965, 0.0
    %v974 = vmax.f32 %v970, 0.0
    %975 = vrot.lane.b32.xlu0 %v71, 100
    %v976 = vpop.permute.xlu0 %975
    %977 = vrot.lane.b32.xlu0 %v72, 100
    %v978 = vpop.permute.xlu0 %977
    %981 = vrot.lane.b32.xlu0 %v152, 104
    %v982 = vpop.permute.xlu0 %981
    %983 = vrot.lane.b32.xlu0 %v157, 104
    %v984 = vpop.permute.xlu0 %983
    %987 = vrot.lane.b32.xlu0 %v237, 108
    %v988 = vpop.permute.xlu0 %987
    %989 = vrot.lane.b32.xlu0 %v238, 108
    %v990 = vpop.permute.xlu0 %989
    %v993 = vsel %vm255, %v976, %v982
    %v994 = vsel %vm255, %v978, %v984
    %v995 = vsel %vm258, %v993, %v988
    %v996 = vsel %vm258, %v994, %v990
    %v998 = vsel %vm267, %v995, 0
    %v1001 = vsel %vm267, %v996, 0
    %1003 = vmatprep.subr.mxu0 0.0
    %1004 = vmatpush1.msra.mxu0 %v75
    %1005 = vmatprep.subr.mxu0 0.0
    %1006 = vmatpush1.msra.mxu0 %v276
    %1007 = vmatprep.subr.mxu0 0.0
    %1008 = vmatpush1.msra.mxu0 0.0
    %1009 = vmatprep.subr.mxu0 0.0
    %1010 = vmatpush1.msra.mxu0 0.0
    %1011 = vmatprep.subr.mxu0 0.0
    %1012 = vmatpush1.msra.mxu0 0.0
    %1013 = vmatprep.subr.mxu0 0.0
    %1014 = vmatpush1.msra.mxu0 0.0
    %1015 = vmatprep.subr.mxu0 0.0
    %1016 = vmatpush1.msra.mxu0 0.0
    %1017 = vmatprep.subr.mxu0 0.0
    %1018 = vmatpush1.msra.mxu0 0.0
    %1019 = vmatprep.subr.mxu0 0.0
    %1020 = vmatpush1.msra.mxu0 0.0
    %1021 = vmatprep.subr.mxu0 0.0
    %1022 = vmatpush1.msra.mxu0 0.0
    %1023 = vmatprep.subr.mxu0 0.0
    %1024 = vmatpush1.msra.mxu0 0.0
    %1025 = vmatprep.subr.mxu0 0.0
    %1026 = vmatpush1.msra.mxu0 0.0
    %1027 = vmatprep.subr.mxu0 0.0
    %1028 = vmatpush1.msra.mxu0 0.0
    %1029 = vmatprep.subr.mxu0 0.0
    %1030 = vmatpush1.msra.mxu0 0.0
    %1031 = vmatprep.subr.mxu0 0.0
    %1032 = vmatpush1.msra.mxu0 0.0
    %1033 = vmatprep.subr.mxu0 0.0
    %1034 = vmatpush1.msra.mxu0 0.0
    %1035 = vmatprep.subr.mxu0 0.0
    %1036 = vmatpush1.msra.mxu0 0.0
    %1037 = vmatprep.subr.mxu0 0.0
    %1038 = vmatpush1.msra.mxu0 0.0
    %1039 = vmatprep.subr.mxu0 0.0
    %1040 = vmatpush1.msra.mxu0 0.0
    %1041 = vmatprep.subr.mxu0 0.0
    %1042 = vmatpush1.msra.mxu0 0.0
    %1043 = vmatprep.subr.mxu0 0.0
    %1044 = vmatpush1.msra.mxu0 0.0
    %1045 = vmatprep.subr.mxu0 0.0
    %1046 = vmatpush1.msra.mxu0 0.0
    %1047 = vmatprep.subr.mxu0 0.0
    %1048 = vmatpush1.msra.mxu0 0.0
    %1049 = vmatprep.subr.mxu0 0.0
    %1050 = vmatpush1.msra.mxu0 0.0
    %1051 = vmatprep.subr.mxu0 0.0
    %1052 = vmatpush1.msra.mxu0 0.0
    %1053 = vmatprep.subr.mxu0 0.0
    %1054 = vmatpush1.msra.mxu0 0.0
    %1055 = vmatprep.subr.mxu0 0.0
    %1056 = vmatpush1.msra.mxu0 0.0
    %1057 = vmatprep.subr.mxu0 0.0
    %1058 = vmatpush1.msra.mxu0 0.0
    %1059 = vmatprep.subr.mxu0 0.0
    %1060 = vmatpush1.msra.mxu0 0.0
    %1061 = vmatprep.subr.mxu0 0.0
    %1062 = vmatpush1.msra.mxu0 0.0
    %1063 = vmatprep.subr.mxu0 0.0
    %1064 = vmatpush1.msra.mxu0 0.0
    %1065 = vmatprep.subr.mxu0 0.0
    %1066 = vmatpush1.msra.mxu0 0.0
    %1067 = vmatprep.mubr.f32.mxu0 0.0
    %1068 = vmatmul.mubr.f32.gmra.mrb[0].mxu0 %v998
    %v1069 = vpop.f32.mrb[0].mxu0
    %v1070 = vadd.f32 %v265, %v1069
    %v1071 = vpop.f32.mrb[0].mxu0
    %1072 = vmatprep.mubr.f32.mxu0 0.0
    %1073 = vmatmul.mubr.f32.gmra.mrb[0].mxu0 %v1001
    %v1074 = vpop.f32.mrb[0].mxu0
    %v1075 = vadd.f32 %v265, %v1074
    %v1076 = vpop.f32.mrb[0].mxu0
    %1077 = vdwg.mxu0
    %v1078 = vmax.f32 %v1070, 0.0
    %v1079 = vmax.f32 %v1075, 0.0
    %1080 = vrot.lane.b32.xlu0 %v71, 96
    %v1081 = vpop.permute.xlu0 %1080
    %1082 = vrot.lane.b32.xlu0 %v72, 96
    %v1083 = vpop.permute.xlu0 %1082
    %1086 = vrot.lane.b32.xlu0 %v152, 100
    %v1087 = vpop.permute.xlu0 %1086
    %1088 = vrot.lane.b32.xlu0 %v157, 100
    %v1089 = vpop.permute.xlu0 %1088
    %1092 = vrot.lane.b32.xlu0 %v237, 104
    %v1093 = vpop.permute.xlu0 %1092
    %1094 = vrot.lane.b32.xlu0 %v238, 104
    %v1095 = vpop.permute.xlu0 %1094
    %v1098 = vsel %vm255, %v1081, %v1087
    %v1099 = vsel %vm255, %v1083, %v1089
    %v1100 = vsel %vm258, %v1098, %v1093
    %v1101 = vsel %vm258, %v1099, %v1095
    %v1103 = vsel %vm267, %v1100, 0
    %v1106 = vsel %vm267, %v1101, 0
    %1108 = vmatprep.subr.mxu0 0.0
    %1109 = vmatpush1.msra.mxu0 %v75
    %1110 = vmatprep.subr.mxu0 0.0
    %1111 = vmatpush1.msra.mxu0 %v276
    %1112 = vmatprep.subr.mxu0 0.0
    %1113 = vmatpush1.msra.mxu0 0.0
    %1114 = vmatprep.subr.mxu0 0.0
    %1115 = vmatpush1.msra.mxu0 0.0
    %1116 = vmatprep.subr.mxu0 0.0
    %1117 = vmatpush1.msra.mxu0 0.0
    %1118 = vmatprep.subr.mxu0 0.0
    %1119 = vmatpush1.msra.mxu0 0.0
    %1120 = vmatprep.subr.mxu0 0.0
    %1121 = vmatpush1.msra.mxu0 0.0
    %1122 = vmatprep.subr.mxu0 0.0
    %1123 = vmatpush1.msra.mxu0 0.0
    %1124 = vmatprep.subr.mxu0 0.0
    %1125 = vmatpush1.msra.mxu0 0.0
    %1126 = vmatprep.subr.mxu0 0.0
    %1127 = vmatpush1.msra.mxu0 0.0
    %1128 = vmatprep.subr.mxu0 0.0
    %1129 = vmatpush1.msra.mxu0 0.0
    %1130 = vmatprep.subr.mxu0 0.0
    %1131 = vmatpush1.msra.mxu0 0.0
    %1132 = vmatprep.subr.mxu0 0.0
    %1133 = vmatpush1.msra.mxu0 0.0
    %1134 = vmatprep.subr.mxu0 0.0
    %1135 = vmatpush1.msra.mxu0 0.0
    %1136 = vmatprep.subr.mxu0 0.0
    %1137 = vmatpush1.msra.mxu0 0.0
    %1138 = vmatprep.subr.mxu0 0.0
    %1139 = vmatpush1.msra.mxu0 0.0
    %1140 = vmatprep.subr.mxu0 0.0
    %1141 = vmatpush1.msra.mxu0 0.0
    %1142 = vmatprep.subr.mxu0 0.0
    %1143 = vmatpush1.msra.mxu0 0.0
    %1144 = vmatprep.subr.mxu0 0.0
    %1145 = vmatpush1.msra.mxu0 0.0
    %1146 = vmatprep.subr.mxu0 0.0
    %1147 = vmatpush1.msra.mxu0 0.0
    %1148 = vmatprep.subr.mxu0 0.0
    %1149 = vmatpush1.msra.mxu0 0.0
    %1150 = vmatprep.subr.mxu0 0.0
    %1151 = vmatpush1.msra.mxu0 0.0
    %1152 = vmatprep.subr.mxu0 0.0
    %1153 = vmatpush1.msra.mxu0 0.0
    %1154 = vmatprep.subr.mxu0 0.0
    %1155 = vmatpush1.msra.mxu0 0.0
    %1156 = vmatprep.subr.mxu0 0.0
    %1157 = vmatpush1.msra.mxu0 0.0
    %1158 = vmatprep.subr.mxu0 0.0
    %1159 = vmatpush1.msra.mxu0 0.0
    %1160 = vmatprep.subr.mxu0 0.0
    %1161 = vmatpush1.msra.mxu0 0.0
    %1162 = vmatprep.subr.mxu0 0.0
    %1163 = vmatpush1.msra.mxu0 0.0
    %1164 = vmatprep.subr.mxu0 0.0
    %1165 = vmatpush1.msra.mxu0 0.0
    %1166 = vmatprep.subr.mxu0 0.0
    %1167 = vmatpush1.msra.mxu0 0.0
    %1168 = vmatprep.subr.mxu0 0.0
    %1169 = vmatpush1.msra.mxu0 0.0
    %1170 = vmatprep.subr.mxu0 0.0
    %1171 = vmatpush1.msra.mxu0 0.0
    %1172 = vmatprep.mubr.f32.mxu0 0.0
    %1173 = vmatmul.mubr.f32.gmra.mrb[0].mxu0 %v1103
    %v1174 = vpop.f32.mrb[0].mxu0
    %v1175 = vadd.f32 %v265, %v1174
    %v1176 = vpop.f32.mrb[0].mxu0
    %1177 = vmatprep.mubr.f32.mxu0 0.0
    %1178 = vmatmul.mubr.f32.gmra.mrb[0].mxu0 %v1106
    %v1179 = vpop.f32.mrb[0].mxu0
    %v1180 = vadd.f32 %v265, %v1179
    %v1181 = vpop.f32.mrb[0].mxu0
    %1182 = vdwg.mxu0
    %v1183 = vmax.f32 %v1175, 0.0
    %v1184 = vmax.f32 %v1180, 0.0
    %1185 = vrot.lane.b32.xlu0 %v71, 92
    %v1186 = vpop.permute.xlu0 %1185
    %1187 = vrot.lane.b32.xlu0 %v72, 92
    %v1188 = vpop.permute.xlu0 %1187
    %1191 = vrot.lane.b32.xlu0 %v152, 96
    %v1192 = vpop.permute.xlu0 %1191
    %1193 = vrot.lane.b32.xlu0 %v157, 96
    %v1194 = vpop.permute.xlu0 %1193
    %1197 = vrot.lane.b32.xlu0 %v237, 100
    %v1198 = vpop.permute.xlu0 %1197
    %1199 = vrot.lane.b32.xlu0 %v238, 100
    %v1200 = vpop.permute.xlu0 %1199
    %v1203 = vsel %vm255, %v1186, %v1192
    %v1204 = vsel %vm255, %v1188, %v1194
    %v1205 = vsel %vm258, %v1203, %v1198
    %v1206 = vsel %vm258, %v1204, %v1200
    %v1208 = vsel %vm267, %v1205, 0
    %v1211 = vsel %vm267, %v1206, 0
    %1213 = vmatprep.subr.mxu0 0.0
    %1214 = vmatpush1.msra.mxu0 %v75
    %1215 = vmatprep.subr.mxu0 0.0
    %1216 = vmatpush1.msra.mxu0 %v276
    %1217 = vmatprep.subr.mxu0 0.0
    %1218 = vmatpush1.msra.mxu0 0.0
    %1219 = vmatprep.subr.mxu0 0.0
    %1220 = vmatpush1.msra.mxu0 0.0
    %1221 = vmatprep.subr.mxu0 0.0
    %1222 = vmatpush1.msra.mxu0 0.0
    %1223 = vmatprep.subr.mxu0 0.0
    %1224 = vmatpush1.msra.mxu0 0.0
    %1225 = vmatprep.subr.mxu0 0.0
    %1226 = vmatpush1.msra.mxu0 0.0
    %1227 = vmatprep.subr.mxu0 0.0
    %1228 = vmatpush1.msra.mxu0 0.0
    %1229 = vmatprep.subr.mxu0 0.0
    %1230 = vmatpush1.msra.mxu0 0.0
    %1231 = vmatprep.subr.mxu0 0.0
    %1232 = vmatpush1.msra.mxu0 0.0
    %1233 = vmatprep.subr.mxu0 0.0
    %1234 = vmatpush1.msra.mxu0 0.0
    %1235 = vmatprep.subr.mxu0 0.0
    %1236 = vmatpush1.msra.mxu0 0.0
    %1237 = vmatprep.subr.mxu0 0.0
    %1238 = vmatpush1.msra.mxu0 0.0
    %1239 = vmatprep.subr.mxu0 0.0
    %1240 = vmatpush1.msra.mxu0 0.0
    %1241 = vmatprep.subr.mxu0 0.0
    %1242 = vmatpush1.msra.mxu0 0.0
    %1243 = vmatprep.subr.mxu0 0.0
    %1244 = vmatpush1.msra.mxu0 0.0
    %1245 = vmatprep.subr.mxu0 0.0
    %1246 = vmatpush1.msra.mxu0 0.0
    %1247 = vmatprep.subr.mxu0 0.0
    %1248 = vmatpush1.msra.mxu0 0.0
    %1249 = vmatprep.subr.mxu0 0.0
    %1250 = vmatpush1.msra.mxu0 0.0
    %1251 = vmatprep.subr.mxu0 0.0
    %1252 = vmatpush1.msra.mxu0 0.0
    %1253 = vmatprep.subr.mxu0 0.0
    %1254 = vmatpush1.msra.mxu0 0.0
    %1255 = vmatprep.subr.mxu0 0.0
    %1256 = vmatpush1.msra.mxu0 0.0
    %1257 = vmatprep.subr.mxu0 0.0
    %1258 = vmatpush1.msra.mxu0 0.0
    %1259 = vmatprep.subr.mxu0 0.0
    %1260 = vmatpush1.msra.mxu0 0.0
    %1261 = vmatprep.subr.mxu0 0.0
    %1262 = vmatpush1.msra.mxu0 0.0
    %1263 = vmatprep.subr.mxu0 0.0
    %1264 = vmatpush1.msra.mxu0 0.0
    %1265 = vmatprep.subr.mxu0 0.0
    %1266 = vmatpush1.msra.mxu0 0.0
    %1267 = vmatprep.subr.mxu0 0.0
    %1268 = vmatpush1.msra.mxu0 0.0
    %1269 = vmatprep.subr.mxu0 0.0
    %1270 = vmatpush1.msra.mxu0 0.0
    %1271 = vmatprep.subr.mxu0 0.0
    %1272 = vmatpush1.msra.mxu0 0.0
    %1273 = vmatprep.subr.mxu0 0.0
    %1274 = vmatpush1.msra.mxu0 0.0
    %1275 = vmatprep.subr.mxu0 0.0
    %1276 = vmatpush1.msra.mxu0 0.0
    %1277 = vmatprep.mubr.f32.mxu0 0.0
    %1278 = vmatmul.mubr.f32.gmra.mrb[0].mxu0 %v1208
    %v1279 = vpop.f32.mrb[0].mxu0
    %v1280 = vadd.f32 %v265, %v1279
    %v1281 = vpop.f32.mrb[0].mxu0
    %1282 = vmatprep.mubr.f32.mxu0 0.0
    %1283 = vmatmul.mubr.f32.gmra.mrb[0].mxu0 %v1211
    %v1284 = vpop.f32.mrb[0].mxu0
    %v1285 = vadd.f32 %v265, %v1284
    %v1286 = vpop.f32.mrb[0].mxu0
    %1287 = vdwg.mxu0
    %v1288 = vmax.f32 %v1280, 0.0
    %v1289 = vmax.f32 %v1285, 0.0
    %1290 = vrot.lane.b32.xlu0 %v71, 88
    %v1291 = vpop.permute.xlu0 %1290
    %1292 = vrot.lane.b32.xlu0 %v72, 88
    %v1293 = vpop.permute.xlu0 %1292
    %1296 = vrot.lane.b32.xlu0 %v152, 92
    %v1297 = vpop.permute.xlu0 %1296
    %1298 = vrot.lane.b32.xlu0 %v157, 92
    %v1299 = vpop.permute.xlu0 %1298
    %1302 = vrot.lane.b32.xlu0 %v237, 96
    %v1303 = vpop.permute.xlu0 %1302
    %1304 = vrot.lane.b32.xlu0 %v238, 96
    %v1305 = vpop.permute.xlu0 %1304
    %v1308 = vsel %vm255, %v1291, %v1297
    %v1309 = vsel %vm255, %v1293, %v1299
    %v1310 = vsel %vm258, %v1308, %v1303
    %v1311 = vsel %vm258, %v1309, %v1305
    %v1313 = vsel %vm267, %v1310, 0
    %v1316 = vsel %vm267, %v1311, 0
    %1318 = vmatprep.subr.mxu0 0.0
    %1319 = vmatpush1.msra.mxu0 %v75
    %1320 = vmatprep.subr.mxu0 0.0
    %1321 = vmatpush1.msra.mxu0 %v276
    %1322 = vmatprep.subr.mxu0 0.0
    %1323 = vmatpush1.msra.mxu0 0.0
    %1324 = vmatprep.subr.mxu0 0.0
    %1325 = vmatpush1.msra.mxu0 0.0
    %1326 = vmatprep.subr.mxu0 0.0
    %1327 = vmatpush1.msra.mxu0 0.0
    %1328 = vmatprep.subr.mxu0 0.0
    %1329 = vmatpush1.msra.mxu0 0.0
    %1330 = vmatprep.subr.mxu0 0.0
    %1331 = vmatpush1.msra.mxu0 0.0
    %1332 = vmatprep.subr.mxu0 0.0
    %1333 = vmatpush1.msra.mxu0 0.0
    %1334 = vmatprep.subr.mxu0 0.0
    %1335 = vmatpush1.msra.mxu0 0.0
    %1336 = vmatprep.subr.mxu0 0.0
    %1337 = vmatpush1.msra.mxu0 0.0
    %1338 = vmatprep.subr.mxu0 0.0
    %1339 = vmatpush1.msra.mxu0 0.0
    %1340 = vmatprep.subr.mxu0 0.0
    %1341 = vmatpush1.msra.mxu0 0.0
    %1342 = vmatprep.subr.mxu0 0.0
    %1343 = vmatpush1.msra.mxu0 0.0
    %1344 = vmatprep.subr.mxu0 0.0
    %1345 = vmatpush1.msra.mxu0 0.0
    %1346 = vmatprep.subr.mxu0 0.0
    %1347 = vmatpush1.msra.mxu0 0.0
    %1348 = vmatprep.subr.mxu0 0.0
    %1349 = vmatpush1.msra.mxu0 0.0
    %1350 = vmatprep.subr.mxu0 0.0
    %1351 = vmatpush1.msra.mxu0 0.0
    %1352 = vmatprep.subr.mxu0 0.0
    %1353 = vmatpush1.msra.mxu0 0.0
    %1354 = vmatprep.subr.mxu0 0.0
    %1355 = vmatpush1.msra.mxu0 0.0
    %1356 = vmatprep.subr.mxu0 0.0
    %1357 = vmatpush1.msra.mxu0 0.0
    %1358 = vmatprep.subr.mxu0 0.0
    %1359 = vmatpush1.msra.mxu0 0.0
    %1360 = vmatprep.subr.mxu0 0.0
    %1361 = vmatpush1.msra.mxu0 0.0
    %1362 = vmatprep.subr.mxu0 0.0
    %1363 = vmatpush1.msra.mxu0 0.0
    %1364 = vmatprep.subr.mxu0 0.0
    %1365 = vmatpush1.msra.mxu0 0.0
    %1366 = vmatprep.subr.mxu0 0.0
    %1367 = vmatpush1.msra.mxu0 0.0
    %1368 = vmatprep.subr.mxu0 0.0
    %1369 = vmatpush1.msra.mxu0 0.0
    %1370 = vmatprep.subr.mxu0 0.0
    %1371 = vmatpush1.msra.mxu0 0.0
    %1372 = vmatprep.subr.mxu0 0.0
    %1373 = vmatpush1.msra.mxu0 0.0
    %1374 = vmatprep.subr.mxu0 0.0
    %1375 = vmatpush1.msra.mxu0 0.0
    %1376 = vmatprep.subr.mxu0 0.0
    %1377 = vmatpush1.msra.mxu0 0.0
    %1378 = vmatprep.subr.mxu0 0.0
    %1379 = vmatpush1.msra.mxu0 0.0
    %1380 = vmatprep.subr.mxu0 0.0
    %1381 = vmatpush1.msra.mxu0 0.0
    %1382 = vmatprep.mubr.f32.mxu0 0.0
    %1383 = vmatmul.mubr.f32.gmra.mrb[0].mxu0 %v1313
    %v1384 = vpop.f32.mrb[0].mxu0
    %v1385 = vadd.f32 %v265, %v1384
    %v1386 = vpop.f32.mrb[0].mxu0
    %1387 = vmatprep.mubr.f32.mxu0 0.0
    %1388 = vmatmul.mubr.f32.gmra.mrb[0].mxu0 %v1316
    %v1389 = vpop.f32.mrb[0].mxu0
    %v1390 = vadd.f32 %v265, %v1389
    %v1391 = vpop.f32.mrb[0].mxu0
    %1392 = vdwg.mxu0
    %v1393 = vmax.f32 %v1385, 0.0
    %v1394 = vmax.f32 %v1390, 0.0
    %1395 = vrot.lane.b32.xlu0 %v71, 84
    %v1396 = vpop.permute.xlu0 %1395
    %1397 = vrot.lane.b32.xlu0 %v72, 84
    %v1398 = vpop.permute.xlu0 %1397
    %1401 = vrot.lane.b32.xlu0 %v152, 88
    %v1402 = vpop.permute.xlu0 %1401
    %1403 = vrot.lane.b32.xlu0 %v157, 88
    %v1404 = vpop.permute.xlu0 %1403
    %1407 = vrot.lane.b32.xlu0 %v237, 92
    %v1408 = vpop.permute.xlu0 %1407
    %1409 = vrot.lane.b32.xlu0 %v238, 92
    %v1410 = vpop.permute.xlu0 %1409
    %v1413 = vsel %vm255, %v1396, %v1402
    %v1414 = vsel %vm255, %v1398, %v1404
    %v1415 = vsel %vm258, %v1413, %v1408
    %v1416 = vsel %vm258, %v1414, %v1410
    %v1418 = vsel %vm267, %v1415, 0
    %v1421 = vsel %vm267, %v1416, 0
    %1423 = vmatprep.subr.mxu0 0.0
    %1424 = vmatpush1.msra.mxu0 %v75
    %1425 = vmatprep.subr.mxu0 0.0
    %1426 = vmatpush1.msra.mxu0 %v276
    %1427 = vmatprep.subr.mxu0 0.0
    %1428 = vmatpush1.msra.mxu0 0.0
    %1429 = vmatprep.subr.mxu0 0.0
    %1430 = vmatpush1.msra.mxu0 0.0
    %1431 = vmatprep.subr.mxu0 0.0
    %1432 = vmatpush1.msra.mxu0 0.0
    %1433 = vmatprep.subr.mxu0 0.0
    %1434 = vmatpush1.msra.mxu0 0.0
    %1435 = vmatprep.subr.mxu0 0.0
    %1436 = vmatpush1.msra.mxu0 0.0
    %1437 = vmatprep.subr.mxu0 0.0
    %1438 = vmatpush1.msra.mxu0 0.0
    %1439 = vmatprep.subr.mxu0 0.0
    %1440 = vmatpush1.msra.mxu0 0.0
    %1441 = vmatprep.subr.mxu0 0.0
    %1442 = vmatpush1.msra.mxu0 0.0
    %1443 = vmatprep.subr.mxu0 0.0
    %1444 = vmatpush1.msra.mxu0 0.0
    %1445 = vmatprep.subr.mxu0 0.0
    %1446 = vmatpush1.msra.mxu0 0.0
    %1447 = vmatprep.subr.mxu0 0.0
    %1448 = vmatpush1.msra.mxu0 0.0
    %1449 = vmatprep.subr.mxu0 0.0
    %1450 = vmatpush1.msra.mxu0 0.0
    %1451 = vmatprep.subr.mxu0 0.0
    %1452 = vmatpush1.msra.mxu0 0.0
    %1453 = vmatprep.subr.mxu0 0.0
    %1454 = vmatpush1.msra.mxu0 0.0
    %1455 = vmatprep.subr.mxu0 0.0
    %1456 = vmatpush1.msra.mxu0 0.0
    %1457 = vmatprep.subr.mxu0 0.0
    %1458 = vmatpush1.msra.mxu0 0.0
    %1459 = vmatprep.subr.mxu0 0.0
    %1460 = vmatpush1.msra.mxu0 0.0
    %1461 = vmatprep.subr.mxu0 0.0
    %1462 = vmatpush1.msra.mxu0 0.0
    %1463 = vmatprep.subr.mxu0 0.0
    %1464 = vmatpush1.msra.mxu0 0.0
    %1465 = vmatprep.subr.mxu0 0.0
    %1466 = vmatpush1.msra.mxu0 0.0
    %1467 = vmatprep.subr.mxu0 0.0
    %1468 = vmatpush1.msra.mxu0 0.0
    %1469 = vmatprep.subr.mxu0 0.0
    %1470 = vmatpush1.msra.mxu0 0.0
    %1471 = vmatprep.subr.mxu0 0.0
    %1472 = vmatpush1.msra.mxu0 0.0
    %1473 = vmatprep.subr.mxu0 0.0
    %1474 = vmatpush1.msra.mxu0 0.0
    %1475 = vmatprep.subr.mxu0 0.0
    %1476 = vmatpush1.msra.mxu0 0.0
    %1477 = vmatprep.subr.mxu0 0.0
    %1478 = vmatpush1.msra.mxu0 0.0
    %1479 = vmatprep.subr.mxu0 0.0
    %1480 = vmatpush1.msra.mxu0 0.0
    %1481 = vmatprep.subr.mxu0 0.0
    %1482 = vmatpush1.msra.mxu0 0.0
    %1483 = vmatprep.subr.mxu0 0.0
    %1484 = vmatpush1.msra.mxu0 0.0
    %1485 = vmatprep.subr.mxu0 0.0
    %1486 = vmatpush1.msra.mxu0 0.0
    %1487 = vmatprep.mubr.f32.mxu0 0.0
    %1488 = vmatmul.mubr.f32.gmra.mrb[0].mxu0 %v1418
    %v1489 = vpop.f32.mrb[0].mxu0
    %v1490 = vadd.f32 %v265, %v1489
    %v1491 = vpop.f32.mrb[0].mxu0
    %1492 = vmatprep.mubr.f32.mxu0 0.0
    %1493 = vmatmul.mubr.f32.gmra.mrb[0].mxu0 %v1421
    %v1494 = vpop.f32.mrb[0].mxu0
    %v1495 = vadd.f32 %v265, %v1494
    %v1496 = vpop.f32.mrb[0].mxu0
    %1497 = vdwg.mxu0
    %v1498 = vmax.f32 %v1490, 0.0
    %v1499 = vmax.f32 %v1495, 0.0
    %1500 = vrot.lane.b32.xlu0 %v71, 80
    %v1501 = vpop.permute.xlu0 %1500
    %1502 = vrot.lane.b32.xlu0 %v72, 80
    %v1503 = vpop.permute.xlu0 %1502
    %1506 = vrot.lane.b32.xlu0 %v152, 84
    %v1507 = vpop.permute.xlu0 %1506
    %1508 = vrot.lane.b32.xlu0 %v157, 84
    %v1509 = vpop.permute.xlu0 %1508
    %1512 = vrot.lane.b32.xlu0 %v237, 88
    %v1513 = vpop.permute.xlu0 %1512
    %1514 = vrot.lane.b32.xlu0 %v238, 88
    %v1515 = vpop.permute.xlu0 %1514
    %v1518 = vsel %vm255, %v1501, %v1507
    %v1519 = vsel %vm255, %v1503, %v1509
    %v1520 = vsel %vm258, %v1518, %v1513
    %v1521 = vsel %vm258, %v1519, %v1515
    %v1523 = vsel %vm267, %v1520, 0
    %v1526 = vsel %vm267, %v1521, 0
    %1528 = vmatprep.subr.mxu0 0.0
    %1529 = vmatpush1.msra.mxu0 %v75
    %1530 = vmatprep.subr.mxu0 0.0
    %1531 = vmatpush1.msra.mxu0 %v276
    %1532 = vmatprep.subr.mxu0 0.0
    %1533 = vmatpush1.msra.mxu0 0.0
    %1534 = vmatprep.subr.mxu0 0.0
    %1535 = vmatpush1.msra.mxu0 0.0
    %1536 = vmatprep.subr.mxu0 0.0
    %1537 = vmatpush1.msra.mxu0 0.0
    %1538 = vmatprep.subr.mxu0 0.0
    %1539 = vmatpush1.msra.mxu0 0.0
    %1540 = vmatprep.subr.mxu0 0.0
    %1541 = vmatpush1.msra.mxu0 0.0
    %1542 = vmatprep.subr.mxu0 0.0
    %1543 = vmatpush1.msra.mxu0 0.0
    %1544 = vmatprep.subr.mxu0 0.0
    %1545 = vmatpush1.msra.mxu0 0.0
    %1546 = vmatprep.subr.mxu0 0.0
    %1547 = vmatpush1.msra.mxu0 0.0
    %1548 = vmatprep.subr.mxu0 0.0
    %1549 = vmatpush1.msra.mxu0 0.0
    %1550 = vmatprep.subr.mxu0 0.0
    %1551 = vmatpush1.msra.mxu0 0.0
    %1552 = vmatprep.subr.mxu0 0.0
    %1553 = vmatpush1.msra.mxu0 0.0
    %1554 = vmatprep.subr.mxu0 0.0
    %1555 = vmatpush1.msra.mxu0 0.0
    %1556 = vmatprep.subr.mxu0 0.0
    %1557 = vmatpush1.msra.mxu0 0.0
    %1558 = vmatprep.subr.mxu0 0.0
    %1559 = vmatpush1.msra.mxu0 0.0
    %1560 = vmatprep.subr.mxu0 0.0
    %1561 = vmatpush1.msra.mxu0 0.0
    %1562 = vmatprep.subr.mxu0 0.0
    %1563 = vmatpush1.msra.mxu0 0.0
    %1564 = vmatprep.subr.mxu0 0.0
    %1565 = vmatpush1.msra.mxu0 0.0
    %1566 = vmatprep.subr.mxu0 0.0
    %1567 = vmatpush1.msra.mxu0 0.0
    %1568 = vmatprep.subr.mxu0 0.0
    %1569 = vmatpush1.msra.mxu0 0.0
    %1570 = vmatprep.subr.mxu0 0.0
    %1571 = vmatpush1.msra.mxu0 0.0
    %1572 = vmatprep.subr.mxu0 0.0
    %1573 = vmatpush1.msra.mxu0 0.0
    %1574 = vmatprep.subr.mxu0 0.0
    %1575 = vmatpush1.msra.mxu0 0.0
    %1576 = vmatprep.subr.mxu0 0.0
    %1577 = vmatpush1.msra.mxu0 0.0
    %1578 = vmatprep.subr.mxu0 0.0
    %1579 = vmatpush1.msra.mxu0 0.0
    %1580 = vmatprep.subr.mxu0 0.0
    %1581 = vmatpush1.msra.mxu0 0.0
    %1582 = vmatprep.subr.mxu0 0.0
    %1583 = vmatpush1.msra.mxu0 0.0
    %1584 = vmatprep.subr.mxu0 0.0
    %1585 = vmatpush1.msra.mxu0 0.0
    %1586 = vmatprep.subr.mxu0 0.0
    %1587 = vmatpush1.msra.mxu0 0.0
    %1588 = vmatprep.subr.mxu0 0.0
    %1589 = vmatpush1.msra.mxu0 0.0
    %1590 = vmatprep.subr.mxu0 0.0
    %1591 = vmatpush1.msra.mxu0 0.0
    %1592 = vmatprep.mubr.f32.mxu0 0.0
    %1593 = vmatmul.mubr.f32.gmra.mrb[0].mxu0 %v1523
    %v1594 = vpop.f32.mrb[0].mxu0
    %v1595 = vadd.f32 %v265, %v1594
    %v1596 = vpop.f32.mrb[0].mxu0
    %1597 = vmatprep.mubr.f32.mxu0 0.0
    %1598 = vmatmul.mubr.f32.gmra.mrb[0].mxu0 %v1526
    %v1599 = vpop.f32.mrb[0].mxu0
    %v1600 = vadd.f32 %v265, %v1599
    %v1601 = vpop.f32.mrb[0].mxu0
    %1602 = vdwg.mxu0
    %v1603 = vmax.f32 %v1595, 0.0
    %v1604 = vmax.f32 %v1600, 0.0
    %1605 = vrot.lane.b32.xlu0 %v71, 76
    %v1606 = vpop.permute.xlu0 %1605
    %1607 = vrot.lane.b32.xlu0 %v72, 76
    %v1608 = vpop.permute.xlu0 %1607
    %1611 = vrot.lane.b32.xlu0 %v152, 80
    %v1612 = vpop.permute.xlu0 %1611
    %1613 = vrot.lane.b32.xlu0 %v157, 80
    %v1614 = vpop.permute.xlu0 %1613
    %1617 = vrot.lane.b32.xlu0 %v237, 84
    %v1618 = vpop.permute.xlu0 %1617
    %1619 = vrot.lane.b32.xlu0 %v238, 84
    %v1620 = vpop.permute.xlu0 %1619
    %v1623 = vsel %vm255, %v1606, %v1612
    %v1624 = vsel %vm255, %v1608, %v1614
    %v1625 = vsel %vm258, %v1623, %v1618
    %v1626 = vsel %vm258, %v1624, %v1620
    %v1628 = vsel %vm267, %v1625, 0
    %v1631 = vsel %vm267, %v1626, 0
    %1633 = vmatprep.subr.mxu0 0.0
    %1634 = vmatpush1.msra.mxu0 %v75
    %1635 = vmatprep.subr.mxu0 0.0
    %1636 = vmatpush1.msra.mxu0 %v276
    %1637 = vmatprep.subr.mxu0 0.0
    %1638 = vmatpush1.msra.mxu0 0.0
    %1639 = vmatprep.subr.mxu0 0.0
    %1640 = vmatpush1.msra.mxu0 0.0
    %1641 = vmatprep.subr.mxu0 0.0
    %1642 = vmatpush1.msra.mxu0 0.0
    %1643 = vmatprep.subr.mxu0 0.0
    %1644 = vmatpush1.msra.mxu0 0.0
    %1645 = vmatprep.subr.mxu0 0.0
    %1646 = vmatpush1.msra.mxu0 0.0
    %1647 = vmatprep.subr.mxu0 0.0
    %1648 = vmatpush1.msra.mxu0 0.0
    %1649 = vmatprep.subr.mxu0 0.0
    %1650 = vmatpush1.msra.mxu0 0.0
    %1651 = vmatprep.subr.mxu0 0.0
    %1652 = vmatpush1.msra.mxu0 0.0
    %1653 = vmatprep.subr.mxu0 0.0
    %1654 = vmatpush1.msra.mxu0 0.0
    %1655 = vmatprep.subr.mxu0 0.0
    %1656 = vmatpush1.msra.mxu0 0.0
    %1657 = vmatprep.subr.mxu0 0.0
    %1658 = vmatpush1.msra.mxu0 0.0
    %1659 = vmatprep.subr.mxu0 0.0
    %1660 = vmatpush1.msra.mxu0 0.0
    %1661 = vmatprep.subr.mxu0 0.0
    %1662 = vmatpush1.msra.mxu0 0.0
    %1663 = vmatprep.subr.mxu0 0.0
    %1664 = vmatpush1.msra.mxu0 0.0
    %1665 = vmatprep.subr.mxu0 0.0
    %1666 = vmatpush1.msra.mxu0 0.0
    %1667 = vmatprep.subr.mxu0 0.0
    %1668 = vmatpush1.msra.mxu0 0.0
    %1669 = vmatprep.subr.mxu0 0.0
    %1670 = vmatpush1.msra.mxu0 0.0
    %1671 = vmatprep.subr.mxu0 0.0
    %1672 = vmatpush1.msra.mxu0 0.0
    %1673 = vmatprep.subr.mxu0 0.0
    %1674 = vmatpush1.msra.mxu0 0.0
    %1675 = vmatprep.subr.mxu0 0.0
    %1676 = vmatpush1.msra.mxu0 0.0
    %1677 = vmatprep.subr.mxu0 0.0
    %1678 = vmatpush1.msra.mxu0 0.0
    %1679 = vmatprep.subr.mxu0 0.0
    %1680 = vmatpush1.msra.mxu0 0.0
    %1681 = vmatprep.subr.mxu0 0.0
    %1682 = vmatpush1.msra.mxu0 0.0
    %1683 = vmatprep.subr.mxu0 0.0
    %1684 = vmatpush1.msra.mxu0 0.0
    %1685 = vmatprep.subr.mxu0 0.0
    %1686 = vmatpush1.msra.mxu0 0.0
    %1687 = vmatprep.subr.mxu0 0.0
    %1688 = vmatpush1.msra.mxu0 0.0
    %1689 = vmatprep.subr.mxu0 0.0
    %1690 = vmatpush1.msra.mxu0 0.0
    %1691 = vmatprep.subr.mxu0 0.0
    %1692 = vmatpush1.msra.mxu0 0.0
    %1693 = vmatprep.subr.mxu0 0.0
    %1694 = vmatpush1.msra.mxu0 0.0
    %1695 = vmatprep.subr.mxu0 0.0
    %1696 = vmatpush1.msra.mxu0 0.0
    %1697 = vmatprep.mubr.f32.mxu0 0.0
    %1698 = vmatmul.mubr.f32.gmra.mrb[0].mxu0 %v1628
    %v1699 = vpop.f32.mrb[0].mxu0
    %v1700 = vadd.f32 %v265, %v1699
    %v1701 = vpop.f32.mrb[0].mxu0
    %1702 = vmatprep.mubr.f32.mxu0 0.0
    %1703 = vmatmul.mubr.f32.gmra.mrb[0].mxu0 %v1631
    %v1704 = vpop.f32.mrb[0].mxu0
    %v1705 = vadd.f32 %v265, %v1704
    %v1706 = vpop.f32.mrb[0].mxu0
    %1707 = vdwg.mxu0
    %v1708 = vmax.f32 %v1700, 0.0
    %v1709 = vmax.f32 %v1705, 0.0
    %1710 = vrot.lane.b32.xlu0 %v71, 72
    %v1711 = vpop.permute.xlu0 %1710
    %1712 = vrot.lane.b32.xlu0 %v72, 72
    %v1713 = vpop.permute.xlu0 %1712
    %1716 = vrot.lane.b32.xlu0 %v152, 76
    %v1717 = vpop.permute.xlu0 %1716
    %1718 = vrot.lane.b32.xlu0 %v157, 76
    %v1719 = vpop.permute.xlu0 %1718
    %1722 = vrot.lane.b32.xlu0 %v237, 80
    %v1723 = vpop.permute.xlu0 %1722
    %1724 = vrot.lane.b32.xlu0 %v238, 80
    %v1725 = vpop.permute.xlu0 %1724
    %v1728 = vsel %vm255, %v1711, %v1717
    %v1729 = vsel %vm255, %v1713, %v1719
    %v1730 = vsel %vm258, %v1728, %v1723
    %v1731 = vsel %vm258, %v1729, %v1725
    %v1733 = vsel %vm267, %v1730, 0
    %v1736 = vsel %vm267, %v1731, 0
    %1738 = vmatprep.subr.mxu0 0.0
    %1739 = vmatpush1.msra.mxu0 %v75
    %1740 = vmatprep.subr.mxu0 0.0
    %1741 = vmatpush1.msra.mxu0 %v276
    %1742 = vmatprep.subr.mxu0 0.0
    %1743 = vmatpush1.msra.mxu0 0.0
    %1744 = vmatprep.subr.mxu0 0.0
    %1745 = vmatpush1.msra.mxu0 0.0
    %1746 = vmatprep.subr.mxu0 0.0
    %1747 = vmatpush1.msra.mxu0 0.0
    %1748 = vmatprep.subr.mxu0 0.0
    %1749 = vmatpush1.msra.mxu0 0.0
    %1750 = vmatprep.subr.mxu0 0.0
    %1751 = vmatpush1.msra.mxu0 0.0
    %1752 = vmatprep.subr.mxu0 0.0
    %1753 = vmatpush1.msra.mxu0 0.0
    %1754 = vmatprep.subr.mxu0 0.0
    %1755 = vmatpush1.msra.mxu0 0.0
    %1756 = vmatprep.subr.mxu0 0.0
    %1757 = vmatpush1.msra.mxu0 0.0
    %1758 = vmatprep.subr.mxu0 0.0
    %1759 = vmatpush1.msra.mxu0 0.0
    %1760 = vmatprep.subr.mxu0 0.0
    %1761 = vmatpush1.msra.mxu0 0.0
    %1762 = vmatprep.subr.mxu0 0.0
    %1763 = vmatpush1.msra.mxu0 0.0
    %1764 = vmatprep.subr.mxu0 0.0
    %1765 = vmatpush1.msra.mxu0 0.0
    %1766 = vmatprep.subr.mxu0 0.0
    %1767 = vmatpush1.msra.mxu0 0.0
    %1768 = vmatprep.subr.mxu0 0.0
    %1769 = vmatpush1.msra.mxu0 0.0
    %1770 = vmatprep.subr.mxu0 0.0
    %1771 = vmatpush1.msra.mxu0 0.0
    %1772 = vmatprep.subr.mxu0 0.0
    %1773 = vmatpush1.msra.mxu0 0.0
    %1774 = vmatprep.subr.mxu0 0.0
    %1775 = vmatpush1.msra.mxu0 0.0
    %1776 = vmatprep.subr.mxu0 0.0
    %1777 = vmatpush1.msra.mxu0 0.0
    %1778 = vmatprep.subr.mxu0 0.0
    %1779 = vmatpush1.msra.mxu0 0.0
    %1780 = vmatprep.subr.mxu0 0.0
    %1781 = vmatpush1.msra.mxu0 0.0
    %1782 = vmatprep.subr.mxu0 0.0
    %1783 = vmatpush1.msra.mxu0 0.0
    %1784 = vmatprep.subr.mxu0 0.0
    %1785 = vmatpush1.msra.mxu0 0.0
    %1786 = vmatprep.subr.mxu0 0.0
    %1787 = vmatpush1.msra.mxu0 0.0
    %1788 = vmatprep.subr.mxu0 0.0
    %1789 = vmatpush1.msra.mxu0 0.0
    %1790 = vmatprep.subr.mxu0 0.0
    %1791 = vmatpush1.msra.mxu0 0.0
    %1792 = vmatprep.subr.mxu0 0.0
    %1793 = vmatpush1.msra.mxu0 0.0
    %1794 = vmatprep.subr.mxu0 0.0
    %1795 = vmatpush1.msra.mxu0 0.0
    %1796 = vmatprep.subr.mxu0 0.0
    %1797 = vmatpush1.msra.mxu0 0.0
    %1798 = vmatprep.subr.mxu0 0.0
    %1799 = vmatpush1.msra.mxu0 0.0
    %1800 = vmatprep.subr.mxu0 0.0
    %1801 = vmatpush1.msra.mxu0 0.0
    %1802 = vmatprep.mubr.f32.mxu0 0.0
    %1803 = vmatmul.mubr.f32.gmra.mrb[0].mxu0 %v1733
    %v1804 = vpop.f32.mrb[0].mxu0
    %v1805 = vadd.f32 %v265, %v1804
    %v1806 = vpop.f32.mrb[0].mxu0
    %1807 = vmatprep.mubr.f32.mxu0 0.0
    %1808 = vmatmul.mubr.f32.gmra.mrb[0].mxu0 %v1736
    %v1809 = vpop.f32.mrb[0].mxu0
    %v1810 = vadd.f32 %v265, %v1809
    %v1811 = vpop.f32.mrb[0].mxu0
    %1812 = vdwg.mxu0
    %v1813 = vmax.f32 %v1805, 0.0
    %v1814 = vmax.f32 %v1810, 0.0
    %1815 = vrot.lane.b32.xlu0 %v71, 68
    %v1816 = vpop.permute.xlu0 %1815
    %1817 = vrot.lane.b32.xlu0 %v72, 68
    %v1818 = vpop.permute.xlu0 %1817
    %1821 = vrot.lane.b32.xlu0 %v152, 72
    %v1822 = vpop.permute.xlu0 %1821
    %1823 = vrot.lane.b32.xlu0 %v157, 72
    %v1824 = vpop.permute.xlu0 %1823
    %1827 = vrot.lane.b32.xlu0 %v237, 76
    %v1828 = vpop.permute.xlu0 %1827
    %1829 = vrot.lane.b32.xlu0 %v238, 76
    %v1830 = vpop.permute.xlu0 %1829
    %v1833 = vsel %vm255, %v1816, %v1822
    %v1834 = vsel %vm255, %v1818, %v1824
    %v1835 = vsel %vm258, %v1833, %v1828
    %v1836 = vsel %vm258, %v1834, %v1830
    %v1838 = vsel %vm267, %v1835, 0
    %v1841 = vsel %vm267, %v1836, 0
    %1843 = vmatprep.subr.mxu0 0.0
    %1844 = vmatpush1.msra.mxu0 %v75
    %1845 = vmatprep.subr.mxu0 0.0
    %1846 = vmatpush1.msra.mxu0 %v276
    %1847 = vmatprep.subr.mxu0 0.0
    %1848 = vmatpush1.msra.mxu0 0.0
    %1849 = vmatprep.subr.mxu0 0.0
    %1850 = vmatpush1.msra.mxu0 0.0
    %1851 = vmatprep.subr.mxu0 0.0
    %1852 = vmatpush1.msra.mxu0 0.0
    %1853 = vmatprep.subr.mxu0 0.0
    %1854 = vmatpush1.msra.mxu0 0.0
    %1855 = vmatprep.subr.mxu0 0.0
    %1856 = vmatpush1.msra.mxu0 0.0
    %1857 = vmatprep.subr.mxu0 0.0
    %1858 = vmatpush1.msra.mxu0 0.0
    %1859 = vmatprep.subr.mxu0 0.0
    %1860 = vmatpush1.msra.mxu0 0.0
    %1861 = vmatprep.subr.mxu0 0.0
    %1862 = vmatpush1.msra.mxu0 0.0
    %1863 = vmatprep.subr.mxu0 0.0
    %1864 = vmatpush1.msra.mxu0 0.0
    %1865 = vmatprep.subr.mxu0 0.0
    %1866 = vmatpush1.msra.mxu0 0.0
    %1867 = vmatprep.subr.mxu0 0.0
    %1868 = vmatpush1.msra.mxu0 0.0
    %1869 = vmatprep.subr.mxu0 0.0
    %1870 = vmatpush1.msra.mxu0 0.0
    %1871 = vmatprep.subr.mxu0 0.0
    %1872 = vmatpush1.msra.mxu0 0.0
    %1873 = vmatprep.subr.mxu0 0.0
    %1874 = vmatpush1.msra.mxu0 0.0
    %1875 = vmatprep.subr.mxu0 0.0
    %1876 = vmatpush1.msra.mxu0 0.0
    %1877 = vmatprep.subr.mxu0 0.0
    %1878 = vmatpush1.msra.mxu0 0.0
    %1879 = vmatprep.subr.mxu0 0.0
    %1880 = vmatpush1.msra.mxu0 0.0
    %1881 = vmatprep.subr.mxu0 0.0
    %1882 = vmatpush1.msra.mxu0 0.0
    %1883 = vmatprep.subr.mxu0 0.0
    %1884 = vmatpush1.msra.mxu0 0.0
    %1885 = vmatprep.subr.mxu0 0.0
    %1886 = vmatpush1.msra.mxu0 0.0
    %1887 = vmatprep.subr.mxu0 0.0
    %1888 = vmatpush1.msra.mxu0 0.0
    %1889 = vmatprep.subr.mxu0 0.0
    %1890 = vmatpush1.msra.mxu0 0.0
    %1891 = vmatprep.subr.mxu0 0.0
    %1892 = vmatpush1.msra.mxu0 0.0
    %1893 = vmatprep.subr.mxu0 0.0
    %1894 = vmatpush1.msra.mxu0 0.0
    %1895 = vmatprep.subr.mxu0 0.0
    %1896 = vmatpush1.msra.mxu0 0.0
    %1897 = vmatprep.subr.mxu0 0.0
    %1898 = vmatpush1.msra.mxu0 0.0
    %1899 = vmatprep.subr.mxu0 0.0
    %1900 = vmatpush1.msra.mxu0 0.0
    %1901 = vmatprep.subr.mxu0 0.0
    %1902 = vmatpush1.msra.mxu0 0.0
    %1903 = vmatprep.subr.mxu0 0.0
    %1904 = vmatpush1.msra.mxu0 0.0
    %1905 = vmatprep.subr.mxu0 0.0
    %1906 = vmatpush1.msra.mxu0 0.0
    %1907 = vmatprep.mubr.f32.mxu0 0.0
    %1908 = vmatmul.mubr.f32.gmra.mrb[0].mxu0 %v1838
    %v1909 = vpop.f32.mrb[0].mxu0
    %v1910 = vadd.f32 %v265, %v1909
    %v1911 = vpop.f32.mrb[0].mxu0
    %1912 = vmatprep.mubr.f32.mxu0 0.0
    %1913 = vmatmul.mubr.f32.gmra.mrb[0].mxu0 %v1841
    %v1914 = vpop.f32.mrb[0].mxu0
    %v1915 = vadd.f32 %v265, %v1914
    %v1916 = vpop.f32.mrb[0].mxu0
    %1917 = vdwg.mxu0
    %v1918 = vmax.f32 %v1910, 0.0
    %v1919 = vmax.f32 %v1915, 0.0
    %1922 = vrot.lane.b32.xlu0 %v454, 16
    %v1923 = vpop.permute.xlu0 %1922
    %1924 = vrot.lane.b32.xlu0 %v455, 16
    %v1925 = vpop.permute.xlu0 %1924
    %1930 = vrot.lane.b32.xlu0 %v553, 32
    %v1931 = vpop.permute.xlu0 %1930
    %1932 = vrot.lane.b32.xlu0 %v554, 32
    %v1933 = vpop.permute.xlu0 %1932
    %1938 = vrot.lane.b32.xlu0 %v658, 48
    %v1939 = vpop.permute.xlu0 %1938
    %1940 = vrot.lane.b32.xlu0 %v659, 48
    %v1941 = vpop.permute.xlu0 %1940
    %1946 = vrot.lane.b32.xlu0 %v763, 64
    %v1947 = vpop.permute.xlu0 %1946
    %1948 = vrot.lane.b32.xlu0 %v764, 64
    %v1949 = vpop.permute.xlu0 %1948
    %1954 = vrot.lane.b32.xlu0 %v868, 80
    %v1955 = vpop.permute.xlu0 %1954
    %1956 = vrot.lane.b32.xlu0 %v869, 80
    %v1957 = vpop.permute.xlu0 %1956
    %1962 = vrot.lane.b32.xlu0 %v973, 96
    %v1963 = vpop.permute.xlu0 %1962
    %1964 = vrot.lane.b32.xlu0 %v974, 96
    %v1965 = vpop.permute.xlu0 %1964
    %1970 = vrot.lane.b32.xlu0 %v1078, 112
    %v1971 = vpop.permute.xlu0 %1970
    %1972 = vrot.lane.b32.xlu0 %v1079, 112
    %v1973 = vpop.permute.xlu0 %1972
    %1978 = vrot.lane.b32.xlu0 %v1288, 16
    %v1979 = vpop.permute.xlu0 %1978
    %1980 = vrot.lane.b32.xlu0 %v1289, 16
    %v1981 = vpop.permute.xlu0 %1980
    %1986 = vrot.lane.b32.xlu0 %v1393, 32
    %v1987 = vpop.permute.xlu0 %1986
    %1988 = vrot.lane.b32.xlu0 %v1394, 32
    %v1989 = vpop.permute.xlu0 %1988
    %1994 = vrot.lane.b32.xlu0 %v1498, 48
    %v1995 = vpop.permute.xlu0 %1994
    %1996 = vrot.lane.b32.xlu0 %v1499, 48
    %v1997 = vpop.permute.xlu0 %1996
    %2002 = vrot.lane.b32.xlu0 %v1603, 64
    %v2003 = vpop.permute.xlu0 %2002
    %2004 = vrot.lane.b32.xlu0 %v1604, 64
    %v2005 = vpop.permute.xlu0 %2004
    %2010 = vrot.lane.b32.xlu0 %v1708, 80
    %v2011 = vpop.permute.xlu0 %2010
    %2012 = vrot.lane.b32.xlu0 %v1709, 80
    %v2013 = vpop.permute.xlu0 %2012
    %2018 = vrot.lane.b32.xlu0 %v1813, 96
    %v2019 = vpop.permute.xlu0 %2018
    %2020 = vrot.lane.b32.xlu0 %v1814, 96
    %v2021 = vpop.permute.xlu0 %2020
    %2026 = vrot.lane.b32.xlu0 %v1918, 112
    %v2027 = vpop.permute.xlu0 %2026
    %2028 = vrot.lane.b32.xlu0 %v1919, 112
    %v2029 = vpop.permute.xlu0 %2028
    %v2032 = vsel %vm78, %v353, %v1923
    %v2033 = vsel %vm78, %v354, %v1925
    %vm2034 = vcmask 261120
    %v2035 = vsel %vm2034, %v2032, %v1931
    %v2036 = vsel %vm2034, %v2033, %v1933
    %vm2037 = vcmask 392192
    %v2038 = vsel %vm2037, %v2035, %v1939
    %v2039 = vsel %vm2037, %v2036, %v1941
    %vm2040 = vcmask 523264
    %v2041 = vsel %vm2040, %v2038, %v1947
    %v2042 = vsel %vm2040, %v2039, %v1949
    %vm2043 = vcmask 654336
    %v2044 = vsel %vm2043, %v2041, %v1955
    %v2045 = vsel %vm2043, %v2042, %v1957
    %vm2046 = vcmask 785408
    %v2047 = vsel %vm2046, %v2044, %v1963
    %v2048 = vsel %vm2046, %v2045, %v1965
    %vm2049 = vcmask 916480
    %v2050 = vsel %vm2049, %v2047, %v1971
    %v2051 = vsel %vm2049, %v2048, %v1973
    %v2052 = vsel %vm78, %v1183, %v1979
    %v2053 = vsel %vm78, %v1184, %v1981
    %v2054 = vsel %vm2034, %v2052, %v1987
    %v2055 = vsel %vm2034, %v2053, %v1989
    %v2056 = vsel %vm2037, %v2054, %v1995
    %v2057 = vsel %vm2037, %v2055, %v1997
    %v2058 = vsel %vm2040, %v2056, %v2003
    %v2059 = vsel %vm2040, %v2057, %v2005
    %v2060 = vsel %vm2043, %v2058, %v2011
    %v2061 = vsel %vm2043, %v2059, %v2013
    %v2062 = vsel %vm2046, %v2060, %v2019
    %v2063 = vsel %vm2046, %v2061, %v2021
    %v2064 = vsel %vm2049, %v2062, %v2027
    %v2065 = vsel %vm2049, %v2063, %v2029
    %2066 = vst [vmem:[#allocation10] sm:$0xff] %v2050
    %2067 = vst [vmem:[#allocation10 + $0x8] sm:$0xff] %v2064
    %2068 = vst [vmem:[#allocation10 + $0x10] sm:$0xff] %v2051
    %2069 = vst [vmem:[#allocation10 + $0x18] sm:$0xff] %v2065
    // Predicated region
    $region34: #{mstgcn_block_forward.2} parent=1 // pred_check
      _
    $region35: #{mstgcn_block_forward.2} parent=1 // pred_check_branch
      %2071 = sbr.rel (0) target = $region37
    $region36: #{mstgcn_block_forward.2} parent=1 // pred_region
      %s2073 = ssub.s32 512, 512
      %2074 = vsyncadd [#allocation4], %s2073
      %s2075 = sshll.u32 [#allocation10], 4
      %s2076 = int_to_ptr.vmem [resolvable:$true] %s2075
      %2081 = dma.vmem_to_hbm [thread:$0]  %s2076, 512, %s4, [#allocation4], 256, 256, 16
    $region37: #{mstgcn_block_forward.2} parent=1 // pred_fallthru
      _
    // Predicated region
    $region38: #{mstgcn_block_forward.2} parent=1 // pred_check
      _
    $region39: #{mstgcn_block_forward.2} parent=1 // pred_check_branch
      %2083 = sbr.rel (0) target = $region41
    $region40: #{mstgcn_block_forward.2} parent=1 // pred_region
      %2084 = dma.done [#allocation4], 512
    $region41: #{mstgcn_block_forward.2} parent=1 // pred_fallthru
      _
    %2085 = vsyncpa [#allocation3], 1
    %2086 = vsyncpa [#allocation6], 1
    %2087 = vsyncpa [#allocation9], 1
    %2088 = vsyncpa [#allocation4], 1

// kernel: mstgcn_block_forward.3
$region0: #{mstgcn_block_forward.3}
  #allocation0 [shape = 'u32[]', space=smem, size = 0x4, offset = 0x4, fixed_abs, tag = 'smem constant byte address 0x4 - core index']
  #allocation1 [shape = 'u32[144,128]{1,0:T(1,128)}', space=vmem, size = 0x12000, scoped, tag = 'internal scratch']
  %s0 = inlined_call_operand.hbm [shape: f32[32,160], index: 0, kind: input, shape index: {}]
  %s1 = inlined_call_operand.hbm [shape: f32[32,16], index: 1, kind: input, shape index: {}]
  %s2 = inlined_call_operand.hbm [shape: f32[52,16], index: 2, kind: input, shape index: {}]
  %s3 = inlined_call_operand.hbm [shape: f32[1,16], index: 3, kind: input, shape index: {}]
  %s4 = inlined_call_operand.hbm [shape: f32[1,16], index: 4, kind: input, shape index: {}]
  %s5 = inlined_call_operand.hbm [shape: f32[1,16], index: 5, kind: input, shape index: {}]
  %s6 = inlined_call_operand.hbm [shape: f32[32,64], index: 6, kind: output, shape index: {}]
  %s7 = sld [smem:[#allocation0]]
  $region58: #{mstgcn_block_forward.3} parent=0
    _
  %s9 = ssub.s32 1, %s7
  %s10 = scalar_select 0, %s9, %s7
  $region1: #{mstgcn_block_forward.3} parent=0
    #allocation2 [shape = 'u8[32768]{0}', space=vmem, size = 0x8000, scoped, tag = 'input window, operand 0, single buffered']
    #allocation3 [shape = 's32[1]{0}', space=sflag, size = 0x4, scoped, tag = 'scoped memory for mstgcn_block_forward.3']
    #allocation4 [shape = 's32[1]{0}', space=sflag, size = 0x4, scoped, tag = 'scoped memory for mstgcn_block_forward.3']
    #allocation5 [shape = 'u8[16384]{0}', space=vmem, size = 0x4000, scoped, tag = 'input window, operand 1, single buffered']
    #allocation6 [shape = 's32[1]{0}', space=sflag, size = 0x4, scoped, tag = 'scoped memory for mstgcn_block_forward.3']
    #allocation7 [shape = 'u8[28672]{0}', space=vmem, size = 0x7000, scoped, tag = 'input window, operand 2, single buffered']
    #allocation8 [shape = 'u8[512]{0}', space=vmem, size = 0x400, scoped, tag = 'input window, operand 3, single buffered']
    #allocation9 [shape = 's32[1]{0}', space=sflag, size = 0x4, scoped, tag = 'scoped memory for mstgcn_block_forward.3']
    #allocation10 [shape = 'u8[512]{0}', space=vmem, size = 0x400, scoped, tag = 'input window, operand 4, single buffered']
    #allocation11 [shape = 'u8[512]{0}', space=vmem, size = 0x400, scoped, tag = 'input window, operand 5, single buffered']
    #allocation12 [shape = 's32[1]{0}', space=sflag, size = 0x4, scoped, tag = 'scoped memory for mstgcn_block_forward.3']
    #allocation13 [shape = 'u8[16384]{0}', space=vmem, size = 0x4000, scoped, tag = 'output window, operand 0, single buffered']
    %11 = vsyncpa [#allocation3], 0
    %12 = vsyncpa [#allocation6], 0
    %13 = vsyncpa [#allocation9], 0
    %14 = vsyncpa [#allocation12], 0
    %15 = vsyncpa [#allocation4], 0
    // Predicated region
    $region2: #{mstgcn_block_forward.3} parent=1 // pred_check
      _
    $region3: #{mstgcn_block_forward.3} parent=1 // pred_check_branch
      %17 = sbr.rel (0) target = $region5
    $region4: #{mstgcn_block_forward.3} parent=1 // pred_region
      %s19 = ssub.s32 1024, 1024
      %20 = vsyncadd [#allocation3], %s19
      %s21 = sshll.u32 [#allocation2], 4
      %s22 = int_to_ptr.vmem [resolvable:$true] %s21
      %27 = dma.hbm_to_vmem [thread:$0]  %s0, 1024, %s22, [#allocation3], 256, 256, 16
    $region5: #{mstgcn_block_forward.3} parent=1 // pred_fallthru
      _
    // Predicated region
    $region6: #{mstgcn_block_forward.3} parent=1 // pred_check
      _
    $region7: #{mstgcn_block_forward.3} parent=1 // pred_check_branch
      %29 = sbr.rel (0) target = $region9
    $region8: #{mstgcn_block_forward.3} parent=1 // pred_region
      %s31 = ssub.s32 512, 512
      %32 = vsyncadd [#allocation6], %s31
      %s33 = sshll.u32 [#allocation5], 4
      %s34 = int_to_ptr.vmem [resolvable:$true] %s33
      %39 = dma.hbm_to_vmem [thread:$0]  %s1, 512, %s34, [#allocation6], 128, 128, 8
    $region9: #{mstgcn_block_forward.3} parent=1 // pred_fallthru
      _
    // Predicated region
    $region10: #{mstgcn_block_forward.3} parent=1 // pred_check
      _
    $region11: #{mstgcn_block_forward.3} parent=1 // pred_check_branch
      %41 = sbr.rel (0) target = $region13
    $region12: #{mstgcn_block_forward.3} parent=1 // pred_region
      %s43 = ssub.s32 896, 896
      %44 = vsyncadd [#allocation6], %s43
      %s45 = sshll.u32 [#allocation7], 4
      %s46 = int_to_ptr.vmem [resolvable:$true] %s45
      %51 = dma.hbm_to_vmem [thread:$0]  %s2, 896, %s46, [#allocation6], 128, 128, 8
    $region13: #{mstgcn_block_forward.3} parent=1 // pred_fallthru
      _
    // Predicated region
    $region14: #{mstgcn_block_forward.3} parent=1 // pred_check
      _
    $region15: #{mstgcn_block_forward.3} parent=1 // pred_check_branch
      %53 = sbr.rel (0) target = $region17
    $region16: #{mstgcn_block_forward.3} parent=1 // pred_region
      %s55 = ssub.s32 16, 16
      %56 = vsyncadd [#allocation9], %s55
      %s58 = sshll.u32 [#allocation8], 4
      %s59 = int_to_ptr.vmem [resolvable:$true] %s58
      %61 = dma.hbm_to_vmem [thread:$0]  %s3, 16, %s59, [#allocation9]
    $region17: #{mstgcn_block_forward.3} parent=1 // pred_fallthru
      _
    // Predicated region
    $region18: #{mstgcn_block_forward.3} parent=1 // pred_check
      _
    $region19: #{mstgcn_block_forward.3} parent=1 // pred_check_branch
      %63 = sbr.rel (0) target = $region21
    $region20: #{mstgcn_block_forward.3} parent=1 // pred_region
      %s65 = ssub.s32 16, 16
      %66 = vsyncadd [#allocation9], %s65
      %s68 = sshll.u32 [#allocation10], 4
      %s69 = int_to_ptr.vmem [resolvable:$true] %s68
      %71 = dma.hbm_to_vmem [thread:$0]  %s4, 16, %s69, [#allocation9]
    $region21: #{mstgcn_block_forward.3} parent=1 // pred_fallthru
      _
    // Predicated region
    $region22: #{mstgcn_block_forward.3} parent=1 // pred_check
      _
    $region23: #{mstgcn_block_forward.3} parent=1 // pred_check_branch
      %73 = sbr.rel (0) target = $region25
    $region24: #{mstgcn_block_forward.3} parent=1 // pred_region
      %s75 = ssub.s32 16, 16
      %76 = vsyncadd [#allocation12], %s75
      %s78 = sshll.u32 [#allocation11], 4
      %s79 = int_to_ptr.vmem [resolvable:$true] %s78
      %81 = dma.hbm_to_vmem [thread:$0]  %s5, 16, %s79, [#allocation12]
    $region25: #{mstgcn_block_forward.3} parent=1 // pred_fallthru
      _
    // Predicated region
    $region26: #{mstgcn_block_forward.3} parent=1 // pred_check
      _
    $region27: #{mstgcn_block_forward.3} parent=1 // pred_check_branch
      %83 = sbr.rel (0) target = $region29
    $region28: #{mstgcn_block_forward.3} parent=1 // pred_region
      %84 = dma.done [#allocation3], 1024
    $region29: #{mstgcn_block_forward.3} parent=1 // pred_fallthru
      _
    // Predicated region
    $region30: #{mstgcn_block_forward.3} parent=1 // pred_check
      _
    $region31: #{mstgcn_block_forward.3} parent=1 // pred_check_branch
      %86 = sbr.rel (0) target = $region33
    $region32: #{mstgcn_block_forward.3} parent=1 // pred_region
      %87 = dma.done [#allocation6], 512
    $region33: #{mstgcn_block_forward.3} parent=1 // pred_fallthru
      _
    // Predicated region
    $region34: #{mstgcn_block_forward.3} parent=1 // pred_check
      _
    $region35: #{mstgcn_block_forward.3} parent=1 // pred_check_branch
      %89 = sbr.rel (0) target = $region37
    $region36: #{mstgcn_block_forward.3} parent=1 // pred_region
      %90 = dma.done [#allocation6], 896
    $region37: #{mstgcn_block_forward.3} parent=1 // pred_fallthru
      _
    // Predicated region
    $region38: #{mstgcn_block_forward.3} parent=1 // pred_check
      _
    $region39: #{mstgcn_block_forward.3} parent=1 // pred_check_branch
      %92 = sbr.rel (0) target = $region41
    $region40: #{mstgcn_block_forward.3} parent=1 // pred_region
      %93 = dma.done [#allocation9], 16
    $region41: #{mstgcn_block_forward.3} parent=1 // pred_fallthru
      _
    // Predicated region
    $region42: #{mstgcn_block_forward.3} parent=1 // pred_check
      _
    $region43: #{mstgcn_block_forward.3} parent=1 // pred_check_branch
      %95 = sbr.rel (0) target = $region45
    $region44: #{mstgcn_block_forward.3} parent=1 // pred_region
      %96 = dma.done [#allocation9], 16
    $region45: #{mstgcn_block_forward.3} parent=1 // pred_fallthru
      _
    // Predicated region
    $region46: #{mstgcn_block_forward.3} parent=1 // pred_check
      _
    $region47: #{mstgcn_block_forward.3} parent=1 // pred_check_branch
      %98 = sbr.rel (0) target = $region49
    $region48: #{mstgcn_block_forward.3} parent=1 // pred_region
      %99 = dma.done [#allocation12], 16
    $region49: #{mstgcn_block_forward.3} parent=1 // pred_fallthru
      _
    %v100 = vld [vmem:[#allocation2] sm:$0xff]
    %v101 = vld [vmem:[#allocation2 + $0x8] sm:$0xff]
    %v102 = vld [vmem:[#allocation2 + $0x10] sm:$0xff]
    %v103 = vld [vmem:[#allocation2 + $0x18] sm:$0xff]
    %v104 = vld [vmem:[#allocation2 + $0x20] sm:$0xff]
    %v105 = vld [vmem:[#allocation2 + $0x28] sm:$0xff]
    %v106 = vld [vmem:[#allocation2 + $0x30] sm:$0xff]
    %v107 = vld [vmem:[#allocation2 + $0x38] sm:$0xff]
    %v108 = vld [vmem:[#allocation5] sm:$0xff]
    %v109 = vld [vmem:[#allocation5 + $0x8] sm:$0xff]
    %v110 = vld [vmem:[#allocation5 + $0x10] sm:$0xff]
    %v111 = vld [vmem:[#allocation5 + $0x18] sm:$0xff]
    %v112 = vld [vmem:[#allocation7] sm:$0xff]
    %v113 = vld [vmem:[#allocation7 + $0x8] sm:$0xff]
    %v114 = vld [vmem:[#allocation7 + $0x10] sm:$0xff]
    %v115 = vld [vmem:[#allocation7 + $0x18] sm:$0xff]
    %v116 = vld [vmem:[#allocation7 + $0x20] sm:$0xff]
    %v117 = vld [vmem:[#allocation7 + $0x28] sm:$0xff]
    %v118 = vld [vmem:[#allocation7 + $0x30] sm:$0xf]
    %v119 = vld [vmem:[#allocation8] sm:$0x1]
    %v120 = vld [vmem:[#allocation10] sm:$0x1]
    %v121 = vld [vmem:[#allocation11] sm:$0x1]
    %126 = vrot.lane.b32.xlu0 %v108, 48
    %v127 = vpop.permute.xlu0 %126
    %128 = vrot.lane.b32.xlu0 %v109, 48
    %v129 = vpop.permute.xlu0 %128
    %130 = vrot.lane.b32.xlu0 %v110, 48
    %v131 = vpop.permute.xlu0 %130
    %132 = vrot.lane.b32.xlu0 %v111, 48
    %v133 = vpop.permute.xlu0 %132
    %vm138 = vcmask 392192
    %v139 = vsel %vm138, %v100, %v127
    %v140 = vsel %vm138, %v102, %v129
    %v141 = vsel %vm138, %v104, %v131
    %v142 = vsel %vm138, %v106, %v133
    %v144 = vlaneseq
    %v145 = vshrl.u32 %v144, 7
    %v146 = vsub.s32 0, %v145
    %v147 = vrot.slane %v119, %v146
    %vm149 = vcmask 424960
    %v151 = vsel %vm149, %v139, 0
    %v154 = vsel %vm149, %v140, 0
    %v157 = vsel %vm149, %v141, 0
    %v160 = vsel %vm149, %v142, 0
    %vm162 = vcmask 1043456
    %v164 = vsel %vm162, %v118, 0
    %166 = vmatprep.subr.mxu0 0.0
    %167 = vmatpush1.msra.mxu0 %v112
    %168 = vmatprep.subr.mxu0 0.0
    %169 = vmatpush1.msra.mxu0 %v113
    %170 = vmatprep.subr.mxu0 0.0
    %171 = vmatpush1.msra.mxu0 %v114
    %172 = vmatprep.subr.mxu0 0.0
    %173 = vmatpush1.msra.mxu0 %v115
    %174 = vmatprep.subr.mxu0 0.0
    %175 = vmatpush1.msra.mxu0 %v116
    %176 = vmatprep.subr.mxu0 0.0
    %177 = vmatpush1.msra.mxu0 %v117
    %178 = vmatprep.subr.mxu0 0.0
    %179 = vmatpush1.msra.mxu0 %v164
    %180 = vmatprep.subr.mxu0 0.0
    %181 = vmatpush1.msra.mxu0 0.0
    %182 = vmatprep.subr.mxu0 0.0
    %183 = vmatpush1.msra.mxu0 0.0
    %184 = vmatprep.subr.mxu0 0.0
    %185 = vmatpush1.msra.mxu0 0.0
    %186 = vmatprep.subr.mxu0 0.0
    %187 = vmatpush1.msra.mxu0 0.0
    %188 = vmatprep.subr.mxu0 0.0
    %189 = vmatpush1.msra.mxu0 0.0
    %190 = vmatprep.subr.mxu0 0.0
    %191 = vmatpush1.msra.mxu0 0.0
    %192 = vmatprep.subr.mxu0 0.0
    %193 = vmatpush1.msra.mxu0 0.0
    %194 = vmatprep.subr.mxu0 0.0
    %195 = vmatpush1.msra.mxu0 0.0
    %196 = vmatprep.subr.mxu0 0.0
    %197 = vmatpush1.msra.mxu0 0.0
    %198 = vmatprep.subr.mxu0 0.0
    %199 = vmatpush1.msra.mxu0 0.0
    %200 = vmatprep.subr.mxu0 0.0
    %201 = vmatpush1.msra.mxu0 0.0
    %202 = vmatprep.subr.mxu0 0.0
    %203 = vmatpush1.msra.mxu0 0.0
    %204 = vmatprep.subr.mxu0 0.0
    %205 = vmatpush1.msra.mxu0 0.0
    %206 = vmatprep.subr.mxu0 0.0
    %207 = vmatpush1.msra.mxu0 0.0
    %208 = vmatprep.subr.mxu0 0.0
    %209 = vmatpush1.msra.mxu0 0.0
    %210 = vmatprep.subr.mxu0 0.0
    %211 = vmatpush1.msra.mxu0 0.0
    %212 = vmatprep.subr.mxu0 0.0
    %213 = vmatpush1.msra.mxu0 0.0
    %214 = vmatprep.subr.mxu0 0.0
    %215 = vmatpush1.msra.mxu0 0.0
    %216 = vmatprep.subr.mxu0 0.0
    %217 = vmatpush1.msra.mxu0 0.0
    %218 = vmatprep.subr.mxu0 0.0
    %219 = vmatpush1.msra.mxu0 0.0
    %220 = vmatprep.subr.mxu0 0.0
    %221 = vmatpush1.msra.mxu0 0.0
    %222 = vmatprep.subr.mxu0 0.0
    %223 = vmatpush1.msra.mxu0 0.0
    %224 = vmatprep.subr.mxu0 0.0
    %225 = vmatpush1.msra.mxu0 0.0
    %226 = vmatprep.subr.mxu0 0.0
    %227 = vmatpush1.msra.mxu0 0.0
    %228 = vmatprep.subr.mxu0 0.0
    %229 = vmatpush1.msra.mxu0 0.0
    %230 = vmatprep.mubr.f32.mxu0 0.0
    %231 = vmatmul.mubr.f32.gmra.mrb[0].mxu0 %v151
    %v232 = vpop.f32.mrb[0].mxu0
    %v233 = vadd.f32 %v147, %v232
    %v234 = vpop.f32.mrb[0].mxu0
    %235 = vmatprep.mubr.f32.mxu0 0.0
    %236 = vmatmul.mubr.f32.gmra.mrb[0].mxu0 %v154
    %v237 = vpop.f32.mrb[0].mxu0
    %v238 = vadd.f32 %v147, %v237
    %v239 = vpop.f32.mrb[0].mxu0
    %240 = vmatprep.mubr.f32.mxu0 0.0
    %241 = vmatmul.mubr.f32.gmra.mrb[0].mxu0 %v157
    %v242 = vpop.f32.mrb[0].mxu0
    %v243 = vadd.f32 %v147, %v242
    %v244 = vpop.f32.mrb[0].mxu0
    %245 = vmatprep.mubr.f32.mxu0 0.0
    %246 = vmatmul.mubr.f32.gmra.mrb[0].mxu0 %v160
    %v247 = vpop.f32.mrb[0].mxu0
    %v248 = vadd.f32 %v147, %v247
    %v249 = vpop.f32.mrb[0].mxu0
    %250 = vdwg.mxu0
    %v251 = vmax.f32 %v233, 0.0
    %v252 = vmax.f32 %v238, 0.0
    %v253 = vmax.f32 %v243, 0.0
    %v254 = vmax.f32 %v248, 0.0
    %vm255 = vcmask 130048
    %v256 = vsel %vm255, %v251, 0.0
    %257 = vadd.xlane.f32.xlu0 %v256
    %v258 = vpop.xlane.xlu0 %257
    %v259 = vsel %vm255, %v252, 0.0
    %260 = vadd.xlane.f32.xlu0 %v259
    %v261 = vpop.xlane.xlu0 %260
    %v262 = vsel %vm255, %v253, 0.0
    %263 = vadd.xlane.f32.xlu0 %v262
    %v264 = vpop.xlane.xlu0 %263
    %v265 = vsel %vm255, %v254, 0.0
    %266 = vadd.xlane.f32.xlu0 %v265
    %v267 = vpop.xlane.xlu0 %266
    %v268 = vrcp.pop 16.0
    %v269 = vmul.f32 %v258, %v268
    %v270 = vmul.f32 %v261, %v268
    %v271 = vmul.f32 %v264, %v268
    %v272 = vmul.f32 %v267, %v268
    %v273 = vsub.f32 %v251, %v269
    %v274 = vsub.f32 %v252, %v270
    %v275 = vsub.f32 %v253, %v271
    %v276 = vsub.f32 %v254, %v272
    %v277 = vmul.f32 %v273, %v273
    %v278 = vmul.f32 %v274, %v274
    %v279 = vmul.f32 %v275, %v275
    %v280 = vmul.f32 %v276, %v276
    %v281 = vsel %vm255, %v277, 0.0
    %282 = vadd.xlane.f32.xlu0 %v281
    %v283 = vpop.xlane.xlu0 %282
    %v284 = vsel %vm255, %v278, 0.0
    %285 = vadd.xlane.f32.xlu0 %v284
    %v286 = vpop.xlane.xlu0 %285
    %v287 = vsel %vm255, %v279, 0.0
    %288 = vadd.xlane.f32.xlu0 %v287
    %v289 = vpop.xlane.xlu0 %288
    %v290 = vsel %vm255, %v280, 0.0
    %291 = vadd.xlane.f32.xlu0 %v290
    %v292 = vpop.xlane.xlu0 %291
    %v293 = vmul.f32 %v283, %v268
    %v294 = vmul.f32 %v286, %v268
    %v295 = vmul.f32 %v289, %v268
    %v296 = vmul.f32 %v292, %v268
    %v297 = vadd.f32 %v293, 1e-05
    %v298 = vadd.f32 %v294, 1e-05
    %v299 = vadd.f32 %v295, 1e-05
    %v300 = vadd.f32 %v296, 1e-05
    %v301 = vrsqrt.pop %v297
    %v302 = vrsqrt.pop %v298
    %v303 = vrsqrt.pop %v299
    %v304 = vrsqrt.pop %v300
    %v305 = vmul.f32 %v273, %v301
    %v306 = vmul.f32 %v274, %v302
    %v307 = vmul.f32 %v275, %v303
    %v308 = vmul.f32 %v276, %v304
    %v310 = vlaneseq
    %v311 = vshrl.u32 %v310, 7
    %v312 = vsub.s32 0, %v311
    %v313 = vrot.slane %v120, %v312
    %v315 = vmul.f32 %v305, %v313
    %v316 = vmul.f32 %v306, %v313
    %v317 = vmul.f32 %v307, %v313
    %v318 = vmul.f32 %v308, %v313
    %v320 = vlaneseq
    %v321 = vshrl.u32 %v320, 7
    %v322 = vsub.s32 0, %v321
    %v323 = vrot.slane %v121, %v322
    %v325 = vadd.f32 %v315, %v323
    %v326 = vadd.f32 %v316, %v323
    %v327 = vadd.f32 %v317, %v323
    %v328 = vadd.f32 %v318, %v323
    %333 = vrot.lane.b32.xlu0 %v100, 96
    %v334 = vpop.permute.xlu0 %333
    %335 = vrot.lane.b32.xlu0 %v102, 96
    %v336 = vpop.permute.xlu0 %335
    %337 = vrot.lane.b32.xlu0 %v104, 96
    %v338 = vpop.permute.xlu0 %337
    %339 = vrot.lane.b32.xlu0 %v106, 96
    %v340 = vpop.permute.xlu0 %339
    %345 = vrot.lane.b32.xlu0 %v108, 44
    %v346 = vpop.permute.xlu0 %345
    %347 = vrot.lane.b32.xlu0 %v109, 44
    %v348 = vpop.permute.xlu0 %347
    %349 = vrot.lane.b32.xlu0 %v110, 44
    %v350 = vpop.permute.xlu0 %349
    %351 = vrot.lane.b32.xlu0 %v111, 44
    %v352 = vpop.permute.xlu0 %351
    %v357 = vsel %vm138, %v334, %v346
    %v358 = vsel %vm138, %v336, %v348
    %v359 = vsel %vm138, %v338, %v350
    %v360 = vsel %vm138, %v340, %v352
    %v362 = vsel %vm149, %v357, 0
    %v365 = vsel %vm149, %v358, 0
    %v368 = vsel %vm149, %v359, 0
    %v371 = vsel %vm149, %v360, 0
    %373 = vmatprep.subr.mxu0 0.0
    %374 = vmatpush1.msra.mxu0 %v112
    %375 = vmatprep.subr.mxu0 0.0
    %376 = vmatpush1.msra.mxu0 %v113
    %377 = vmatprep.subr.mxu0 0.0
    %378 = vmatpush1.msra.mxu0 %v114
    %379 = vmatprep.subr.mxu0 0.0
    %380 = vmatpush1.msra.mxu0 %v115
    %381 = vmatprep.subr.mxu0 0.0
    %382 = vmatpush1.msra.mxu0 %v116
    %383 = vmatprep.subr.mxu0 0.0
    %384 = vmatpush1.msra.mxu0 %v117
    %385 = vmatprep.subr.mxu0 0.0
    %386 = vmatpush1.msra.mxu0 %v164
    %387 = vmatprep.subr.mxu0 0.0
    %388 = vmatpush1.msra.mxu0 0.0
    %389 = vmatprep.subr.mxu0 0.0
    %390 = vmatpush1.msra.mxu0 0.0
    %391 = vmatprep.subr.mxu0 0.0
    %392 = vmatpush1.msra.mxu0 0.0
    %393 = vmatprep.subr.mxu0 0.0
    %394 = vmatpush1.msra.mxu0 0.0
    %395 = vmatprep.subr.mxu0 0.0
    %396 = vmatpush1.msra.mxu0 0.0
    %397 = vmatprep.subr.mxu0 0.0
    %398 = vmatpush1.msra.mxu0 0.0
    %399 = vmatprep.subr.mxu0 0.0
    %400 = vmatpush1.msra.mxu0 0.0
    %401 = vmatprep.subr.mxu0 0.0
    %402 = vmatpush1.msra.mxu0 0.0
    %403 = vmatprep.subr.mxu0 0.0
    %404 = vmatpush1.msra.mxu0 0.0
    %405 = vmatprep.subr.mxu0 0.0
    %406 = vmatpush1.msra.mxu0 0.0
    %407 = vmatprep.subr.mxu0 0.0
    %408 = vmatpush1.msra.mxu0 0.0
    %409 = vmatprep.subr.mxu0 0.0
    %410 = vmatpush1.msra.mxu0 0.0
    %411 = vmatprep.subr.mxu0 0.0
    %412 = vmatpush1.msra.mxu0 0.0
    %413 = vmatprep.subr.mxu0 0.0
    %414 = vmatpush1.msra.mxu0 0.0
    %415 = vmatprep.subr.mxu0 0.0
    %416 = vmatpush1.msra.mxu0 0.0
    %417 = vmatprep.subr.mxu0 0.0
    %418 = vmatpush1.msra.mxu0 0.0
    %419 = vmatprep.subr.mxu0 0.0
    %420 = vmatpush1.msra.mxu0 0.0
    %421 = vmatprep.subr.mxu0 0.0
    %422 = vmatpush1.msra.mxu0 0.0
    %423 = vmatprep.subr.mxu0 0.0
    %424 = vmatpush1.msra.mxu0 0.0
    %425 = vmatprep.subr.mxu0 0.0
    %426 = vmatpush1.msra.mxu0 0.0
    %427 = vmatprep.subr.mxu0 0.0
    %428 = vmatpush1.msra.mxu0 0.0
    %429 = vmatprep.subr.mxu0 0.0
    %430 = vmatpush1.msra.mxu0 0.0
    %431 = vmatprep.subr.mxu0 0.0
    %432 = vmatpush1.msra.mxu0 0.0
    %433 = vmatprep.subr.mxu0 0.0
    %434 = vmatpush1.msra.mxu0 0.0
    %435 = vmatprep.subr.mxu0 0.0
    %436 = vmatpush1.msra.mxu0 0.0
    %437 = vmatprep.mubr.f32.mxu0 0.0
    %438 = vmatmul.mubr.f32.gmra.mrb[0].mxu0 %v362
    %v439 = vpop.f32.mrb[0].mxu0
    %v440 = vadd.f32 %v147, %v439
    %v441 = vpop.f32.mrb[0].mxu0
    %442 = vmatprep.mubr.f32.mxu0 0.0
    %443 = vmatmul.mubr.f32.gmra.mrb[0].mxu0 %v365
    %v444 = vpop.f32.mrb[0].mxu0
    %v445 = vadd.f32 %v147, %v444
    %v446 = vpop.f32.mrb[0].mxu0
    %447 = vmatprep.mubr.f32.mxu0 0.0
    %448 = vmatmul.mubr.f32.gmra.mrb[0].mxu0 %v368
    %v449 = vpop.f32.mrb[0].mxu0
    %v450 = vadd.f32 %v147, %v449
    %v451 = vpop.f32.mrb[0].mxu0
    %452 = vmatprep.mubr.f32.mxu0 0.0
    %453 = vmatmul.mubr.f32.gmra.mrb[0].mxu0 %v371
    %v454 = vpop.f32.mrb[0].mxu0
    %v455 = vadd.f32 %v147, %v454
    %v456 = vpop.f32.mrb[0].mxu0
    %457 = vdwg.mxu0
    %v458 = vmax.f32 %v440, 0.0
    %v459 = vmax.f32 %v445, 0.0
    %v460 = vmax.f32 %v450, 0.0
    %v461 = vmax.f32 %v455, 0.0
    %v462 = vsel %vm255, %v458, 0.0
    %463 = vadd.xlane.f32.xlu0 %v462
    %v464 = vpop.xlane.xlu0 %463
    %v465 = vsel %vm255, %v459, 0.0
    %466 = vadd.xlane.f32.xlu0 %v465
    %v467 = vpop.xlane.xlu0 %466
    %v468 = vsel %vm255, %v460, 0.0
    %469 = vadd.xlane.f32.xlu0 %v468
    %v470 = vpop.xlane.xlu0 %469
    %v471 = vsel %vm255, %v461, 0.0
    %472 = vadd.xlane.f32.xlu0 %v471
    %v473 = vpop.xlane.xlu0 %472
    %v474 = vmul.f32 %v464, %v268
    %v475 = vmul.f32 %v467, %v268
    %v476 = vmul.f32 %v470, %v268
    %v477 = vmul.f32 %v473, %v268
    %v478 = vsub.f32 %v458, %v474
    %v479 = vsub.f32 %v459, %v475
    %v480 = vsub.f32 %v460, %v476
    %v481 = vsub.f32 %v461, %v477
    %v482 = vmul.f32 %v478, %v478
    %v483 = vmul.f32 %v479, %v479
    %v484 = vmul.f32 %v480, %v480
    %v485 = vmul.f32 %v481, %v481
    %v486 = vsel %vm255, %v482, 0.0
    %487 = vadd.xlane.f32.xlu0 %v486
    %v488 = vpop.xlane.xlu0 %487
    %v489 = vsel %vm255, %v483, 0.0
    %490 = vadd.xlane.f32.xlu0 %v489
    %v491 = vpop.xlane.xlu0 %490
    %v492 = vsel %vm255, %v484, 0.0
    %493 = vadd.xlane.f32.xlu0 %v492
    %v494 = vpop.xlane.xlu0 %493
    %v495 = vsel %vm255, %v485, 0.0
    %496 = vadd.xlane.f32.xlu0 %v495
    %v497 = vpop.xlane.xlu0 %496
    %v498 = vmul.f32 %v488, %v268
    %v499 = vmul.f32 %v491, %v268
    %v500 = vmul.f32 %v494, %v268
    %v501 = vmul.f32 %v497, %v268
    %v502 = vadd.f32 %v498, 1e-05
    %v503 = vadd.f32 %v499, 1e-05
    %v504 = vadd.f32 %v500, 1e-05
    %v505 = vadd.f32 %v501, 1e-05
    %v506 = vrsqrt.pop %v502
    %v507 = vrsqrt.pop %v503
    %v508 = vrsqrt.pop %v504
    %v509 = vrsqrt.pop %v505
    %v510 = vmul.f32 %v478, %v506
    %v511 = vmul.f32 %v479, %v507
    %v512 = vmul.f32 %v480, %v508
    %v513 = vmul.f32 %v481, %v509
    %v514 = vmul.f32 %v510, %v313
    %v515 = vmul.f32 %v511, %v313
    %v516 = vmul.f32 %v512, %v313
    %v517 = vmul.f32 %v513, %v313
    %v518 = vadd.f32 %v514, %v323
    %v519 = vadd.f32 %v515, %v323
    %v520 = vadd.f32 %v516, %v323
    %v521 = vadd.f32 %v517, %v323
    %522 = vrot.lane.b32.xlu0 %v100, 64
    %v523 = vpop.permute.xlu0 %522
    %524 = vrot.lane.b32.xlu0 %v102, 64
    %v525 = vpop.permute.xlu0 %524
    %526 = vrot.lane.b32.xlu0 %v104, 64
    %v527 = vpop.permute.xlu0 %526
    %528 = vrot.lane.b32.xlu0 %v106, 64
    %v529 = vpop.permute.xlu0 %528
    %534 = vrot.lane.b32.xlu0 %v108, 40
    %v535 = vpop.permute.xlu0 %534
    %536 = vrot.lane.b32.xlu0 %v109, 40
    %v537 = vpop.permute.xlu0 %536
    %538 = vrot.lane.b32.xlu0 %v110, 40
    %v539 = vpop.permute.xlu0 %538
    %540 = vrot.lane.b32.xlu0 %v111, 40
    %v541 = vpop.permute.xlu0 %540
    %v546 = vsel %vm138, %v523, %v535
    %v547 = vsel %vm138, %v525, %v537
    %v548 = vsel %vm138, %v527, %v539
    %v549 = vsel %vm138, %v529, %v541
    %v551 = vsel %vm149, %v546, 0
    %v554 = vsel %vm149, %v547, 0
    %v557 = vsel %vm149, %v548, 0
    %v560 = vsel %vm149, %v549, 0
    %562 = vmatprep.subr.mxu0 0.0
    %563 = vmatpush1.msra.mxu0 %v112
    %564 = vmatprep.subr.mxu0 0.0
    %565 = vmatpush1.msra.mxu0 %v113
    %566 = vmatprep.subr.mxu0 0.0
    %567 = vmatpush1.msra.mxu0 %v114
    %568 = vmatprep.subr.mxu0 0.0
    %569 = vmatpush1.msra.mxu0 %v115
    %570 = vmatprep.subr.mxu0 0.0
    %571 = vmatpush1.msra.mxu0 %v116
    %572 = vmatprep.subr.mxu0 0.0
    %573 = vmatpush1.msra.mxu0 %v117
    %574 = vmatprep.subr.mxu0 0.0
    %575 = vmatpush1.msra.mxu0 %v164
    %576 = vmatprep.subr.mxu0 0.0
    %577 = vmatpush1.msra.mxu0 0.0
    %578 = vmatprep.subr.mxu0 0.0
    %579 = vmatpush1.msra.mxu0 0.0
    %580 = vmatprep.subr.mxu0 0.0
    %581 = vmatpush1.msra.mxu0 0.0
    %582 = vmatprep.subr.mxu0 0.0
    %583 = vmatpush1.msra.mxu0 0.0
    %584 = vmatprep.subr.mxu0 0.0
    %585 = vmatpush1.msra.mxu0 0.0
    %586 = vmatprep.subr.mxu0 0.0
    %587 = vmatpush1.msra.mxu0 0.0
    %588 = vmatprep.subr.mxu0 0.0
    %589 = vmatpush1.msra.mxu0 0.0
    %590 = vmatprep.subr.mxu0 0.0
    %591 = vmatpush1.msra.mxu0 0.0
    %592 = vmatprep.subr.mxu0 0.0
    %593 = vmatpush1.msra.mxu0 0.0
    %594 = vmatprep.subr.mxu0 0.0
    %595 = vmatpush1.msra.mxu0 0.0
    %596 = vmatprep.subr.mxu0 0.0
    %597 = vmatpush1.msra.mxu0 0.0
    %598 = vmatprep.subr.mxu0 0.0
    %599 = vmatpush1.msra.mxu0 0.0
    %600 = vmatprep.subr.mxu0 0.0
    %601 = vmatpush1.msra.mxu0 0.0
    %602 = vmatprep.subr.mxu0 0.0
    %603 = vmatpush1.msra.mxu0 0.0
    %604 = vmatprep.subr.mxu0 0.0
    %605 = vmatpush1.msra.mxu0 0.0
    %606 = vmatprep.subr.mxu0 0.0
    %607 = vmatpush1.msra.mxu0 0.0
    %608 = vmatprep.subr.mxu0 0.0
    %609 = vmatpush1.msra.mxu0 0.0
    %610 = vmatprep.subr.mxu0 0.0
    %611 = vmatpush1.msra.mxu0 0.0
    %612 = vmatprep.subr.mxu0 0.0
    %613 = vmatpush1.msra.mxu0 0.0
    %614 = vmatprep.subr.mxu0 0.0
    %615 = vmatpush1.msra.mxu0 0.0
    %616 = vmatprep.subr.mxu0 0.0
    %617 = vmatpush1.msra.mxu0 0.0
    %618 = vmatprep.subr.mxu0 0.0
    %619 = vmatpush1.msra.mxu0 0.0
    %620 = vmatprep.subr.mxu0 0.0
    %621 = vmatpush1.msra.mxu0 0.0
    %622 = vmatprep.subr.mxu0 0.0
    %623 = vmatpush1.msra.mxu0 0.0
    %624 = vmatprep.subr.mxu0 0.0
    %625 = vmatpush1.msra.mxu0 0.0
    %626 = vmatprep.mubr.f32.mxu0 0.0
    %627 = vmatmul.mubr.f32.gmra.mrb[0].mxu0 %v551
    %v628 = vpop.f32.mrb[0].mxu0
    %v629 = vadd.f32 %v147, %v628
    %v630 = vpop.f32.mrb[0].mxu0
    %631 = vmatprep.mubr.f32.mxu0 0.0
    %632 = vmatmul.mubr.f32.gmra.mrb[0].mxu0 %v554
    %v633 = vpop.f32.mrb[0].mxu0
    %v634 = vadd.f32 %v147, %v633
    %v635 = vpop.f32.mrb[0].mxu0
    %636 = vmatprep.mubr.f32.mxu0 0.0
    %637 = vmatmul.mubr.f32.gmra.mrb[0].mxu0 %v557
    %v638 = vpop.f32.mrb[0].mxu0
    %v639 = vadd.f32 %v147, %v638
    %v640 = vpop.f32.mrb[0].mxu0
    %641 = vmatprep.mubr.f32.mxu0 0.0
    %642 = vmatmul.mubr.f32.gmra.mrb[0].mxu0 %v560
    %v643 = vpop.f32.mrb[0].mxu0
    %v644 = vadd.f32 %v147, %v643
    %v645 = vpop.f32.mrb[0].mxu0
    %646 = vdwg.mxu0
    %v647 = vmax.f32 %v629, 0.0
    %v648 = vmax.f32 %v634, 0.0
    %v649 = vmax.f32 %v639, 0.0
    %v650 = vmax.f32 %v644, 0.0
    %v651 = vsel %vm255, %v647, 0.0
    %652 = vadd.xlane.f32.xlu0 %v651
    %v653 = vpop.xlane.xlu0 %652
    %v654 = vsel %vm255, %v648, 0.0
    %655 = vadd.xlane.f32.xlu0 %v654
    %v656 = vpop.xlane.xlu0 %655
    %v657 = vsel %vm255, %v649, 0.0
    %658 = vadd.xlane.f32.xlu0 %v657
    %v659 = vpop.xlane.xlu0 %658
    %v660 = vsel %vm255, %v650, 0.0
    %661 = vadd.xlane.f32.xlu0 %v660
    %v662 = vpop.xlane.xlu0 %661
    %v663 = vmul.f32 %v653, %v268
    %v664 = vmul.f32 %v656, %v268
    %v665 = vmul.f32 %v659, %v268
    %v666 = vmul.f32 %v662, %v268
    %v667 = vsub.f32 %v647, %v663
    %v668 = vsub.f32 %v648, %v664
    %v669 = vsub.f32 %v649, %v665
    %v670 = vsub.f32 %v650, %v666
    %v671 = vmul.f32 %v667, %v667
    %v672 = vmul.f32 %v668, %v668
    %v673 = vmul.f32 %v669, %v669
    %v674 = vmul.f32 %v670, %v670
    %v675 = vsel %vm255, %v671, 0.0
    %676 = vadd.xlane.f32.xlu0 %v675
    %v677 = vpop.xlane.xlu0 %676
    %v678 = vsel %vm255, %v672, 0.0
    %679 = vadd.xlane.f32.xlu0 %v678
    %v680 = vpop.xlane.xlu0 %679
    %v681 = vsel %vm255, %v673, 0.0
    %682 = vadd.xlane.f32.xlu0 %v681
    %v683 = vpop.xlane.xlu0 %682
    %v684 = vsel %vm255, %v674, 0.0
    %685 = vadd.xlane.f32.xlu0 %v684
    %v686 = vpop.xlane.xlu0 %685
    %v687 = vmul.f32 %v677, %v268
    %v688 = vmul.f32 %v680, %v268
    %v689 = vmul.f32 %v683, %v268
    %v690 = vmul.f32 %v686, %v268
    %v691 = vadd.f32 %v687, 1e-05
    %v692 = vadd.f32 %v688, 1e-05
    %v693 = vadd.f32 %v689, 1e-05
    %v694 = vadd.f32 %v690, 1e-05
    %v695 = vrsqrt.pop %v691
    %v696 = vrsqrt.pop %v692
    %v697 = vrsqrt.pop %v693
    %v698 = vrsqrt.pop %v694
    %v699 = vmul.f32 %v667, %v695
    %v700 = vmul.f32 %v668, %v696
    %v701 = vmul.f32 %v669, %v697
    %v702 = vmul.f32 %v670, %v698
    %v703 = vmul.f32 %v699, %v313
    %v704 = vmul.f32 %v700, %v313
    %v705 = vmul.f32 %v701, %v313
    %v706 = vmul.f32 %v702, %v313
    %v707 = vadd.f32 %v703, %v323
    %v708 = vadd.f32 %v704, %v323
    %v709 = vadd.f32 %v705, %v323
    %v710 = vadd.f32 %v706, %v323
    %715 = vrot.lane.b32.xlu0 %v100, 32
    %v716 = vpop.permute.xlu0 %715
    %717 = vrot.lane.b32.xlu0 %v101, 32
    %v718 = vpop.permute.xlu0 %717
    %719 = vrot.lane.b32.xlu0 %v102, 32
    %v720 = vpop.permute.xlu0 %719
    %721 = vrot.lane.b32.xlu0 %v103, 32
    %v722 = vpop.permute.xlu0 %721
    %723 = vrot.lane.b32.xlu0 %v104, 32
    %v724 = vpop.permute.xlu0 %723
    %725 = vrot.lane.b32.xlu0 %v105, 32
    %v726 = vpop.permute.xlu0 %725
    %727 = vrot.lane.b32.xlu0 %v106, 32
    %v728 = vpop.permute.xlu0 %727
    %729 = vrot.lane.b32.xlu0 %v107, 32
    %v730 = vpop.permute.xlu0 %729
    %vm731 = vcmask 261120
    %v732 = vsel %vm731, %v716, %v718
    %v733 = vsel %vm731, %v720, %v722
    %v734 = vsel %vm731, %v724, %v726
    %v735 = vsel %vm731, %v728, %v730
    %740 = vrot.lane.b32.xlu0 %v108, 36
    %v741 = vpop.permute.xlu0 %740
    %742 = vrot.lane.b32.xlu0 %v109, 36
    %v743 = vpop.permute.xlu0 %742
    %744 = vrot.lane.b32.xlu0 %v110, 36
    %v745 = vpop.permute.xlu0 %744
    %746 = vrot.lane.b32.xlu0 %v111, 36
    %v747 = vpop.permute.xlu0 %746
    %v752 = vsel %vm138, %v732, %v741
    %v753 = vsel %vm138, %v733, %v743
    %v754 = vsel %vm138, %v734, %v745
    %v755 = vsel %vm138, %v735, %v747
    %v757 = vsel %vm149, %v752, 0
    %v760 = vsel %vm149, %v753, 0
    %v763 = vsel %vm149, %v754, 0
    %v766 = vsel %vm149, %v755, 0
    %768 = vmatprep.subr.mxu0 0.0
    %769 = vmatpush1.msra.mxu0 %v112
    %770 = vmatprep.subr.mxu0 0.0
    %771 = vmatpush1.msra.mxu0 %v113
    %772 = vmatprep.subr.mxu0 0.0
    %773 = vmatpush1.msra.mxu0 %v114
    %774 = vmatprep.subr.mxu0 0.0
    %775 = vmatpush1.msra.mxu0 %v115
    %776 = vmatprep.subr.mxu0 0.0
    %777 = vmatpush1.msra.mxu0 %v116
    %778 = vmatprep.subr.mxu0 0.0
    %779 = vmatpush1.msra.mxu0 %v117
    %780 = vmatprep.subr.mxu0 0.0
    %781 = vmatpush1.msra.mxu0 %v164
    %782 = vmatprep.subr.mxu0 0.0
    %783 = vmatpush1.msra.mxu0 0.0
    %784 = vmatprep.subr.mxu0 0.0
    %785 = vmatpush1.msra.mxu0 0.0
    %786 = vmatprep.subr.mxu0 0.0
    %787 = vmatpush1.msra.mxu0 0.0
    %788 = vmatprep.subr.mxu0 0.0
    %789 = vmatpush1.msra.mxu0 0.0
    %790 = vmatprep.subr.mxu0 0.0
    %791 = vmatpush1.msra.mxu0 0.0
    %792 = vmatprep.subr.mxu0 0.0
    %793 = vmatpush1.msra.mxu0 0.0
    %794 = vmatprep.subr.mxu0 0.0
    %795 = vmatpush1.msra.mxu0 0.0
    %796 = vmatprep.subr.mxu0 0.0
    %797 = vmatpush1.msra.mxu0 0.0
    %798 = vmatprep.subr.mxu0 0.0
    %799 = vmatpush1.msra.mxu0 0.0
    %800 = vmatprep.subr.mxu0 0.0
    %801 = vmatpush1.msra.mxu0 0.0
    %802 = vmatprep.subr.mxu0 0.0
    %803 = vmatpush1.msra.mxu0 0.0
    %804 = vmatprep.subr.mxu0 0.0
    %805 = vmatpush1.msra.mxu0 0.0
    %806 = vmatprep.subr.mxu0 0.0
    %807 = vmatpush1.msra.mxu0 0.0
    %808 = vmatprep.subr.mxu0 0.0
    %809 = vmatpush1.msra.mxu0 0.0
    %810 = vmatprep.subr.mxu0 0.0
    %811 = vmatpush1.msra.mxu0 0.0
    %812 = vmatprep.subr.mxu0 0.0
    %813 = vmatpush1.msra.mxu0 0.0
    %814 = vmatprep.subr.mxu0 0.0
    %815 = vmatpush1.msra.mxu0 0.0
    %816 = vmatprep.subr.mxu0 0.0
    %817 = vmatpush1.msra.mxu0 0.0
    %818 = vmatprep.subr.mxu0 0.0
    %819 = vmatpush1.msra.mxu0 0.0
    %820 = vmatprep.subr.mxu0 0.0
    %821 = vmatpush1.msra.mxu0 0.0
    %822 = vmatprep.subr.mxu0 0.0
    %823 = vmatpush1.msra.mxu0 0.0
    %824 = vmatprep.subr.mxu0 0.0
    %825 = vmatpush1.msra.mxu0 0.0
    %826 = vmatprep.subr.mxu0 0.0
    %827 = vmatpush1.msra.mxu0 0.0
    %828 = vmatprep.subr.mxu0 0.0
    %829 = vmatpush1.msra.mxu0 0.0
    %830 = vmatprep.subr.mxu0 0.0
    %831 = vmatpush1.msra.mxu0 0.0
    %832 = vmatprep.mubr.f32.mxu0 0.0
    %833 = vmatmul.mubr.f32.gmra.mrb[0].mxu0 %v757
    %v834 = vpop.f32.mrb[0].mxu0
    %v835 = vadd.f32 %v147, %v834
    %v836 = vpop.f32.mrb[0].mxu0
    %837 = vmatprep.mubr.f32.mxu0 0.0
    %838 = vmatmul.mubr.f32.gmra.mrb[0].mxu0 %v760
    %v839 = vpop.f32.mrb[0].mxu0
    %v840 = vadd.f32 %v147, %v839
    %v841 = vpop.f32.mrb[0].mxu0
    %842 = vmatprep.mubr.f32.mxu0 0.0
    %843 = vmatmul.mubr.f32.gmra.mrb[0].mxu0 %v763
    %v844 = vpop.f32.mrb[0].mxu0
    %v845 = vadd.f32 %v147, %v844
    %v846 = vpop.f32.mrb[0].mxu0
    %847 = vmatprep.mubr.f32.mxu0 0.0
    %848 = vmatmul.mubr.f32.gmra.mrb[0].mxu0 %v766
    %v849 = vpop.f32.mrb[0].mxu0
    %v850 = vadd.f32 %v147, %v849
    %v851 = vpop.f32.mrb[0].mxu0
    %852 = vdwg.mxu0
    %v853 = vmax.f32 %v835, 0.0
    %v854 = vmax.f32 %v840, 0.0
    %v855 = vmax.f32 %v845, 0.0
    %v856 = vmax.f32 %v850, 0.0
    %v857 = vsel %vm255, %v853, 0.0
    %858 = vadd.xlane.f32.xlu0 %v857
    %v859 = vpop.xlane.xlu0 %858
    %v860 = vsel %vm255, %v854, 0.0
    %861 = vadd.xlane.f32.xlu0 %v860
    %v862 = vpop.xlane.xlu0 %861
    %v863 = vsel %vm255, %v855, 0.0
    %864 = vadd.xlane.f32.xlu0 %v863
    %v865 = vpop.xlane.xlu0 %864
    %v866 = vsel %vm255, %v856, 0.0
    %867 = vadd.xlane.f32.xlu0 %v866
    %v868 = vpop.xlane.xlu0 %867
    %v869 = vmul.f32 %v859, %v268
    %v870 = vmul.f32 %v862, %v268
    %v871 = vmul.f32 %v865, %v268
    %v872 = vmul.f32 %v868, %v268
    %v873 = vsub.f32 %v853, %v869
    %v874 = vsub.f32 %v854, %v870
    %v875 = vsub.f32 %v855, %v871
    %v876 = vsub.f32 %v856, %v872
    %v877 = vmul.f32 %v873, %v873
    %v878 = vmul.f32 %v874, %v874
    %v879 = vmul.f32 %v875, %v875
    %v880 = vmul.f32 %v876, %v876
    %v881 = vsel %vm255, %v877, 0.0
    %882 = vadd.xlane.f32.xlu0 %v881
    %v883 = vpop.xlane.xlu0 %882
    %v884 = vsel %vm255, %v878, 0.0
    %885 = vadd.xlane.f32.xlu0 %v884
    %v886 = vpop.xlane.xlu0 %885
    %v887 = vsel %vm255, %v879, 0.0
    %888 = vadd.xlane.f32.xlu0 %v887
    %v889 = vpop.xlane.xlu0 %888
    %v890 = vsel %vm255, %v880, 0.0
    %891 = vadd.xlane.f32.xlu0 %v890
    %v892 = vpop.xlane.xlu0 %891
    %v893 = vmul.f32 %v883, %v268
    %v894 = vmul.f32 %v886, %v268
    %v895 = vmul.f32 %v889, %v268
    %v896 = vmul.f32 %v892, %v268
    %v897 = vadd.f32 %v893, 1e-05
    %v898 = vadd.f32 %v894, 1e-05
    %v899 = vadd.f32 %v895, 1e-05
    %v900 = vadd.f32 %v896, 1e-05
    %v901 = vrsqrt.pop %v897
    %v902 = vrsqrt.pop %v898
    %v903 = vrsqrt.pop %v899
    %v904 = vrsqrt.pop %v900
    %v905 = vmul.f32 %v873, %v901
    %v906 = vmul.f32 %v874, %v902
    %v907 = vmul.f32 %v875, %v903
    %v908 = vmul.f32 %v876, %v904
    %v909 = vmul.f32 %v905, %v313
    %v910 = vmul.f32 %v906, %v313
    %v911 = vmul.f32 %v907, %v313
    %v912 = vmul.f32 %v908, %v313
    %v913 = vadd.f32 %v909, %v323
    %v914 = vadd.f32 %v910, %v323
    %v915 = vadd.f32 %v911, %v323
    %v916 = vadd.f32 %v912, %v323
    %921 = vrot.lane.b32.xlu0 %v518, 16
    %v922 = vpop.permute.xlu0 %921
    %923 = vrot.lane.b32.xlu0 %v519, 16
    %v924 = vpop.permute.xlu0 %923
    %925 = vrot.lane.b32.xlu0 %v520, 16
    %v926 = vpop.permute.xlu0 %925
    %927 = vrot.lane.b32.xlu0 %v521, 16
    %v928 = vpop.permute.xlu0 %927
    %937 = vrot.lane.b32.xlu0 %v707, 32
    %v938 = vpop.permute.xlu0 %937
    %939 = vrot.lane.b32.xlu0 %v708, 32
    %v940 = vpop.permute.xlu0 %939
    %941 = vrot.lane.b32.xlu0 %v709, 32
    %v942 = vpop.permute.xlu0 %941
    %943 = vrot.lane.b32.xlu0 %v710, 32
    %v944 = vpop.permute.xlu0 %943
    %953 = vrot.lane.b32.xlu0 %v913, 48
    %v954 = vpop.permute.xlu0 %953
    %955 = vrot.lane.b32.xlu0 %v914, 48
    %v956 = vpop.permute.xlu0 %955
    %957 = vrot.lane.b32.xlu0 %v915, 48
    %v958 = vpop.permute.xlu0 %957
    %959 = vrot.lane.b32.xlu0 %v916, 48
    %v960 = vpop.permute.xlu0 %959
    %v965 = vsel %vm255, %v325, %v922
    %v966 = vsel %vm255, %v326, %v924
    %v967 = vsel %vm255, %v327, %v926
    %v968 = vsel %vm255, %v328, %v928
    %v969 = vsel %vm731, %v965, %v938
    %v970 = vsel %vm731, %v966, %v940
    %v971 = vsel %vm731, %v967, %v942
    %v972 = vsel %vm731, %v968, %v944
    %v973 = vsel %vm138, %v969, %v954
    %v974 = vsel %vm138, %v970, %v956
    %v975 = vsel %vm138, %v971, %v958
    %v976 = vsel %vm138, %v972, %v960
    %vm977 = vcmask 523264
    %978 = vst.msk [vmem:[#allocation13] sm:$0xff] %vm977, %v973
    %979 = vst.msk [vmem:[#allocation13 + $0x8] sm:$0xff] %vm977, %v974
    %980 = vst.msk [vmem:[#allocation13 + $0x10] sm:$0xff] %vm977, %v975
    %981 = vst.msk [vmem:[#allocation13 + $0x18] sm:$0xff] %vm977, %v976
    // Predicated region
    $region50: #{mstgcn_block_forward.3} parent=1 // pred_check
      _
    $region51: #{mstgcn_block_forward.3} parent=1 // pred_check_branch
      %983 = sbr.rel (0) target = $region53
    $region52: #{mstgcn_block_forward.3} parent=1 // pred_region
      %s985 = ssub.s32 512, 512
      %986 = vsyncadd [#allocation4], %s985
      %s987 = sshll.u32 [#allocation13], 4
      %s988 = int_to_ptr.vmem [resolvable:$true] %s987
      %993 = dma.vmem_to_hbm [thread:$0]  %s988, 512, %s6, [#allocation4], 128, 128, 8
    $region53: #{mstgcn_block_forward.3} parent=1 // pred_fallthru
      _
    // Predicated region
    $region54: #{mstgcn_block_forward.3} parent=1 // pred_check
      _
    $region55: #{mstgcn_block_forward.3} parent=1 // pred_check_branch
      %995 = sbr.rel (0) target = $region57
    $region56: #{mstgcn_block_forward.3} parent=1 // pred_region
      %996 = dma.done [#allocation4], 512
    $region57: #{mstgcn_block_forward.3} parent=1 // pred_fallthru
      _
    %997 = vsyncpa [#allocation3], 1
    %998 = vsyncpa [#allocation6], 1
    %999 = vsyncpa [#allocation9], 1
    %1000 = vsyncpa [#allocation12], 1
    %1001 = vsyncpa [#allocation4], 1

</llo_original>
